<compile_context>
chip_gen: v5e
topology: v5e:2x2
jax: 0.10.0
libtpu: 0.0.40
codegen_flags: <defaults>
</compile_context>

<pallas_src>
import numpy as np
import jax
import jax.numpy as jnp
from jax import lax
from jax.experimental import pallas as pl
from jax.experimental.pallas import tpu as pltpu

EPS = 1e-5


# ----------------------------------------------------------------------------
# Fused Pallas kernel
# ----------------------------------------------------------------------------
def _branch_net_kernel(
    theta_ref, f_ref, rep16_ref, gsum_ref, sel_ref, mx_ref, my_ref,
    w1_ref, b1_ref, w2_ref, b2_ref,
    wsel1_ref, bx1_ref, bd2_ref, bx2_ref, bd3_ref, bx3_ref, bd4_ref, bx4_ref,
    g1_ref, be1_ref, g2_ref, be2_ref, g3_ref, be3_ref,
    pk1_ref, pk2_ref, pk3_ref,
    wf1_ref, bf1_ref, wf2_ref, bf2_ref, wf3_ref, bf3_ref, wf4_ref, bf4_ref,
    fg1_ref, fb1_ref, fg2_ref, fb2_ref, fg3_ref, fb3_ref,
    gxex_ref, eyg_ref,
    out_ref,
):
    B = theta_ref.shape[0]            # true batch rows
    R = 16 * B                        # packed conv rows: r = b*16 + coarse pixel
    f32 = jnp.float32

    def mm(a, b):
        return jnp.dot(a, b, preferred_element_type=f32)

    def relu(x):
        return jnp.maximum(x, 0.0)

    # ---------------- theta MLP on B (unreplicated) rows --------------------
    h = relu(mm(theta_ref[...], w1_ref[...]) + b1_ref[...])            # (B, 128)
    t = relu(mm(h, w2_ref[...]) + b2_ref[...])                         # (B, 512)

    # Expand to 16B rows (one-hot Rep16 matmul), keep this row's coarse-pixel
    # columns (precomputed sel mask), then TrConv1 as a lane-dense matmul.
    rep16 = rep16_ref[...]                                             # (R, B)
    t_px = mm(rep16, t) * sel_ref[...]                                 # (R, 512)
    y = relu(mm(t_px, wsel1_ref[...]) + bx1_ref[...])                  # (R, 64)

    # ---------------- BatchNorm2d (training batch stats) helper -------------
    # One matmul with Pk (channel pool+broadcast folded) on stacked [s1; s2].
    def bn2d(x, n_elems, pk_ref, g_ref, be_ref):
        s1 = jnp.sum(x, axis=0, keepdims=True)
        s2 = jnp.sum(x * x, axis=0, keepdims=True)
        st = mm(jnp.concatenate([s1, s2], axis=0), pk_ref[...]) * (1.0 / float(n_elems))
        m = st[0:1, :]
        e2 = st[1:2, :]
        scale = lax.rsqrt(e2 - m * m + EPS) * g_ref[...]
        return (x - m) * scale + be_ref[...]

    # bn1 -> TrConv2 -> relu     (cols: [k1, c1] -> [k1, k2, c2])
    y = bn2d(y, R * 4, pk1_ref, g1_ref, be1_ref)
    y = relu(mm(y, bd2_ref[...]) + bx2_ref[...])                       # (R, 256)
    # bn2 -> TrConv3 -> relu     (cols: [k1,k2,c2] -> [k1,k2,k3,c3])
    y = bn2d(y, R * 16, pk2_ref, g2_ref, be2_ref)
    y = relu(mm(y, bd3_ref[...]) + bx3_ref[...])                       # (R, 512)
    # bn3 -> TrConv4 -> tanhshrink
    y = bn2d(y, R * 64, pk3_ref, g3_ref, be3_ref)
    y = mm(y, bd4_ref[...]) + bx4_ref[...]                             # (R, 256)
    theta_q = y - jnp.tanh(y)                 # packed 64x64 image, cols = [k1..k4]

    # ---------------- f branch on B rows; BatchNorm1d(1), fused stats -------
    def bn1d(x, g_ref, be_ref):
        inv_n = 1.0 / float(x.shape[0] * x.shape[1])
        s12 = jnp.concatenate(
            [jnp.sum(x, axis=0, keepdims=True),
             jnp.sum(x * x, axis=0, keepdims=True)], axis=0)           # (2, L)
        st = jnp.sum(s12, axis=1, keepdims=True) * inv_n               # (2, 1)
        m = st[0:1, :]
        e2 = st[1:2, :]
        scale = lax.rsqrt(e2 - m * m + EPS) * g_ref[...]
        return (x - m) * scale + be_ref[...]

    fh = bn1d(relu(mm(f_ref[...], wf1_ref[...]) + bf1_ref[...]), fg1_ref, fb1_ref)
    fh = bn1d(relu(mm(fh, wf2_ref[...]) + bf2_ref[...]), fg2_ref, fb2_ref)
    fh = bn1d(relu(mm(fh, wf3_ref[...]) + bf3_ref[...]), fg3_ref, fb3_ref)
    f4 = mm(fh, wf4_ref[...]) + bf4_ref[...]                           # (B, 64)

    # ---------------- combine: out[b, y] = sum_x theta[b, y, x] * f4[b, x] --
    # Expand f to the packed rows, keep this row's 16-wide X1 block, scatter to
    # Z-order columns, reduce over x, keep this row's Y1 block, group-sum rows.
    fx = mm(rep16, f4) * mx_ref[...]                                   # (R, 64)
    fq = mm(fx, gxex_ref[...])                                         # (R, 256)
    py = mm(theta_q * fq, eyg_ref[...]) * my_ref[...]                  # (R, 128) lane-dense
    out_ref[...] = mm(gsum_ref[...], py)                               # (B, 128) lane-dense


# ----------------------------------------------------------------------------
# Parameter construction (deterministic, synthetic)
# ----------------------------------------------------------------------------
def init_params(key):
    keys = iter(jax.random.split(key, 40))

    def nk():
        return next(keys)

    def lin(fan_in, fan_out):
        w = jax.random.normal(nk(), (fan_in, fan_out), jnp.float32) / np.sqrt(fan_in)
        b = 0.1 * jax.random.normal(nk(), (fan_out,), jnp.float32)
        return w, b

    def tconv(cin, cout):  # PyTorch ConvTranspose2d weight layout (Cin, Cout, 2, 2)
        w = jax.random.normal(nk(), (cin, cout, 2, 2), jnp.float32) / np.sqrt(cin)
        b = 0.1 * jax.random.normal(nk(), (cout,), jnp.float32)
        return w, b

    def bn(c):
        g = 1.0 + 0.1 * jax.random.normal(nk(), (c,), jnp.float32)
        be = 0.1 * jax.random.normal(nk(), (c,), jnp.float32)
        return g, be

    P = {}
    P["W1"], P["b1"] = lin(100, 100)
    P["W2"], P["b2"] = lin(100, 512)
    P["WF1"], P["bF1"] = lin(100, 128)
    P["WF2"], P["bF2"] = lin(128, 256)
    P["WF3"], P["bF3"] = lin(256, 128)
    P["WF4"], P["bF4"] = lin(128, 64)
    P["Fg1"], P["Fb1"] = bn(1)
    P["Fg2"], P["Fb2"] = bn(1)
    P["Fg3"], P["Fb3"] = bn(1)
    P["Wc1"], P["bc1"] = tconv(32, 16)
    P["Wc2"], P["bc2"] = tconv(16, 16)
    P["Wc3"], P["bc3"] = tconv(16, 8)
    P["Wc4"], P["bc4"] = tconv(8, 1)
    P["g1"], P["be1"] = bn(16)
    P["g2"], P["be2"] = bn(16)
    P["g3"], P["be3"] = bn(8)
    return P


def prepare_kernel_params(P):
    def A(x):
        return np.asarray(x, np.float32)

    def pad_rows_cols(w, rows=None, cols=None):
        w = A(w)
        pr = 0 if rows is None else rows - w.shape[0]
        pc = 0 if cols is None else cols - w.shape[1]
        return np.pad(w, ((0, pr), (0, pc)))

    def tconv_mat(w):                 # (Cin,Cout,2,2) -> (Cin, 4*Cout), col = k*Cout+co
        w = A(w)
        cin, cout = w.shape[0], w.shape[1]
        return np.transpose(w, (0, 2, 3, 1)).reshape(cin, 4 * cout)

    KP = {}
    # theta MLP: contraction dims zero-padded 100 -> 128
    KP["W1"] = pad_rows_cols(P["W1"], 128, 128)
    KP["b1"] = np.pad(A(P["b1"]), (0, 28)).reshape(1, 128)
    KP["W2"] = pad_rows_cols(P["W2"], 128, None)
    KP["b2"] = A(P["b2"]).reshape(1, 512)

    # TrConv1 folded with the per-row coarse-pixel selection (rows repeat over p0)
    Wm1 = tconv_mat(P["Wc1"])                       # (32, 64)
    KP["Wsel1"] = np.repeat(Wm1, 16, axis=0)        # (512, 64): row c*16+p -> Wm1[c]
    KP["bx1"] = np.tile(A(P["bc1"]), 4).reshape(1, 64)

    # TrConv2..4 as block-diagonal (per-pixel) lane-dense matmuls
    Wm2 = tconv_mat(P["Wc2"])                       # (16, 64)
    Wm3 = tconv_mat(P["Wc3"])                       # (16, 32)
    Wm4 = tconv_mat(P["Wc4"])                       # (8, 4)
    eye = lambda n: np.eye(n, dtype=np.float32)
    KP["BD2"] = np.kron(eye(4), Wm2)                # (64, 256)
    KP["BD3"] = np.kron(eye(16), Wm3)               # (256, 512)
    KP["BD4"] = np.kron(eye(64), Wm4)               # (512, 256)
    KP["bx2"] = np.tile(A(P["bc2"]), 16).reshape(1, 256)
    KP["bx3"] = np.tile(A(P["bc3"]), 64).reshape(1, 512)
    KP["bx4"] = np.tile(A(P["bc4"]), 256).reshape(1, 256)

    # BatchNorm2d params tiled to the packed column layouts
    KP["g1"] = np.tile(A(P["g1"]), 4).reshape(1, 64)
    KP["be1"] = np.tile(A(P["be1"]), 4).reshape(1, 64)
    KP["g2"] = np.tile(A(P["g2"]), 16).reshape(1, 256)
    KP["be2"] = np.tile(A(P["be2"]), 16).reshape(1, 256)
    KP["g3"] = np.tile(A(P["g3"]), 64).reshape(1, 512)
    KP["be3"] = np.tile(A(P["be3"]), 64).reshape(1, 512)

    # Pk = Dn @ Up folded: (cols,cols) 0/1 matrix, Pk[i,j] = [channel(i)==channel(j)]
    def pk_mat(ncols, nch):
        i = np.arange(ncols)
        return (i[:, None] % nch == i[None, :] % nch).astype(np.float32)

    KP["Pk1"] = pk_mat(64, 16)
    KP["Pk2"] = pk_mat(256, 16)
    KP["Pk3"] = pk_mat(512, 8)

    # f branch (first contraction padded 100 -> 128)
    KP["WF1"] = pad_rows_cols(P["WF1"], 128, None)
    KP["bF1"] = A(P["bF1"]).reshape(1, 128)
    KP["WF2"] = A(P["WF2"]); KP["bF2"] = A(P["bF2"]).reshape(1, 256)
    KP["WF3"] = A(P["WF3"]); KP["bF3"] = A(P["bF3"]).reshape(1, 128)
    KP["WF4"] = A(P["WF4"]); KP["bF4"] = A(P["bF4"]).reshape(1, 64)
    for n in ("Fg1", "Fb1", "Fg2", "Fb2", "Fg3", "Fb3"):
        KP[n] = A(P[n]).reshape(1, 1)

    # Combine: static maps between packed Z-order columns and the 64x64 raster.
    q = np.arange(256)
    k1, k2, k3, k4 = q // 64, (q // 16) % 4, (q // 4) % 4, q % 4
    yl = 8 * (k1 // 2) + 4 * (k2 // 2) + 2 * (k3 // 2) + (k4 // 2)    # local y in cell
    xl = 8 * (k1 % 2) + 4 * (k2 % 2) + 2 * (k3 % 2) + (k4 % 2)        # local x in cell
    gxex = np.zeros((64, 256), np.float32)    # x column (per X-block) -> Z column
    eyg = np.zeros((256, 128), np.float32)    # Z column -> y column (128-wide, lane-dense)
    for blk in range(4):
        gxex[16 * blk + xl, q] = 1.0
        eyg[q, 16 * blk + yl] = 1.0
    KP["GXEX"] = gxex
    KP["EYG"] = eyg

    return jax.tree_util.tree_map(jnp.asarray, KP)


# ----------------------------------------------------------------------------
# Forward pass (single fused Pallas call)
# ----------------------------------------------------------------------------
@jax.jit
def branch_net_pallas(theta, f, KP):
    B = theta.shape[0]
    theta_p = jnp.pad(theta.astype(jnp.float32),
                      ((0, 0), (0, 128 - theta.shape[-1])))
    f_p = jnp.pad(f.reshape(B, f.shape[-1]).astype(jnp.float32),
                  ((0, 0), (0, 128 - f.shape[-1])))

    # B-dependent layout constants (B is static under jit; built once with numpy).
    p = np.arange(16)
    sel16 = (np.arange(512)[None, :] % 16 == p[:, None]).astype(np.float32)   # pixel select
    mx16 = (np.arange(64)[None, :] // 16 == (p % 4)[:, None]).astype(np.float32)
    my16 = np.zeros((16, 128), np.float32)
    my16[:, :64] = (np.arange(64)[None, :] // 16 == (p // 4)[:, None])
    sel = jnp.asarray(np.tile(sel16, (B, 1)))                                 # (16B, 512)
    mx = jnp.asarray(np.tile(mx16, (B, 1)))                                   # (16B, 64)
    my = jnp.asarray(np.tile(my16, (B, 1)))                                   # (16B, 128)
    rep16 = jnp.asarray(np.repeat(np.eye(B, dtype=np.float32), 16, axis=0))   # (16B, B)
    gsum = jnp.asarray(np.repeat(np.eye(B, dtype=np.float32), 16, axis=1))    # (B, 16B)

    args = (
        theta_p, f_p, rep16, gsum, sel, mx, my,
        KP["W1"], KP["b1"], KP["W2"], KP["b2"],
        KP["Wsel1"], KP["bx1"], KP["BD2"], KP["bx2"],
        KP["BD3"], KP["bx3"], KP["BD4"], KP["bx4"],
        KP["g1"], KP["be1"], KP["g2"], KP["be2"], KP["g3"], KP["be3"],
        KP["Pk1"], KP["Pk2"], KP["Pk3"],
        KP["WF1"], KP["bF1"], KP["WF2"], KP["bF2"],
        KP["WF3"], KP["bF3"], KP["WF4"], KP["bF4"],
        KP["Fg1"], KP["Fb1"], KP["Fg2"], KP["Fb2"], KP["Fg3"], KP["Fb3"],
        KP["GXEX"], KP["EYG"],
    )
    out = pl.pallas_call(
        _branch_net_kernel,
        out_shape=jax.ShapeDtypeStruct((B, 128), jnp.float32),   # lane-dense output slab
        in_specs=[pl.BlockSpec(memory_space=pltpu.MemorySpace.VMEM)] * len(args),
        out_specs=pl.BlockSpec(memory_space=pltpu.MemorySpace.VMEM),
    )(*args)
    return out[:, :64].reshape(B, 1, 64)
    # TODO(synk): add a row grid with resident-weight BlockSpecs + a BN-stats
    # pre-pass (and dimension_semantics=("parallel",)) for large B so both v7x
    # TensorCores are used and VMEM stays bounded.


# ----------------------------------------------------------------------------
# Pure-JAX reference (direct NCHW translation of the PyTorch forward)
# ----------------------------------------------------------------------------
def branch_net_reference(theta, f, P):
    hp = jax.lax.Precision.HIGHEST

    def dense(x, w, b):
        return jnp.dot(x, w, precision=hp) + b

    def bn2d(x, g, be):
        m = jnp.mean(x, axis=(0, 2, 3), keepdims=True)
        v = jnp.mean((x - m) ** 2, axis=(0, 2, 3), keepdims=True)
        return (x - m) * lax.rsqrt(v + EPS) * g[None, :, None, None] + be[None, :, None, None]

    def bn1d(x, g, be):  # x: (B, 1, L)
        m = jnp.mean(x, axis=(0, 2), keepdims=True)
        v = jnp.mean((x - m) ** 2, axis=(0, 2), keepdims=True)
        return (x - m) * lax.rsqrt(v + EPS) * g[None, :, None] + be[None, :, None]

    def tconv(x, w, b):  # x (B,C,H,W), w (C,Co,2,2), stride 2
        B, C, H, W = x.shape
        Co = w.shape[1]
        t = jnp.einsum("bchw,cokl->bohkwl", x, w, precision=hp)
        return t.reshape(B, Co, 2 * H, 2 * W) + b[None, :, None, None]

    B = theta.shape[0]
    t = jax.nn.relu(dense(theta, P["W1"], P["b1"]))
    t = jax.nn.relu(dense(t, P["W2"], P["b2"]))
    t = t.reshape(B, 32, 4, 4)
    t = bn2d(jax.nn.relu(tconv(t, P["Wc1"], P["bc1"])), P["g1"], P["be1"])
    t = bn2d(jax.nn.relu(tconv(t, P["Wc2"], P["bc2"])), P["g2"], P["be2"])
    t = bn2d(jax.nn.relu(tconv(t, P["Wc3"], P["bc3"])), P["g3"], P["be3"])
    t4 = tconv(t, P["Wc4"], P["bc4"])
    t4 = t4 - jnp.tanh(t4)                        # tanhshrink

    h = bn1d(jax.nn.relu(dense(f, P["WF1"], P["bF1"])), P["Fg1"], P["Fb1"])
    h = bn1d(jax.nn.relu(dense(h, P["WF2"], P["bF2"])), P["Fg2"], P["Fb2"])
    h = bn1d(jax.nn.relu(dense(h, P["WF3"], P["bF3"])), P["Fg3"], P["Fb3"])
    h = dense(h, P["WF4"], P["bF4"])              # (B,1,64)
    h = h[..., None]                              # (B,1,64,1)
    return jnp.matmul(t4, h, precision=hp).sum(axis=-1)   # (B,1,64)


# ----------------------------------------------------------------------------
if __name__ == "__main__":
    key = jax.random.PRNGKey(0)
    kp, kt, kf = jax.random.split(key, 3)

    P = init_params(kp)
    KP = prepare_kernel_params(P)

    B = 2
    theta = jax.random.normal(kt, (B, 100), jnp.float32)
    f = jax.random.normal(kf, (B, 1, 100), jnp.float32)

    out = jax.block_until_ready(branch_net_pallas(theta, f, KP))
    ref = jax.block_until_ready(branch_net_reference(theta, f, P))

    assert out.shape == (B, 1, 64), out.shape
    np.testing.assert_allclose(np.asarray(out), np.asarray(ref), rtol=2e-3, atol=2e-3)
    print("KERNEL_OK")
</pallas_src>

<mosaic_0001>
module attributes {stable_mosaic.version = 11 : i64} {
  func.func @_branch_net_kernel(%arg0: memref<2x128xf32, #tpu.memory_space<vmem>>, %arg1: memref<2x128xf32, #tpu.memory_space<vmem>>, %arg2: memref<32x2xf32, #tpu.memory_space<vmem>>, %arg3: memref<2x32xf32, #tpu.memory_space<vmem>>, %arg4: memref<32x512xf32, #tpu.memory_space<vmem>>, %arg5: memref<32x64xf32, #tpu.memory_space<vmem>>, %arg6: memref<32x128xf32, #tpu.memory_space<vmem>>, %arg7: memref<128x128xf32, #tpu.memory_space<vmem>>, %arg8: memref<1x128xf32, #tpu.memory_space<vmem>>, %arg9: memref<128x512xf32, #tpu.memory_space<vmem>>, %arg10: memref<1x512xf32, #tpu.memory_space<vmem>>, %arg11: memref<512x64xf32, #tpu.memory_space<vmem>>, %arg12: memref<1x64xf32, #tpu.memory_space<vmem>>, %arg13: memref<64x256xf32, #tpu.memory_space<vmem>>, %arg14: memref<1x256xf32, #tpu.memory_space<vmem>>, %arg15: memref<256x512xf32, #tpu.memory_space<vmem>>, %arg16: memref<1x512xf32, #tpu.memory_space<vmem>>, %arg17: memref<512x256xf32, #tpu.memory_space<vmem>>, %arg18: memref<1x256xf32, #tpu.memory_space<vmem>>, %arg19: memref<1x64xf32, #tpu.memory_space<vmem>>, %arg20: memref<1x64xf32, #tpu.memory_space<vmem>>, %arg21: memref<1x256xf32, #tpu.memory_space<vmem>>, %arg22: memref<1x256xf32, #tpu.memory_space<vmem>>, %arg23: memref<1x512xf32, #tpu.memory_space<vmem>>, %arg24: memref<1x512xf32, #tpu.memory_space<vmem>>, %arg25: memref<64x64xf32, #tpu.memory_space<vmem>>, %arg26: memref<256x256xf32, #tpu.memory_space<vmem>>, %arg27: memref<512x512xf32, #tpu.memory_space<vmem>>, %arg28: memref<128x128xf32, #tpu.memory_space<vmem>>, %arg29: memref<1x128xf32, #tpu.memory_space<vmem>>, %arg30: memref<128x256xf32, #tpu.memory_space<vmem>>, %arg31: memref<1x256xf32, #tpu.memory_space<vmem>>, %arg32: memref<256x128xf32, #tpu.memory_space<vmem>>, %arg33: memref<1x128xf32, #tpu.memory_space<vmem>>, %arg34: memref<128x64xf32, #tpu.memory_space<vmem>>, %arg35: memref<1x64xf32, #tpu.memory_space<vmem>>, %arg36: memref<1x1xf32, #tpu.memory_space<vmem>>, %arg37: memref<1x1xf32, #tpu.memory_space<vmem>>, %arg38: memref<1x1xf32, #tpu.memory_space<vmem>>, %arg39: memref<1x1xf32, #tpu.memory_space<vmem>>, %arg40: memref<1x1xf32, #tpu.memory_space<vmem>>, %arg41: memref<1x1xf32, #tpu.memory_space<vmem>>, %arg42: memref<64x256xf32, #tpu.memory_space<vmem>>, %arg43: memref<256x128xf32, #tpu.memory_space<vmem>>, %arg44: memref<2x128xf32, #tpu.memory_space<vmem>>) attributes {dimension_semantics = [], scalar_prefetch = 0 : i64, scratch_operands = 0 : i64, tpu.core_type = #tpu.core_type<tc>} {
    %c0 = arith.constant 0 : index
    %c0_0 = arith.constant 0 : index
    %0 = vector.load %arg0[%c0, %c0_0] : memref<2x128xf32, #tpu.memory_space<vmem>>, vector<2x128xf32>
    %c0_1 = arith.constant 0 : index
    %c0_2 = arith.constant 0 : index
    %1 = vector.load %arg7[%c0_1, %c0_2] : memref<128x128xf32, #tpu.memory_space<vmem>>, vector<128x128xf32>
    %cst = arith.constant dense<0.000000e+00> : vector<2x128xf32>
    %2 = tpu.matmul %0, %1, %cst {dimension_numbers = #tpu.dot_dimension_numbers<[1], [0], [0], [1], [0, 0, 1, 1], [], []>} : vector<2x128xf32>, vector<128x128xf32>, vector<2x128xf32> -> vector<2x128xf32>
    %c0_3 = arith.constant 0 : index
    %c0_4 = arith.constant 0 : index
    %3 = vector.load %arg8[%c0_3, %c0_4] : memref<1x128xf32, #tpu.memory_space<vmem>>, vector<1x128xf32>
    %4 = vector.broadcast %3 : vector<1x128xf32> to vector<2x128xf32>
    %5 = arith.addf %2, %4 : vector<2x128xf32>
    %cst_5 = arith.constant 0.000000e+00 : f32
    %6 = vector.broadcast %cst_5 : f32 to vector<2x128xf32>
    %7 = arith.maximumf %5, %6 : vector<2x128xf32>
    %c0_6 = arith.constant 0 : index
    %c0_7 = arith.constant 0 : index
    %8 = vector.load %arg9[%c0_6, %c0_7] : memref<128x512xf32, #tpu.memory_space<vmem>>, vector<128x512xf32>
    %cst_8 = arith.constant dense<0.000000e+00> : vector<2x512xf32>
    %9 = tpu.matmul %7, %8, %cst_8 {dimension_numbers = #tpu.dot_dimension_numbers<[1], [0], [0], [1], [0, 0, 1, 1], [], []>} : vector<2x128xf32>, vector<128x512xf32>, vector<2x512xf32> -> vector<2x512xf32>
    %c0_9 = arith.constant 0 : index
    %c0_10 = arith.constant 0 : index
    %10 = vector.load %arg10[%c0_9, %c0_10] : memref<1x512xf32, #tpu.memory_space<vmem>>, vector<1x512xf32>
    %11 = vector.broadcast %10 : vector<1x512xf32> to vector<2x512xf32>
    %12 = arith.addf %9, %11 : vector<2x512xf32>
    %cst_11 = arith.constant 0.000000e+00 : f32
    %13 = vector.broadcast %cst_11 : f32 to vector<2x512xf32>
    %14 = arith.maximumf %12, %13 : vector<2x512xf32>
    %c0_12 = arith.constant 0 : index
    %c0_13 = arith.constant 0 : index
    %15 = vector.load %arg2[%c0_12, %c0_13] : memref<32x2xf32, #tpu.memory_space<vmem>>, vector<32x2xf32>
    %cst_14 = arith.constant dense<0.000000e+00> : vector<32x512xf32>
    %16 = tpu.matmul %15, %14, %cst_14 {dimension_numbers = #tpu.dot_dimension_numbers<[1], [0], [0], [1], [0, 0, 1, 1], [], []>} : vector<32x2xf32>, vector<2x512xf32>, vector<32x512xf32> -> vector<32x512xf32>
    %c0_15 = arith.constant 0 : index
    %c0_16 = arith.constant 0 : index
    %17 = vector.load %arg4[%c0_15, %c0_16] : memref<32x512xf32, #tpu.memory_space<vmem>>, vector<32x512xf32>
    %18 = arith.mulf %16, %17 : vector<32x512xf32>
    %c0_17 = arith.constant 0 : index
    %c0_18 = arith.constant 0 : index
    %19 = vector.load %arg11[%c0_17, %c0_18] : memref<512x64xf32, #tpu.memory_space<vmem>>, vector<512x64xf32>
    %cst_19 = arith.constant dense<0.000000e+00> : vector<32x64xf32>
    %20 = tpu.matmul %18, %19, %cst_19 {dimension_numbers = #tpu.dot_dimension_numbers<[1], [0], [0], [1], [0, 0, 1, 1], [], []>} : vector<32x512xf32>, vector<512x64xf32>, vector<32x64xf32> -> vector<32x64xf32>
    %c0_20 = arith.constant 0 : index
    %c0_21 = arith.constant 0 : index
    %21 = vector.load %arg12[%c0_20, %c0_21] : memref<1x64xf32, #tpu.memory_space<vmem>>, vector<1x64xf32>
    %22 = vector.broadcast %21 : vector<1x64xf32> to vector<32x64xf32>
    %23 = arith.addf %20, %22 : vector<32x64xf32>
    %cst_22 = arith.constant 0.000000e+00 : f32
    %24 = vector.broadcast %cst_22 : f32 to vector<32x64xf32>
    %25 = arith.maximumf %23, %24 : vector<32x64xf32>
    %cst_23 = arith.constant dense<0.000000e+00> : vector<64xf32>
    %26 = vector.multi_reduction <add>, %25, %cst_23 [0] : vector<32x64xf32> to vector<64xf32>
    %27 = vector.shape_cast %26 : vector<64xf32> to vector<1x64xf32>
    %28 = arith.mulf %25, %25 : vector<32x64xf32>
    %cst_24 = arith.constant dense<0.000000e+00> : vector<64xf32>
    %29 = vector.multi_reduction <add>, %28, %cst_24 [0] : vector<32x64xf32> to vector<64xf32>
    %30 = vector.shape_cast %29 : vector<64xf32> to vector<1x64xf32>
    %31 = tpu.concatenate %27, %30 in 0 : vector<1x64xf32>, vector<1x64xf32> -> vector<2x64xf32>
    %c0_25 = arith.constant 0 : index
    %c0_26 = arith.constant 0 : index
    %32 = vector.load %arg25[%c0_25, %c0_26] : memref<64x64xf32, #tpu.memory_space<vmem>>, vector<64x64xf32>
    %cst_27 = arith.constant dense<0.000000e+00> : vector<2x64xf32>
    %33 = tpu.matmul %31, %32, %cst_27 {dimension_numbers = #tpu.dot_dimension_numbers<[1], [0], [0], [1], [0, 0, 1, 1], [], []>} : vector<2x64xf32>, vector<64x64xf32>, vector<2x64xf32> -> vector<2x64xf32>
    %cst_28 = arith.constant 7.812500e-03 : f32
    %34 = vector.broadcast %cst_28 : f32 to vector<2x64xf32>
    %35 = arith.mulf %33, %34 : vector<2x64xf32>
    %36 = vector.extract_strided_slice %35 {offsets = [0, 0], sizes = [1, 64], strides = [1, 1]} : vector<2x64xf32> to vector<1x64xf32>
    %37 = vector.extract_strided_slice %35 {offsets = [1, 0], sizes = [1, 64], strides = [1, 1]} : vector<2x64xf32> to vector<1x64xf32>
    %38 = arith.mulf %36, %36 : vector<1x64xf32>
    %39 = arith.subf %37, %38 : vector<1x64xf32>
    %cst_29 = arith.constant 9.99999974E-6 : f32
    %40 = vector.broadcast %cst_29 : f32 to vector<1x64xf32>
    %41 = arith.addf %39, %40 : vector<1x64xf32>
    %42 = math.rsqrt %41 : vector<1x64xf32>
    %c0_30 = arith.constant 0 : index
    %c0_31 = arith.constant 0 : index
    %43 = vector.load %arg19[%c0_30, %c0_31] : memref<1x64xf32, #tpu.memory_space<vmem>>, vector<1x64xf32>
    %44 = arith.mulf %42, %43 : vector<1x64xf32>
    %45 = vector.broadcast %36 : vector<1x64xf32> to vector<32x64xf32>
    %46 = arith.subf %25, %45 : vector<32x64xf32>
    %47 = vector.broadcast %44 : vector<1x64xf32> to vector<32x64xf32>
    %48 = arith.mulf %46, %47 : vector<32x64xf32>
    %c0_32 = arith.constant 0 : index
    %c0_33 = arith.constant 0 : index
    %49 = vector.load %arg20[%c0_32, %c0_33] : memref<1x64xf32, #tpu.memory_space<vmem>>, vector<1x64xf32>
    %50 = vector.broadcast %49 : vector<1x64xf32> to vector<32x64xf32>
    %51 = arith.addf %48, %50 : vector<32x64xf32>
    %c0_34 = arith.constant 0 : index
    %c0_35 = arith.constant 0 : index
    %52 = vector.load %arg13[%c0_34, %c0_35] : memref<64x256xf32, #tpu.memory_space<vmem>>, vector<64x256xf32>
    %cst_36 = arith.constant dense<0.000000e+00> : vector<32x256xf32>
    %53 = tpu.matmul %51, %52, %cst_36 {dimension_numbers = #tpu.dot_dimension_numbers<[1], [0], [0], [1], [0, 0, 1, 1], [], []>} : vector<32x64xf32>, vector<64x256xf32>, vector<32x256xf32> -> vector<32x256xf32>
    %c0_37 = arith.constant 0 : index
    %c0_38 = arith.constant 0 : index
    %54 = vector.load %arg14[%c0_37, %c0_38] : memref<1x256xf32, #tpu.memory_space<vmem>>, vector<1x256xf32>
    %55 = vector.broadcast %54 : vector<1x256xf32> to vector<32x256xf32>
    %56 = arith.addf %53, %55 : vector<32x256xf32>
    %cst_39 = arith.constant 0.000000e+00 : f32
    %57 = vector.broadcast %cst_39 : f32 to vector<32x256xf32>
    %58 = arith.maximumf %56, %57 : vector<32x256xf32>
    %cst_40 = arith.constant dense<0.000000e+00> : vector<256xf32>
    %59 = vector.multi_reduction <add>, %58, %cst_40 [0] : vector<32x256xf32> to vector<256xf32>
    %60 = vector.shape_cast %59 : vector<256xf32> to vector<1x256xf32>
    %61 = arith.mulf %58, %58 : vector<32x256xf32>
    %cst_41 = arith.constant dense<0.000000e+00> : vector<256xf32>
    %62 = vector.multi_reduction <add>, %61, %cst_41 [0] : vector<32x256xf32> to vector<256xf32>
    %63 = vector.shape_cast %62 : vector<256xf32> to vector<1x256xf32>
    %64 = tpu.concatenate %60, %63 in 0 : vector<1x256xf32>, vector<1x256xf32> -> vector<2x256xf32>
    %c0_42 = arith.constant 0 : index
    %c0_43 = arith.constant 0 : index
    %65 = vector.load %arg26[%c0_42, %c0_43] : memref<256x256xf32, #tpu.memory_space<vmem>>, vector<256x256xf32>
    %cst_44 = arith.constant dense<0.000000e+00> : vector<2x256xf32>
    %66 = tpu.matmul %64, %65, %cst_44 {dimension_numbers = #tpu.dot_dimension_numbers<[1], [0], [0], [1], [0, 0, 1, 1], [], []>} : vector<2x256xf32>, vector<256x256xf32>, vector<2x256xf32> -> vector<2x256xf32>
    %cst_45 = arith.constant 0.001953125 : f32
    %67 = vector.broadcast %cst_45 : f32 to vector<2x256xf32>
    %68 = arith.mulf %66, %67 : vector<2x256xf32>
    %69 = vector.extract_strided_slice %68 {offsets = [0, 0], sizes = [1, 256], strides = [1, 1]} : vector<2x256xf32> to vector<1x256xf32>
    %70 = vector.extract_strided_slice %68 {offsets = [1, 0], sizes = [1, 256], strides = [1, 1]} : vector<2x256xf32> to vector<1x256xf32>
    %71 = arith.mulf %69, %69 : vector<1x256xf32>
    %72 = arith.subf %70, %71 : vector<1x256xf32>
    %cst_46 = arith.constant 9.99999974E-6 : f32
    %73 = vector.broadcast %cst_46 : f32 to vector<1x256xf32>
    %74 = arith.addf %72, %73 : vector<1x256xf32>
    %75 = math.rsqrt %74 : vector<1x256xf32>
    %c0_47 = arith.constant 0 : index
    %c0_48 = arith.constant 0 : index
    %76 = vector.load %arg21[%c0_47, %c0_48] : memref<1x256xf32, #tpu.memory_space<vmem>>, vector<1x256xf32>
    %77 = arith.mulf %75, %76 : vector<1x256xf32>
    %78 = vector.broadcast %69 : vector<1x256xf32> to vector<32x256xf32>
    %79 = arith.subf %58, %78 : vector<32x256xf32>
    %80 = vector.broadcast %77 : vector<1x256xf32> to vector<32x256xf32>
    %81 = arith.mulf %79, %80 : vector<32x256xf32>
    %c0_49 = arith.constant 0 : index
    %c0_50 = arith.constant 0 : index
    %82 = vector.load %arg22[%c0_49, %c0_50] : memref<1x256xf32, #tpu.memory_space<vmem>>, vector<1x256xf32>
    %83 = vector.broadcast %82 : vector<1x256xf32> to vector<32x256xf32>
    %84 = arith.addf %81, %83 : vector<32x256xf32>
    %c0_51 = arith.constant 0 : index
    %c0_52 = arith.constant 0 : index
    %85 = vector.load %arg15[%c0_51, %c0_52] : memref<256x512xf32, #tpu.memory_space<vmem>>, vector<256x512xf32>
    %cst_53 = arith.constant dense<0.000000e+00> : vector<32x512xf32>
    %86 = tpu.matmul %84, %85, %cst_53 {dimension_numbers = #tpu.dot_dimension_numbers<[1], [0], [0], [1], [0, 0, 1, 1], [], []>} : vector<32x256xf32>, vector<256x512xf32>, vector<32x512xf32> -> vector<32x512xf32>
    %c0_54 = arith.constant 0 : index
    %c0_55 = arith.constant 0 : index
    %87 = vector.load %arg16[%c0_54, %c0_55] : memref<1x512xf32, #tpu.memory_space<vmem>>, vector<1x512xf32>
    %88 = vector.broadcast %87 : vector<1x512xf32> to vector<32x512xf32>
    %89 = arith.addf %86, %88 : vector<32x512xf32>
    %cst_56 = arith.constant 0.000000e+00 : f32
    %90 = vector.broadcast %cst_56 : f32 to vector<32x512xf32>
    %91 = arith.maximumf %89, %90 : vector<32x512xf32>
    %cst_57 = arith.constant dense<0.000000e+00> : vector<512xf32>
    %92 = vector.multi_reduction <add>, %91, %cst_57 [0] : vector<32x512xf32> to vector<512xf32>
    %93 = vector.shape_cast %92 : vector<512xf32> to vector<1x512xf32>
    %94 = arith.mulf %91, %91 : vector<32x512xf32>
    %cst_58 = arith.constant dense<0.000000e+00> : vector<512xf32>
    %95 = vector.multi_reduction <add>, %94, %cst_58 [0] : vector<32x512xf32> to vector<512xf32>
    %96 = vector.shape_cast %95 : vector<512xf32> to vector<1x512xf32>
    %97 = tpu.concatenate %93, %96 in 0 : vector<1x512xf32>, vector<1x512xf32> -> vector<2x512xf32>
    %c0_59 = arith.constant 0 : index
    %c0_60 = arith.constant 0 : index
    %98 = vector.load %arg27[%c0_59, %c0_60] : memref<512x512xf32, #tpu.memory_space<vmem>>, vector<512x512xf32>
    %cst_61 = arith.constant dense<0.000000e+00> : vector<2x512xf32>
    %99 = tpu.matmul %97, %98, %cst_61 {dimension_numbers = #tpu.dot_dimension_numbers<[1], [0], [0], [1], [0, 0, 1, 1], [], []>} : vector<2x512xf32>, vector<512x512xf32>, vector<2x512xf32> -> vector<2x512xf32>
    %cst_62 = arith.constant 4.8828125E-4 : f32
    %100 = vector.broadcast %cst_62 : f32 to vector<2x512xf32>
    %101 = arith.mulf %99, %100 : vector<2x512xf32>
    %102 = vector.extract_strided_slice %101 {offsets = [0, 0], sizes = [1, 512], strides = [1, 1]} : vector<2x512xf32> to vector<1x512xf32>
    %103 = vector.extract_strided_slice %101 {offsets = [1, 0], sizes = [1, 512], strides = [1, 1]} : vector<2x512xf32> to vector<1x512xf32>
    %104 = arith.mulf %102, %102 : vector<1x512xf32>
    %105 = arith.subf %103, %104 : vector<1x512xf32>
    %cst_63 = arith.constant 9.99999974E-6 : f32
    %106 = vector.broadcast %cst_63 : f32 to vector<1x512xf32>
    %107 = arith.addf %105, %106 : vector<1x512xf32>
    %108 = math.rsqrt %107 : vector<1x512xf32>
    %c0_64 = arith.constant 0 : index
    %c0_65 = arith.constant 0 : index
    %109 = vector.load %arg23[%c0_64, %c0_65] : memref<1x512xf32, #tpu.memory_space<vmem>>, vector<1x512xf32>
    %110 = arith.mulf %108, %109 : vector<1x512xf32>
    %111 = vector.broadcast %102 : vector<1x512xf32> to vector<32x512xf32>
    %112 = arith.subf %91, %111 : vector<32x512xf32>
    %113 = vector.broadcast %110 : vector<1x512xf32> to vector<32x512xf32>
    %114 = arith.mulf %112, %113 : vector<32x512xf32>
    %c0_66 = arith.constant 0 : index
    %c0_67 = arith.constant 0 : index
    %115 = vector.load %arg24[%c0_66, %c0_67] : memref<1x512xf32, #tpu.memory_space<vmem>>, vector<1x512xf32>
    %116 = vector.broadcast %115 : vector<1x512xf32> to vector<32x512xf32>
    %117 = arith.addf %114, %116 : vector<32x512xf32>
    %c0_68 = arith.constant 0 : index
    %c0_69 = arith.constant 0 : index
    %118 = vector.load %arg17[%c0_68, %c0_69] : memref<512x256xf32, #tpu.memory_space<vmem>>, vector<512x256xf32>
    %cst_70 = arith.constant dense<0.000000e+00> : vector<32x256xf32>
    %119 = tpu.matmul %117, %118, %cst_70 {dimension_numbers = #tpu.dot_dimension_numbers<[1], [0], [0], [1], [0, 0, 1, 1], [], []>} : vector<32x512xf32>, vector<512x256xf32>, vector<32x256xf32> -> vector<32x256xf32>
    %c0_71 = arith.constant 0 : index
    %c0_72 = arith.constant 0 : index
    %120 = vector.load %arg18[%c0_71, %c0_72] : memref<1x256xf32, #tpu.memory_space<vmem>>, vector<1x256xf32>
    %121 = vector.broadcast %120 : vector<1x256xf32> to vector<32x256xf32>
    %122 = arith.addf %119, %121 : vector<32x256xf32>
    %123 = math.tanh %122 : vector<32x256xf32>
    %124 = arith.subf %122, %123 : vector<32x256xf32>
    %c0_73 = arith.constant 0 : index
    %c0_74 = arith.constant 0 : index
    %125 = vector.load %arg1[%c0_73, %c0_74] : memref<2x128xf32, #tpu.memory_space<vmem>>, vector<2x128xf32>
    %c0_75 = arith.constant 0 : index
    %c0_76 = arith.constant 0 : index
    %126 = vector.load %arg28[%c0_75, %c0_76] : memref<128x128xf32, #tpu.memory_space<vmem>>, vector<128x128xf32>
    %cst_77 = arith.constant dense<0.000000e+00> : vector<2x128xf32>
    %127 = tpu.matmul %125, %126, %cst_77 {dimension_numbers = #tpu.dot_dimension_numbers<[1], [0], [0], [1], [0, 0, 1, 1], [], []>} : vector<2x128xf32>, vector<128x128xf32>, vector<2x128xf32> -> vector<2x128xf32>
    %c0_78 = arith.constant 0 : index
    %c0_79 = arith.constant 0 : index
    %128 = vector.load %arg29[%c0_78, %c0_79] : memref<1x128xf32, #tpu.memory_space<vmem>>, vector<1x128xf32>
    %129 = vector.broadcast %128 : vector<1x128xf32> to vector<2x128xf32>
    %130 = arith.addf %127, %129 : vector<2x128xf32>
    %cst_80 = arith.constant 0.000000e+00 : f32
    %131 = vector.broadcast %cst_80 : f32 to vector<2x128xf32>
    %132 = arith.maximumf %130, %131 : vector<2x128xf32>
    %cst_81 = arith.constant dense<0.000000e+00> : vector<128xf32>
    %133 = vector.multi_reduction <add>, %132, %cst_81 [0] : vector<2x128xf32> to vector<128xf32>
    %134 = vector.shape_cast %133 : vector<128xf32> to vector<1x128xf32>
    %135 = arith.mulf %132, %132 : vector<2x128xf32>
    %cst_82 = arith.constant dense<0.000000e+00> : vector<128xf32>
    %136 = vector.multi_reduction <add>, %135, %cst_82 [0] : vector<2x128xf32> to vector<128xf32>
    %137 = vector.shape_cast %136 : vector<128xf32> to vector<1x128xf32>
    %138 = tpu.concatenate %134, %137 in 0 : vector<1x128xf32>, vector<1x128xf32> -> vector<2x128xf32>
    %cst_83 = arith.constant dense<0.000000e+00> : vector<2xf32>
    %139 = vector.multi_reduction <add>, %138, %cst_83 [1] : vector<2x128xf32> to vector<2xf32>
    %140 = vector.shape_cast %139 : vector<2xf32> to vector<2x1xf32>
    %cst_84 = arith.constant 3.906250e-03 : f32
    %141 = vector.broadcast %cst_84 : f32 to vector<2x1xf32>
    %142 = arith.mulf %140, %141 : vector<2x1xf32>
    %143 = vector.extract_strided_slice %142 {offsets = [0, 0], sizes = [1, 1], strides = [1, 1]} : vector<2x1xf32> to vector<1x1xf32>
    %144 = vector.extract_strided_slice %142 {offsets = [1, 0], sizes = [1, 1], strides = [1, 1]} : vector<2x1xf32> to vector<1x1xf32>
    %145 = arith.mulf %143, %143 : vector<1x1xf32>
    %146 = arith.subf %144, %145 : vector<1x1xf32>
    %cst_85 = arith.constant 9.99999974E-6 : f32
    %147 = vector.broadcast %cst_85 : f32 to vector<1x1xf32>
    %148 = arith.addf %146, %147 : vector<1x1xf32>
    %149 = math.rsqrt %148 : vector<1x1xf32>
    %c0_86 = arith.constant 0 : index
    %c0_87 = arith.constant 0 : index
    %150 = vector.load %arg36[%c0_86, %c0_87] : memref<1x1xf32, #tpu.memory_space<vmem>>, vector<1x1xf32>
    %151 = arith.mulf %149, %150 : vector<1x1xf32>
    %152 = vector.broadcast %143 : vector<1x1xf32> to vector<2x128xf32>
    %153 = arith.subf %132, %152 : vector<2x128xf32>
    %154 = vector.broadcast %151 : vector<1x1xf32> to vector<2x128xf32>
    %155 = arith.mulf %153, %154 : vector<2x128xf32>
    %c0_88 = arith.constant 0 : index
    %c0_89 = arith.constant 0 : index
    %156 = vector.load %arg37[%c0_88, %c0_89] : memref<1x1xf32, #tpu.memory_space<vmem>>, vector<1x1xf32>
    %157 = vector.broadcast %156 : vector<1x1xf32> to vector<2x128xf32>
    %158 = arith.addf %155, %157 : vector<2x128xf32>
    %c0_90 = arith.constant 0 : index
    %c0_91 = arith.constant 0 : index
    %159 = vector.load %arg30[%c0_90, %c0_91] : memref<128x256xf32, #tpu.memory_space<vmem>>, vector<128x256xf32>
    %cst_92 = arith.constant dense<0.000000e+00> : vector<2x256xf32>
    %160 = tpu.matmul %158, %159, %cst_92 {dimension_numbers = #tpu.dot_dimension_numbers<[1], [0], [0], [1], [0, 0, 1, 1], [], []>} : vector<2x128xf32>, vector<128x256xf32>, vector<2x256xf32> -> vector<2x256xf32>
    %c0_93 = arith.constant 0 : index
    %c0_94 = arith.constant 0 : index
    %161 = vector.load %arg31[%c0_93, %c0_94] : memref<1x256xf32, #tpu.memory_space<vmem>>, vector<1x256xf32>
    %162 = vector.broadcast %161 : vector<1x256xf32> to vector<2x256xf32>
    %163 = arith.addf %160, %162 : vector<2x256xf32>
    %cst_95 = arith.constant 0.000000e+00 : f32
    %164 = vector.broadcast %cst_95 : f32 to vector<2x256xf32>
    %165 = arith.maximumf %163, %164 : vector<2x256xf32>
    %cst_96 = arith.constant dense<0.000000e+00> : vector<256xf32>
    %166 = vector.multi_reduction <add>, %165, %cst_96 [0] : vector<2x256xf32> to vector<256xf32>
    %167 = vector.shape_cast %166 : vector<256xf32> to vector<1x256xf32>
    %168 = arith.mulf %165, %165 : vector<2x256xf32>
    %cst_97 = arith.constant dense<0.000000e+00> : vector<256xf32>
    %169 = vector.multi_reduction <add>, %168, %cst_97 [0] : vector<2x256xf32> to vector<256xf32>
    %170 = vector.shape_cast %169 : vector<256xf32> to vector<1x256xf32>
    %171 = tpu.concatenate %167, %170 in 0 : vector<1x256xf32>, vector<1x256xf32> -> vector<2x256xf32>
    %cst_98 = arith.constant dense<0.000000e+00> : vector<2xf32>
    %172 = vector.multi_reduction <add>, %171, %cst_98 [1] : vector<2x256xf32> to vector<2xf32>
    %173 = vector.shape_cast %172 : vector<2xf32> to vector<2x1xf32>
    %cst_99 = arith.constant 0.001953125 : f32
    %174 = vector.broadcast %cst_99 : f32 to vector<2x1xf32>
    %175 = arith.mulf %173, %174 : vector<2x1xf32>
    %176 = vector.extract_strided_slice %175 {offsets = [0, 0], sizes = [1, 1], strides = [1, 1]} : vector<2x1xf32> to vector<1x1xf32>
    %177 = vector.extract_strided_slice %175 {offsets = [1, 0], sizes = [1, 1], strides = [1, 1]} : vector<2x1xf32> to vector<1x1xf32>
    %178 = arith.mulf %176, %176 : vector<1x1xf32>
    %179 = arith.subf %177, %178 : vector<1x1xf32>
    %cst_100 = arith.constant 9.99999974E-6 : f32
    %180 = vector.broadcast %cst_100 : f32 to vector<1x1xf32>
    %181 = arith.addf %179, %180 : vector<1x1xf32>
    %182 = math.rsqrt %181 : vector<1x1xf32>
    %c0_101 = arith.constant 0 : index
    %c0_102 = arith.constant 0 : index
    %183 = vector.load %arg38[%c0_101, %c0_102] : memref<1x1xf32, #tpu.memory_space<vmem>>, vector<1x1xf32>
    %184 = arith.mulf %182, %183 : vector<1x1xf32>
    %185 = vector.broadcast %176 : vector<1x1xf32> to vector<2x256xf32>
    %186 = arith.subf %165, %185 : vector<2x256xf32>
    %187 = vector.broadcast %184 : vector<1x1xf32> to vector<2x256xf32>
    %188 = arith.mulf %186, %187 : vector<2x256xf32>
    %c0_103 = arith.constant 0 : index
    %c0_104 = arith.constant 0 : index
    %189 = vector.load %arg39[%c0_103, %c0_104] : memref<1x1xf32, #tpu.memory_space<vmem>>, vector<1x1xf32>
    %190 = vector.broadcast %189 : vector<1x1xf32> to vector<2x256xf32>
    %191 = arith.addf %188, %190 : vector<2x256xf32>
    %c0_105 = arith.constant 0 : index
    %c0_106 = arith.constant 0 : index
    %192 = vector.load %arg32[%c0_105, %c0_106] : memref<256x128xf32, #tpu.memory_space<vmem>>, vector<256x128xf32>
    %cst_107 = arith.constant dense<0.000000e+00> : vector<2x128xf32>
    %193 = tpu.matmul %191, %192, %cst_107 {dimension_numbers = #tpu.dot_dimension_numbers<[1], [0], [0], [1], [0, 0, 1, 1], [], []>} : vector<2x256xf32>, vector<256x128xf32>, vector<2x128xf32> -> vector<2x128xf32>
    %c0_108 = arith.constant 0 : index
    %c0_109 = arith.constant 0 : index
    %194 = vector.load %arg33[%c0_108, %c0_109] : memref<1x128xf32, #tpu.memory_space<vmem>>, vector<1x128xf32>
    %195 = vector.broadcast %194 : vector<1x128xf32> to vector<2x128xf32>
    %196 = arith.addf %193, %195 : vector<2x128xf32>
    %cst_110 = arith.constant 0.000000e+00 : f32
    %197 = vector.broadcast %cst_110 : f32 to vector<2x128xf32>
    %198 = arith.maximumf %196, %197 : vector<2x128xf32>
    %cst_111 = arith.constant dense<0.000000e+00> : vector<128xf32>
    %199 = vector.multi_reduction <add>, %198, %cst_111 [0] : vector<2x128xf32> to vector<128xf32>
    %200 = vector.shape_cast %199 : vector<128xf32> to vector<1x128xf32>
    %201 = arith.mulf %198, %198 : vector<2x128xf32>
    %cst_112 = arith.constant dense<0.000000e+00> : vector<128xf32>
    %202 = vector.multi_reduction <add>, %201, %cst_112 [0] : vector<2x128xf32> to vector<128xf32>
    %203 = vector.shape_cast %202 : vector<128xf32> to vector<1x128xf32>
    %204 = tpu.concatenate %200, %203 in 0 : vector<1x128xf32>, vector<1x128xf32> -> vector<2x128xf32>
    %cst_113 = arith.constant dense<0.000000e+00> : vector<2xf32>
    %205 = vector.multi_reduction <add>, %204, %cst_113 [1] : vector<2x128xf32> to vector<2xf32>
    %206 = vector.shape_cast %205 : vector<2xf32> to vector<2x1xf32>
    %cst_114 = arith.constant 3.906250e-03 : f32
    %207 = vector.broadcast %cst_114 : f32 to vector<2x1xf32>
    %208 = arith.mulf %206, %207 : vector<2x1xf32>
    %209 = vector.extract_strided_slice %208 {offsets = [0, 0], sizes = [1, 1], strides = [1, 1]} : vector<2x1xf32> to vector<1x1xf32>
    %210 = vector.extract_strided_slice %208 {offsets = [1, 0], sizes = [1, 1], strides = [1, 1]} : vector<2x1xf32> to vector<1x1xf32>
    %211 = arith.mulf %209, %209 : vector<1x1xf32>
    %212 = arith.subf %210, %211 : vector<1x1xf32>
    %cst_115 = arith.constant 9.99999974E-6 : f32
    %213 = vector.broadcast %cst_115 : f32 to vector<1x1xf32>
    %214 = arith.addf %212, %213 : vector<1x1xf32>
    %215 = math.rsqrt %214 : vector<1x1xf32>
    %c0_116 = arith.constant 0 : index
    %c0_117 = arith.constant 0 : index
    %216 = vector.load %arg40[%c0_116, %c0_117] : memref<1x1xf32, #tpu.memory_space<vmem>>, vector<1x1xf32>
    %217 = arith.mulf %215, %216 : vector<1x1xf32>
    %218 = vector.broadcast %209 : vector<1x1xf32> to vector<2x128xf32>
    %219 = arith.subf %198, %218 : vector<2x128xf32>
    %220 = vector.broadcast %217 : vector<1x1xf32> to vector<2x128xf32>
    %221 = arith.mulf %219, %220 : vector<2x128xf32>
    %c0_118 = arith.constant 0 : index
    %c0_119 = arith.constant 0 : index
    %222 = vector.load %arg41[%c0_118, %c0_119] : memref<1x1xf32, #tpu.memory_space<vmem>>, vector<1x1xf32>
    %223 = vector.broadcast %222 : vector<1x1xf32> to vector<2x128xf32>
    %224 = arith.addf %221, %223 : vector<2x128xf32>
    %c0_120 = arith.constant 0 : index
    %c0_121 = arith.constant 0 : index
    %225 = vector.load %arg34[%c0_120, %c0_121] : memref<128x64xf32, #tpu.memory_space<vmem>>, vector<128x64xf32>
    %cst_122 = arith.constant dense<0.000000e+00> : vector<2x64xf32>
    %226 = tpu.matmul %224, %225, %cst_122 {dimension_numbers = #tpu.dot_dimension_numbers<[1], [0], [0], [1], [0, 0, 1, 1], [], []>} : vector<2x128xf32>, vector<128x64xf32>, vector<2x64xf32> -> vector<2x64xf32>
    %c0_123 = arith.constant 0 : index
    %c0_124 = arith.constant 0 : index
    %227 = vector.load %arg35[%c0_123, %c0_124] : memref<1x64xf32, #tpu.memory_space<vmem>>, vector<1x64xf32>
    %228 = vector.broadcast %227 : vector<1x64xf32> to vector<2x64xf32>
    %229 = arith.addf %226, %228 : vector<2x64xf32>
    %cst_125 = arith.constant dense<0.000000e+00> : vector<32x64xf32>
    %230 = tpu.matmul %15, %229, %cst_125 {dimension_numbers = #tpu.dot_dimension_numbers<[1], [0], [0], [1], [0, 0, 1, 1], [], []>} : vector<32x2xf32>, vector<2x64xf32>, vector<32x64xf32> -> vector<32x64xf32>
    %c0_126 = arith.constant 0 : index
    %c0_127 = arith.constant 0 : index
    %231 = vector.load %arg5[%c0_126, %c0_127] : memref<32x64xf32, #tpu.memory_space<vmem>>, vector<32x64xf32>
    %232 = arith.mulf %230, %231 : vector<32x64xf32>
    %c0_128 = arith.constant 0 : index
    %c0_129 = arith.constant 0 : index
    %233 = vector.load %arg42[%c0_128, %c0_129] : memref<64x256xf32, #tpu.memory_space<vmem>>, vector<64x256xf32>
    %cst_130 = arith.constant dense<0.000000e+00> : vector<32x256xf32>
    %234 = tpu.matmul %232, %233, %cst_130 {dimension_numbers = #tpu.dot_dimension_numbers<[1], [0], [0], [1], [0, 0, 1, 1], [], []>} : vector<32x64xf32>, vector<64x256xf32>, vector<32x256xf32> -> vector<32x256xf32>
    %235 = arith.mulf %124, %234 : vector<32x256xf32>
    %c0_131 = arith.constant 0 : index
    %c0_132 = arith.constant 0 : index
    %236 = vector.load %arg43[%c0_131, %c0_132] : memref<256x128xf32, #tpu.memory_space<vmem>>, vector<256x128xf32>
    %cst_133 = arith.constant dense<0.000000e+00> : vector<32x128xf32>
    %237 = tpu.matmul %235, %236, %cst_133 {dimension_numbers = #tpu.dot_dimension_numbers<[1], [0], [0], [1], [0, 0, 1, 1], [], []>} : vector<32x256xf32>, vector<256x128xf32>, vector<32x128xf32> -> vector<32x128xf32>
    %c0_134 = arith.constant 0 : index
    %c0_135 = arith.constant 0 : index
    %238 = vector.load %arg6[%c0_134, %c0_135] : memref<32x128xf32, #tpu.memory_space<vmem>>, vector<32x128xf32>
    %239 = arith.mulf %237, %238 : vector<32x128xf32>
    %c0_136 = arith.constant 0 : index
    %c0_137 = arith.constant 0 : index
    %240 = vector.load %arg3[%c0_136, %c0_137] : memref<2x32xf32, #tpu.memory_space<vmem>>, vector<2x32xf32>
    %cst_138 = arith.constant dense<0.000000e+00> : vector<2x128xf32>
    %241 = tpu.matmul %240, %239, %cst_138 {dimension_numbers = #tpu.dot_dimension_numbers<[1], [0], [0], [1], [0, 0, 1, 1], [], []>} : vector<2x32xf32>, vector<32x128xf32>, vector<2x128xf32> -> vector<2x128xf32>
    %c0_139 = arith.constant 0 : index
    %c0_140 = arith.constant 0 : index
    %242 = vector.load %arg44[%c0_139, %c0_140] : memref<2x128xf32, #tpu.memory_space<vmem>>, vector<2x128xf32>
    tpu.vector_store %arg44[%c0_139, %c0_140], %241 {strides = array<i32>} : memref<2x128xf32, #tpu.memory_space<vmem>>, vector<2x128xf32>,
    return
  }
}

</mosaic_0001>

<llo_original>
// kernel: branch_net_pallas.1
$region0: #{branch_net_pallas.1}
  #allocation0 [shape = 'u32[]', space=smem, size = 0x4, offset = 0x4, fixed_abs, tag = 'smem constant byte address 0x4 - core index']
  #allocation1 [shape = 'u32[72,128]{1,0:T(1,128)}', space=vmem, size = 0x9000, scoped, tag = 'internal scratch']
  #allocation2 [shape = 'f32[1,1]{1,0:T(1,128)S(1)}', space=vmem, size = 0x200, scoped, tag = 'scoped memory for branch_net_pallas.1']
  #allocation3 [shape = 'f32[1,1]{1,0:T(1,128)S(1)}', space=vmem, size = 0x200, scoped, tag = 'scoped memory for branch_net_pallas.1']
  #allocation4 [shape = 'f32[1,1]{1,0:T(1,128)S(1)}', space=vmem, size = 0x200, scoped, tag = 'scoped memory for branch_net_pallas.1']
  #allocation5 [shape = 'f32[1,1]{1,0:T(1,128)S(1)}', space=vmem, size = 0x200, scoped, tag = 'scoped memory for branch_net_pallas.1']
  #allocation6 [shape = 'f32[1,1]{1,0:T(1,128)S(1)}', space=vmem, size = 0x200, scoped, tag = 'scoped memory for branch_net_pallas.1']
  #allocation7 [shape = 'f32[1,1]{1,0:T(1,128)S(1)}', space=vmem, size = 0x200, scoped, tag = 'scoped memory for branch_net_pallas.1']
  %s0 = inlined_call_operand.smem [shape: u32[45], index: -1, kind: input, shape index: {}]
  %s1 = sld [smem:[%s0]]
  %s2 = scalar_lea.smem %s0, 1
  %s3 = sld [smem:[%s2]]
  %s4 = scalar_lea.smem %s0, 2
  %s5 = sld [smem:[%s4]]
  %s6 = scalar_lea.smem %s0, 3
  %s7 = sld [smem:[%s6]]
  %s8 = scalar_lea.smem %s0, 4
  %s9 = sld [smem:[%s8]]
  %s10 = scalar_lea.smem %s0, 5
  %s11 = sld [smem:[%s10]]
  %s12 = scalar_lea.smem %s0, 6
  %s13 = sld [smem:[%s12]]
  %s14 = scalar_lea.smem %s0, 7
  %s15 = sld [smem:[%s14]]
  %s16 = scalar_lea.smem %s0, 8
  %s17 = sld [smem:[%s16]]
  %s18 = scalar_lea.smem %s0, 9
  %s19 = sld [smem:[%s18]]
  %s20 = scalar_lea.smem %s0, 10
  %s21 = sld [smem:[%s20]]
  %s22 = scalar_lea.smem %s0, 11
  %s23 = sld [smem:[%s22]]
  %s24 = scalar_lea.smem %s0, 12
  %s25 = sld [smem:[%s24]]
  %s26 = scalar_lea.smem %s0, 13
  %s27 = sld [smem:[%s26]]
  %s28 = scalar_lea.smem %s0, 14
  %s29 = sld [smem:[%s28]]
  %s30 = scalar_lea.smem %s0, 15
  %s31 = sld [smem:[%s30]]
  %s32 = scalar_lea.smem %s0, 16
  %s33 = sld [smem:[%s32]]
  %s34 = scalar_lea.smem %s0, 17
  %s35 = sld [smem:[%s34]]
  %s36 = scalar_lea.smem %s0, 18
  %s37 = sld [smem:[%s36]]
  %s38 = scalar_lea.smem %s0, 19
  %s39 = sld [smem:[%s38]]
  %s40 = scalar_lea.smem %s0, 20
  %s41 = sld [smem:[%s40]]
  %s42 = scalar_lea.smem %s0, 21
  %s43 = sld [smem:[%s42]]
  %s44 = scalar_lea.smem %s0, 22
  %s45 = sld [smem:[%s44]]
  %s46 = scalar_lea.smem %s0, 23
  %s47 = sld [smem:[%s46]]
  %s48 = scalar_lea.smem %s0, 24
  %s49 = sld [smem:[%s48]]
  %s50 = scalar_lea.smem %s0, 25
  %s51 = sld [smem:[%s50]]
  %s52 = scalar_lea.smem %s0, 26
  %s53 = sld [smem:[%s52]]
  %s54 = scalar_lea.smem %s0, 27
  %s55 = sld [smem:[%s54]]
  %s56 = scalar_lea.smem %s0, 28
  %s57 = sld [smem:[%s56]]
  %s58 = scalar_lea.smem %s0, 29
  %s59 = sld [smem:[%s58]]
  %s60 = scalar_lea.smem %s0, 30
  %s61 = sld [smem:[%s60]]
  %s62 = scalar_lea.smem %s0, 31
  %s63 = sld [smem:[%s62]]
  %s64 = scalar_lea.smem %s0, 32
  %s65 = sld [smem:[%s64]]
  %s66 = scalar_lea.smem %s0, 33
  %s67 = sld [smem:[%s66]]
  %s68 = scalar_lea.smem %s0, 34
  %s69 = sld [smem:[%s68]]
  %s70 = scalar_lea.smem %s0, 35
  %s71 = sld [smem:[%s70]]
  %s72 = scalar_lea.smem %s0, 36
  %s73 = sld [smem:[%s72]]
  %s74 = scalar_lea.smem %s0, 37
  %s75 = sld [smem:[%s74]]
  %s76 = scalar_lea.smem %s0, 38
  %s77 = sld [smem:[%s76]]
  %s78 = scalar_lea.smem %s0, 39
  %s79 = sld [smem:[%s78]]
  %s80 = scalar_lea.smem %s0, 40
  %s81 = sld [smem:[%s80]]
  %s82 = scalar_lea.smem %s0, 41
  %s83 = sld [smem:[%s82]]
  %s84 = scalar_lea.smem %s0, 42
  %s85 = sld [smem:[%s84]]
  %s86 = scalar_lea.smem %s0, 43
  %s87 = sld [smem:[%s86]]
  %s88 = scalar_lea.smem %s0, 44
  %s89 = sld [smem:[%s88]]
  %s90 = sld [smem:[#allocation0]]
  $region290: #{branch_net_pallas.1} parent=0
    _
  %s92 = ssub.s32 1, %s90
  %s93 = scalar_select 0, %s92, %s90
  %v94 = vstv %s73
  %95 = vst [vmem:[#allocation2] sm:$0x1] %v94
  %v96 = vstv %s75
  %97 = vst [vmem:[#allocation3] sm:$0x1] %v96
  %v98 = vstv %s77
  %99 = vst [vmem:[#allocation4] sm:$0x1] %v98
  %v100 = vstv %s79
  %101 = vst [vmem:[#allocation5] sm:$0x1] %v100
  %v102 = vstv %s81
  %103 = vst [vmem:[#allocation6] sm:$0x1] %v102
  %v104 = vstv %s83
  %105 = vst [vmem:[#allocation7] sm:$0x1] %v104
  $region1: #{branch_net_pallas.1} parent=0
    #allocation8 [shape = 'u8[65536]{0}', space=vmem, size = 0x10000, scoped, tag = 'input window, operand 4, single buffered']
    #allocation9 [shape = 's32[1]{0}', space=sflag, size = 0x4, scoped, tag = 'scoped memory for branch_net_pallas.1']
    #allocation10 [shape = 's32[1]{0}', space=sflag, size = 0x4, scoped, tag = 'scoped memory for branch_net_pallas.1']
    #allocation11 [shape = 'u8[16384]{0}', space=vmem, size = 0x4000, scoped, tag = 'input window, operand 5, single buffered']
    #allocation12 [shape = 's32[1]{0}', space=sflag, size = 0x4, scoped, tag = 'scoped memory for branch_net_pallas.1']
    #allocation13 [shape = 'u8[16384]{0}', space=vmem, size = 0x4000, scoped, tag = 'input window, operand 6, single buffered']
    #allocation14 [shape = 'u8[512]{0}', space=vmem, size = 0x400, scoped, tag = 'input window, operand 8, single buffered']
    #allocation15 [shape = 's32[1]{0}', space=sflag, size = 0x4, scoped, tag = 'scoped memory for branch_net_pallas.1']
    #allocation16 [shape = 'u8[512]{0}', space=vmem, size = 0x400, scoped, tag = 'input window, operand 12, single buffered']
    #allocation17 [shape = 'u8[65536]{0}', space=vmem, size = 0x10000, scoped, tag = 'input window, operand 13, single buffered']
    #allocation18 [shape = 's32[1]{0}', space=sflag, size = 0x4, scoped, tag = 'scoped memory for branch_net_pallas.1']
    #allocation19 [shape = 'u8[1024]{0}', space=vmem, size = 0x400, scoped, tag = 'input window, operand 14, single buffered']
    #allocation20 [shape = 'u8[524288]{0}', space=vmem, size = 0x80000, scoped, tag = 'input window, operand 15, single buffered']
    #allocation21 [shape = 's32[1]{0}', space=sflag, size = 0x4, scoped, tag = 'scoped memory for branch_net_pallas.1']
    #allocation22 [shape = 'u8[524288]{0}', space=vmem, size = 0x80000, scoped, tag = 'input window, operand 17, single buffered']
    #allocation23 [shape = 'u8[1024]{0}', space=vmem, size = 0x400, scoped, tag = 'input window, operand 18, single buffered']
    #allocation24 [shape = 's32[1]{0}', space=sflag, size = 0x4, scoped, tag = 'scoped memory for branch_net_pallas.1']
    #allocation25 [shape = 'u8[512]{0}', space=vmem, size = 0x400, scoped, tag = 'input window, operand 19, single buffered']
    #allocation26 [shape = 'u8[512]{0}', space=vmem, size = 0x400, scoped, tag = 'input window, operand 20, single buffered']
    #allocation27 [shape = 's32[1]{0}', space=sflag, size = 0x4, scoped, tag = 'scoped memory for branch_net_pallas.1']
    #allocation28 [shape = 'u8[1024]{0}', space=vmem, size = 0x400, scoped, tag = 'input window, operand 21, single buffered']
    #allocation29 [shape = 'u8[1024]{0}', space=vmem, size = 0x400, scoped, tag = 'input window, operand 22, single buffered']
    #allocation30 [shape = 's32[1]{0}', space=sflag, size = 0x4, scoped, tag = 'scoped memory for branch_net_pallas.1']
    #allocation31 [shape = 'u8[2048]{0}', space=vmem, size = 0x800, scoped, tag = 'input window, operand 23, single buffered']
    #allocation32 [shape = 'u8[2048]{0}', space=vmem, size = 0x800, scoped, tag = 'input window, operand 24, single buffered']
    #allocation33 [shape = 's32[1]{0}', space=sflag, size = 0x4, scoped, tag = 'scoped memory for branch_net_pallas.1']
    #allocation34 [shape = 'u8[262144]{0}', space=vmem, size = 0x40000, scoped, tag = 'input window, operand 26, single buffered']
    #allocation35 [shape = 'u8[1048576]{0}', space=vmem, size = 0x100000, scoped, tag = 'input window, operand 27, single buffered']
    #allocation36 [shape = 's32[1]{0}', space=sflag, size = 0x4, scoped, tag = 'scoped memory for branch_net_pallas.1']
    #allocation37 [shape = 'u8[65536]{0}', space=vmem, size = 0x10000, scoped, tag = 'input window, operand 28, single buffered']
    #allocation38 [shape = 'u8[512]{0}', space=vmem, size = 0x400, scoped, tag = 'input window, operand 29, single buffered']
    #allocation39 [shape = 's32[1]{0}', space=sflag, size = 0x4, scoped, tag = 'scoped memory for branch_net_pallas.1']
    #allocation40 [shape = 'u8[1024]{0}', space=vmem, size = 0x400, scoped, tag = 'input window, operand 31, single buffered']
    #allocation41 [shape = 'u8[131072]{0}', space=vmem, size = 0x20000, scoped, tag = 'input window, operand 32, single buffered']
    #allocation42 [shape = 's32[1]{0}', space=sflag, size = 0x4, scoped, tag = 'scoped memory for branch_net_pallas.1']
    #allocation43 [shape = 'u8[512]{0}', space=vmem, size = 0x400, scoped, tag = 'input window, operand 33, single buffered']
    #allocation44 [shape = 'u8[512]{0}', space=vmem, size = 0x400, scoped, tag = 'input window, operand 35, single buffered']
    #allocation45 [shape = 's32[1]{0}', space=sflag, size = 0x4, scoped, tag = 'scoped memory for branch_net_pallas.1']
    #allocation46 [shape = 'u8[65536]{0}', space=vmem, size = 0x10000, scoped, tag = 'input window, operand 42, single buffered']
    #allocation47 [shape = 'u8[131072]{0}', space=vmem, size = 0x20000, scoped, tag = 'input window, operand 43, single buffered']
    #allocation48 [shape = 's32[1]{0}', space=sflag, size = 0x4, scoped, tag = 'scoped memory for branch_net_pallas.1']
    #allocation49 [shape = 'u8[1024]{0}', space=vmem, size = 0x400, scoped, tag = 'output window, operand 0, single buffered']
    %106 = vsyncpa [#allocation9], 0
    %107 = vsyncpa [#allocation12], 0
    %108 = vsyncpa [#allocation15], 0
    %109 = vsyncpa [#allocation18], 0
    %110 = vsyncpa [#allocation21], 0
    %111 = vsyncpa [#allocation24], 0
    %112 = vsyncpa [#allocation27], 0
    %113 = vsyncpa [#allocation30], 0
    %114 = vsyncpa [#allocation33], 0
    %115 = vsyncpa [#allocation36], 0
    %116 = vsyncpa [#allocation39], 0
    %117 = vsyncpa [#allocation42], 0
    %118 = vsyncpa [#allocation45], 0
    %119 = vsyncpa [#allocation48], 0
    %120 = vsyncpa [#allocation10], 0
    // Predicated region
    $region2: #{branch_net_pallas.1} parent=1 // pred_check
      _
    $region3: #{branch_net_pallas.1} parent=1 // pred_check_branch
      %122 = sbr.rel (0) target = $region5
    $region4: #{branch_net_pallas.1} parent=1 // pred_region
      _
    $region5: #{branch_net_pallas.1} parent=1 // pred_fallthru
      _
    // Predicated region
    $region6: #{branch_net_pallas.1} parent=1 // pred_check
      _
    $region7: #{branch_net_pallas.1} parent=1 // pred_check_branch
      %124 = sbr.rel (0) target = $region9
    $region8: #{branch_net_pallas.1} parent=1 // pred_region
      _
    $region9: #{branch_net_pallas.1} parent=1 // pred_fallthru
      _
    // Predicated region
    $region10: #{branch_net_pallas.1} parent=1 // pred_check
      _
    $region11: #{branch_net_pallas.1} parent=1 // pred_check_branch
      %126 = sbr.rel (0) target = $region13
    $region12: #{branch_net_pallas.1} parent=1 // pred_region
      _
    $region13: #{branch_net_pallas.1} parent=1 // pred_fallthru
      _
    // Predicated region
    $region14: #{branch_net_pallas.1} parent=1 // pred_check
      _
    $region15: #{branch_net_pallas.1} parent=1 // pred_check_branch
      %128 = sbr.rel (0) target = $region17
    $region16: #{branch_net_pallas.1} parent=1 // pred_region
      _
    $region17: #{branch_net_pallas.1} parent=1 // pred_fallthru
      _
    // Predicated region
    $region18: #{branch_net_pallas.1} parent=1 // pred_check
      _
    $region19: #{branch_net_pallas.1} parent=1 // pred_check_branch
      %130 = sbr.rel (0) target = $region21
    $region20: #{branch_net_pallas.1} parent=1 // pred_region
      %132 = vsyncadd [#allocation9], 0
      %s133 = sshll.u32 %s9, 4
      %s134 = int_to_ptr.hbm [resolvable:$true] %s133
      %s135 = sshll.u32 [#allocation8], 4
      %s136 = int_to_ptr.vmem [resolvable:$true] %s135
      %141 = dma.hbm_to_vmem [thread:$0]  %s134, 2048, %s136, [#allocation9], 512, 512, 32
    $region21: #{branch_net_pallas.1} parent=1 // pred_fallthru
      _
    // Predicated region
    $region22: #{branch_net_pallas.1} parent=1 // pred_check
      _
    $region23: #{branch_net_pallas.1} parent=1 // pred_check_branch
      %143 = sbr.rel (0) target = $region25
    $region24: #{branch_net_pallas.1} parent=1 // pred_region
      %145 = vsyncadd [#allocation12], 0
      %s146 = sshll.u32 %s11, 4
      %s147 = int_to_ptr.hbm [resolvable:$true] %s146
      %s148 = sshll.u32 [#allocation11], 4
      %s149 = int_to_ptr.vmem [resolvable:$true] %s148
      %154 = dma.hbm_to_vmem [thread:$0]  %s147, 512, %s149, [#allocation12], 128, 128, 8
    $region25: #{branch_net_pallas.1} parent=1 // pred_fallthru
      _
    // Predicated region
    $region26: #{branch_net_pallas.1} parent=1 // pred_check
      _
    $region27: #{branch_net_pallas.1} parent=1 // pred_check_branch
      %156 = sbr.rel (0) target = $region29
    $region28: #{branch_net_pallas.1} parent=1 // pred_region
      %158 = vsyncadd [#allocation12], 0
      %s159 = sshll.u32 %s13, 4
      %s160 = int_to_ptr.hbm [resolvable:$true] %s159
      %s161 = sshll.u32 [#allocation13], 4
      %s162 = int_to_ptr.vmem [resolvable:$true] %s161
      %167 = dma.hbm_to_vmem [thread:$0]  %s160, 512, %s162, [#allocation12], 128, 128, 8
    $region29: #{branch_net_pallas.1} parent=1 // pred_fallthru
      _
    // Predicated region
    $region30: #{branch_net_pallas.1} parent=1 // pred_check
      _
    $region31: #{branch_net_pallas.1} parent=1 // pred_check_branch
      %169 = sbr.rel (0) target = $region33
    $region32: #{branch_net_pallas.1} parent=1 // pred_region
      _
    $region33: #{branch_net_pallas.1} parent=1 // pred_fallthru
      _
    // Predicated region
    $region34: #{branch_net_pallas.1} parent=1 // pred_check
      _
    $region35: #{branch_net_pallas.1} parent=1 // pred_check_branch
      %171 = sbr.rel (0) target = $region37
    $region36: #{branch_net_pallas.1} parent=1 // pred_region
      %173 = vsyncadd [#allocation15], 0
      %s175 = sshll.u32 %s17, 4
      %s176 = int_to_ptr.hbm [resolvable:$true] %s175
      %s177 = sshll.u32 [#allocation14], 4
      %s178 = int_to_ptr.vmem [resolvable:$true] %s177
      %180 = dma.hbm_to_vmem [thread:$0]  %s176, 16, %s178, [#allocation15]
    $region37: #{branch_net_pallas.1} parent=1 // pred_fallthru
      _
    // Predicated region
    $region38: #{branch_net_pallas.1} parent=1 // pred_check
      _
    $region39: #{branch_net_pallas.1} parent=1 // pred_check_branch
      %182 = sbr.rel (0) target = $region41
    $region40: #{branch_net_pallas.1} parent=1 // pred_region
      _
    $region41: #{branch_net_pallas.1} parent=1 // pred_fallthru
      _
    // Predicated region
    $region42: #{branch_net_pallas.1} parent=1 // pred_check
      _
    $region43: #{branch_net_pallas.1} parent=1 // pred_check_branch
      %184 = sbr.rel (0) target = $region45
    $region44: #{branch_net_pallas.1} parent=1 // pred_region
      _
    $region45: #{branch_net_pallas.1} parent=1 // pred_fallthru
      _
    // Predicated region
    $region46: #{branch_net_pallas.1} parent=1 // pred_check
      _
    $region47: #{branch_net_pallas.1} parent=1 // pred_check_branch
      %186 = sbr.rel (0) target = $region49
    $region48: #{branch_net_pallas.1} parent=1 // pred_region
      _
    $region49: #{branch_net_pallas.1} parent=1 // pred_fallthru
      _
    // Predicated region
    $region50: #{branch_net_pallas.1} parent=1 // pred_check
      _
    $region51: #{branch_net_pallas.1} parent=1 // pred_check_branch
      %188 = sbr.rel (0) target = $region53
    $region52: #{branch_net_pallas.1} parent=1 // pred_region
      %190 = vsyncadd [#allocation15], 0
      %s192 = sshll.u32 %s25, 4
      %s193 = int_to_ptr.hbm [resolvable:$true] %s192
      %s194 = sshll.u32 [#allocation16], 4
      %s195 = int_to_ptr.vmem [resolvable:$true] %s194
      %197 = dma.hbm_to_vmem [thread:$0]  %s193, 16, %s195, [#allocation15]
    $region53: #{branch_net_pallas.1} parent=1 // pred_fallthru
      _
    // Predicated region
    $region54: #{branch_net_pallas.1} parent=1 // pred_check
      _
    $region55: #{branch_net_pallas.1} parent=1 // pred_check_branch
      %199 = sbr.rel (0) target = $region57
    $region56: #{branch_net_pallas.1} parent=1 // pred_region
      %201 = vsyncadd [#allocation18], 0
      %s202 = sshll.u32 %s27, 4
      %s203 = int_to_ptr.hbm [resolvable:$true] %s202
      %s204 = sshll.u32 [#allocation17], 4
      %s205 = int_to_ptr.vmem [resolvable:$true] %s204
      %210 = dma.hbm_to_vmem [thread:$0]  %s203, 2048, %s205, [#allocation18], 256, 256, 16
    $region57: #{branch_net_pallas.1} parent=1 // pred_fallthru
      _
    // Predicated region
    $region58: #{branch_net_pallas.1} parent=1 // pred_check
      _
    $region59: #{branch_net_pallas.1} parent=1 // pred_check_branch
      %212 = sbr.rel (0) target = $region61
    $region60: #{branch_net_pallas.1} parent=1 // pred_region
      %214 = vsyncadd [#allocation18], 0
      %s216 = sshll.u32 %s29, 4
      %s217 = int_to_ptr.hbm [resolvable:$true] %s216
      %s218 = sshll.u32 [#allocation19], 4
      %s219 = int_to_ptr.vmem [resolvable:$true] %s218
      %221 = dma.hbm_to_vmem [thread:$0]  %s217, 32, %s219, [#allocation18]
    $region61: #{branch_net_pallas.1} parent=1 // pred_fallthru
      _
    // Predicated region
    $region62: #{branch_net_pallas.1} parent=1 // pred_check
      _
    $region63: #{branch_net_pallas.1} parent=1 // pred_check_branch
      %223 = sbr.rel (0) target = $region65
    $region64: #{branch_net_pallas.1} parent=1 // pred_region
      %225 = vsyncadd [#allocation21], 0
      %s226 = sshll.u32 %s31, 4
      %s227 = int_to_ptr.hbm [resolvable:$true] %s226
      %s228 = sshll.u32 [#allocation20], 4
      %s229 = int_to_ptr.vmem [resolvable:$true] %s228
      %234 = dma.hbm_to_vmem [thread:$0]  %s227, 16384, %s229, [#allocation21], 512, 512, 32
    $region65: #{branch_net_pallas.1} parent=1 // pred_fallthru
      _
    // Predicated region
    $region66: #{branch_net_pallas.1} parent=1 // pred_check
      _
    $region67: #{branch_net_pallas.1} parent=1 // pred_check_branch
      %236 = sbr.rel (0) target = $region69
    $region68: #{branch_net_pallas.1} parent=1 // pred_region
      _
    $region69: #{branch_net_pallas.1} parent=1 // pred_fallthru
      _
    // Predicated region
    $region70: #{branch_net_pallas.1} parent=1 // pred_check
      _
    $region71: #{branch_net_pallas.1} parent=1 // pred_check_branch
      %238 = sbr.rel (0) target = $region73
    $region72: #{branch_net_pallas.1} parent=1 // pred_region
      %240 = vsyncadd [#allocation21], 0
      %s241 = sshll.u32 %s35, 4
      %s242 = int_to_ptr.hbm [resolvable:$true] %s241
      %s243 = sshll.u32 [#allocation22], 4
      %s244 = int_to_ptr.vmem [resolvable:$true] %s243
      %249 = dma.hbm_to_vmem [thread:$0]  %s242, 16384, %s244, [#allocation21], 256, 256, 16
    $region73: #{branch_net_pallas.1} parent=1 // pred_fallthru
      _
    // Predicated region
    $region74: #{branch_net_pallas.1} parent=1 // pred_check
      _
    $region75: #{branch_net_pallas.1} parent=1 // pred_check_branch
      %251 = sbr.rel (0) target = $region77
    $region76: #{branch_net_pallas.1} parent=1 // pred_region
      %253 = vsyncadd [#allocation24], 0
      %s255 = sshll.u32 %s37, 4
      %s256 = int_to_ptr.hbm [resolvable:$true] %s255
      %s257 = sshll.u32 [#allocation23], 4
      %s258 = int_to_ptr.vmem [resolvable:$true] %s257
      %260 = dma.hbm_to_vmem [thread:$0]  %s256, 32, %s258, [#allocation24]
    $region77: #{branch_net_pallas.1} parent=1 // pred_fallthru
      _
    // Predicated region
    $region78: #{branch_net_pallas.1} parent=1 // pred_check
      _
    $region79: #{branch_net_pallas.1} parent=1 // pred_check_branch
      %262 = sbr.rel (0) target = $region81
    $region80: #{branch_net_pallas.1} parent=1 // pred_region
      %264 = vsyncadd [#allocation24], 0
      %s266 = sshll.u32 %s39, 4
      %s267 = int_to_ptr.hbm [resolvable:$true] %s266
      %s268 = sshll.u32 [#allocation25], 4
      %s269 = int_to_ptr.vmem [resolvable:$true] %s268
      %271 = dma.hbm_to_vmem [thread:$0]  %s267, 16, %s269, [#allocation24]
    $region81: #{branch_net_pallas.1} parent=1 // pred_fallthru
      _
    // Predicated region
    $region82: #{branch_net_pallas.1} parent=1 // pred_check
      _
    $region83: #{branch_net_pallas.1} parent=1 // pred_check_branch
      %273 = sbr.rel (0) target = $region85
    $region84: #{branch_net_pallas.1} parent=1 // pred_region
      %275 = vsyncadd [#allocation27], 0
      %s277 = sshll.u32 %s41, 4
      %s278 = int_to_ptr.hbm [resolvable:$true] %s277
      %s279 = sshll.u32 [#allocation26], 4
      %s280 = int_to_ptr.vmem [resolvable:$true] %s279
      %282 = dma.hbm_to_vmem [thread:$0]  %s278, 16, %s280, [#allocation27]
    $region85: #{branch_net_pallas.1} parent=1 // pred_fallthru
      _
    // Predicated region
    $region86: #{branch_net_pallas.1} parent=1 // pred_check
      _
    $region87: #{branch_net_pallas.1} parent=1 // pred_check_branch
      %284 = sbr.rel (0) target = $region89
    $region88: #{branch_net_pallas.1} parent=1 // pred_region
      %286 = vsyncadd [#allocation27], 0
      %s288 = sshll.u32 %s43, 4
      %s289 = int_to_ptr.hbm [resolvable:$true] %s288
      %s290 = sshll.u32 [#allocation28], 4
      %s291 = int_to_ptr.vmem [resolvable:$true] %s290
      %293 = dma.hbm_to_vmem [thread:$0]  %s289, 32, %s291, [#allocation27]
    $region89: #{branch_net_pallas.1} parent=1 // pred_fallthru
      _
    // Predicated region
    $region90: #{branch_net_pallas.1} parent=1 // pred_check
      _
    $region91: #{branch_net_pallas.1} parent=1 // pred_check_branch
      %295 = sbr.rel (0) target = $region93
    $region92: #{branch_net_pallas.1} parent=1 // pred_region
      %297 = vsyncadd [#allocation30], 0
      %s299 = sshll.u32 %s45, 4
      %s300 = int_to_ptr.hbm [resolvable:$true] %s299
      %s301 = sshll.u32 [#allocation29], 4
      %s302 = int_to_ptr.vmem [resolvable:$true] %s301
      %304 = dma.hbm_to_vmem [thread:$0]  %s300, 32, %s302, [#allocation30]
    $region93: #{branch_net_pallas.1} parent=1 // pred_fallthru
      _
    // Predicated region
    $region94: #{branch_net_pallas.1} parent=1 // pred_check
      _
    $region95: #{branch_net_pallas.1} parent=1 // pred_check_branch
      %306 = sbr.rel (0) target = $region97
    $region96: #{branch_net_pallas.1} parent=1 // pred_region
      %308 = vsyncadd [#allocation30], 0
      %s310 = sshll.u32 %s47, 4
      %s311 = int_to_ptr.hbm [resolvable:$true] %s310
      %s312 = sshll.u32 [#allocation31], 4
      %s313 = int_to_ptr.vmem [resolvable:$true] %s312
      %315 = dma.hbm_to_vmem [thread:$0]  %s311, 64, %s313, [#allocation30]
    $region97: #{branch_net_pallas.1} parent=1 // pred_fallthru
      _
    // Predicated region
    $region98: #{branch_net_pallas.1} parent=1 // pred_check
      _
    $region99: #{branch_net_pallas.1} parent=1 // pred_check_branch
      %317 = sbr.rel (0) target = $region101
    $region100: #{branch_net_pallas.1} parent=1 // pred_region
      %319 = vsyncadd [#allocation33], 0
      %s321 = sshll.u32 %s49, 4
      %s322 = int_to_ptr.hbm [resolvable:$true] %s321
      %s323 = sshll.u32 [#allocation32], 4
      %s324 = int_to_ptr.vmem [resolvable:$true] %s323
      %326 = dma.hbm_to_vmem [thread:$0]  %s322, 64, %s324, [#allocation33]
    $region101: #{branch_net_pallas.1} parent=1 // pred_fallthru
      _
    // Predicated region
    $region102: #{branch_net_pallas.1} parent=1 // pred_check
      _
    $region103: #{branch_net_pallas.1} parent=1 // pred_check_branch
      %328 = sbr.rel (0) target = $region105
    $region104: #{branch_net_pallas.1} parent=1 // pred_region
      _
    $region105: #{branch_net_pallas.1} parent=1 // pred_fallthru
      _
    // Predicated region
    $region106: #{branch_net_pallas.1} parent=1 // pred_check
      _
    $region107: #{branch_net_pallas.1} parent=1 // pred_check_branch
      %330 = sbr.rel (0) target = $region109
    $region108: #{branch_net_pallas.1} parent=1 // pred_region
      %332 = vsyncadd [#allocation33], 0
      %s333 = sshll.u32 %s53, 4
      %s334 = int_to_ptr.hbm [resolvable:$true] %s333
      %s335 = sshll.u32 [#allocation34], 4
      %s336 = int_to_ptr.vmem [resolvable:$true] %s335
      %341 = dma.hbm_to_vmem [thread:$0]  %s334, 8192, %s336, [#allocation33], 256, 256, 16
    $region109: #{branch_net_pallas.1} parent=1 // pred_fallthru
      _
    // Predicated region
    $region110: #{branch_net_pallas.1} parent=1 // pred_check
      _
    $region111: #{branch_net_pallas.1} parent=1 // pred_check_branch
      %343 = sbr.rel (0) target = $region113
    $region112: #{branch_net_pallas.1} parent=1 // pred_region
      %345 = vsyncadd [#allocation36], 0
      %s346 = sshll.u32 %s55, 4
      %s347 = int_to_ptr.hbm [resolvable:$true] %s346
      %s348 = sshll.u32 [#allocation35], 4
      %s349 = int_to_ptr.vmem [resolvable:$true] %s348
      %354 = dma.hbm_to_vmem [thread:$0]  %s347, 32768, %s349, [#allocation36], 512, 512, 32
    $region113: #{branch_net_pallas.1} parent=1 // pred_fallthru
      _
    // Predicated region
    $region114: #{branch_net_pallas.1} parent=1 // pred_check
      _
    $region115: #{branch_net_pallas.1} parent=1 // pred_check_branch
      %356 = sbr.rel (0) target = $region117
    $region116: #{branch_net_pallas.1} parent=1 // pred_region
      %358 = vsyncadd [#allocation36], 0
      %s359 = sshll.u32 %s57, 4
      %s360 = int_to_ptr.hbm [resolvable:$true] %s359
      %s361 = sshll.u32 [#allocation37], 4
      %s362 = int_to_ptr.vmem [resolvable:$true] %s361
      %367 = dma.hbm_to_vmem [thread:$0]  %s360, 2048, %s362, [#allocation36], 128, 128, 8
    $region117: #{branch_net_pallas.1} parent=1 // pred_fallthru
      _
    // Predicated region
    $region118: #{branch_net_pallas.1} parent=1 // pred_check
      _
    $region119: #{branch_net_pallas.1} parent=1 // pred_check_branch
      %369 = sbr.rel (0) target = $region121
    $region120: #{branch_net_pallas.1} parent=1 // pred_region
      %371 = vsyncadd [#allocation39], 0
      %s373 = sshll.u32 %s59, 4
      %s374 = int_to_ptr.hbm [resolvable:$true] %s373
      %s375 = sshll.u32 [#allocation38], 4
      %s376 = int_to_ptr.vmem [resolvable:$true] %s375
      %378 = dma.hbm_to_vmem [thread:$0]  %s374, 16, %s376, [#allocation39]
    $region121: #{branch_net_pallas.1} parent=1 // pred_fallthru
      _
    // Predicated region
    $region122: #{branch_net_pallas.1} parent=1 // pred_check
      _
    $region123: #{branch_net_pallas.1} parent=1 // pred_check_branch
      %380 = sbr.rel (0) target = $region125
    $region124: #{branch_net_pallas.1} parent=1 // pred_region
      _
    $region125: #{branch_net_pallas.1} parent=1 // pred_fallthru
      _
    // Predicated region
    $region126: #{branch_net_pallas.1} parent=1 // pred_check
      _
    $region127: #{branch_net_pallas.1} parent=1 // pred_check_branch
      %382 = sbr.rel (0) target = $region129
    $region128: #{branch_net_pallas.1} parent=1 // pred_region
      %384 = vsyncadd [#allocation39], 0
      %s386 = sshll.u32 %s63, 4
      %s387 = int_to_ptr.hbm [resolvable:$true] %s386
      %s388 = sshll.u32 [#allocation40], 4
      %s389 = int_to_ptr.vmem [resolvable:$true] %s388
      %391 = dma.hbm_to_vmem [thread:$0]  %s387, 32, %s389, [#allocation39]
    $region129: #{branch_net_pallas.1} parent=1 // pred_fallthru
      _
    // Predicated region
    $region130: #{branch_net_pallas.1} parent=1 // pred_check
      _
    $region131: #{branch_net_pallas.1} parent=1 // pred_check_branch
      %393 = sbr.rel (0) target = $region133
    $region132: #{branch_net_pallas.1} parent=1 // pred_region
      %395 = vsyncadd [#allocation42], 0
      %s396 = sshll.u32 %s65, 4
      %s397 = int_to_ptr.hbm [resolvable:$true] %s396
      %s398 = sshll.u32 [#allocation41], 4
      %s399 = int_to_ptr.vmem [resolvable:$true] %s398
      %404 = dma.hbm_to_vmem [thread:$0]  %s397, 4096, %s399, [#allocation42], 128, 128, 8
    $region133: #{branch_net_pallas.1} parent=1 // pred_fallthru
      _
    // Predicated region
    $region134: #{branch_net_pallas.1} parent=1 // pred_check
      _
    $region135: #{branch_net_pallas.1} parent=1 // pred_check_branch
      %406 = sbr.rel (0) target = $region137
    $region136: #{branch_net_pallas.1} parent=1 // pred_region
      %408 = vsyncadd [#allocation42], 0
      %s410 = sshll.u32 %s67, 4
      %s411 = int_to_ptr.hbm [resolvable:$true] %s410
      %s412 = sshll.u32 [#allocation43], 4
      %s413 = int_to_ptr.vmem [resolvable:$true] %s412
      %415 = dma.hbm_to_vmem [thread:$0]  %s411, 16, %s413, [#allocation42]
    $region137: #{branch_net_pallas.1} parent=1 // pred_fallthru
      _
    // Predicated region
    $region138: #{branch_net_pallas.1} parent=1 // pred_check
      _
    $region139: #{branch_net_pallas.1} parent=1 // pred_check_branch
      %417 = sbr.rel (0) target = $region141
    $region140: #{branch_net_pallas.1} parent=1 // pred_region
      _
    $region141: #{branch_net_pallas.1} parent=1 // pred_fallthru
      _
    // Predicated region
    $region142: #{branch_net_pallas.1} parent=1 // pred_check
      _
    $region143: #{branch_net_pallas.1} parent=1 // pred_check_branch
      %419 = sbr.rel (0) target = $region145
    $region144: #{branch_net_pallas.1} parent=1 // pred_region
      %421 = vsyncadd [#allocation45], 0
      %s423 = sshll.u32 %s71, 4
      %s424 = int_to_ptr.hbm [resolvable:$true] %s423
      %s425 = sshll.u32 [#allocation44], 4
      %s426 = int_to_ptr.vmem [resolvable:$true] %s425
      %428 = dma.hbm_to_vmem [thread:$0]  %s424, 16, %s426, [#allocation45]
    $region145: #{branch_net_pallas.1} parent=1 // pred_fallthru
      _
    // Predicated region
    $region146: #{branch_net_pallas.1} parent=1 // pred_check
      _
    $region147: #{branch_net_pallas.1} parent=1 // pred_check_branch
      %430 = sbr.rel (0) target = $region149
    $region148: #{branch_net_pallas.1} parent=1 // pred_region
      _
    $region149: #{branch_net_pallas.1} parent=1 // pred_fallthru
      _
    // Predicated region
    $region150: #{branch_net_pallas.1} parent=1 // pred_check
      _
    $region151: #{branch_net_pallas.1} parent=1 // pred_check_branch
      %432 = sbr.rel (0) target = $region153
    $region152: #{branch_net_pallas.1} parent=1 // pred_region
      _
    $region153: #{branch_net_pallas.1} parent=1 // pred_fallthru
      _
    // Predicated region
    $region154: #{branch_net_pallas.1} parent=1 // pred_check
      _
    $region155: #{branch_net_pallas.1} parent=1 // pred_check_branch
      %434 = sbr.rel (0) target = $region157
    $region156: #{branch_net_pallas.1} parent=1 // pred_region
      _
    $region157: #{branch_net_pallas.1} parent=1 // pred_fallthru
      _
    // Predicated region
    $region158: #{branch_net_pallas.1} parent=1 // pred_check
      _
    $region159: #{branch_net_pallas.1} parent=1 // pred_check_branch
      %436 = sbr.rel (0) target = $region161
    $region160: #{branch_net_pallas.1} parent=1 // pred_region
      _
    $region161: #{branch_net_pallas.1} parent=1 // pred_fallthru
      _
    // Predicated region
    $region162: #{branch_net_pallas.1} parent=1 // pred_check
      _
    $region163: #{branch_net_pallas.1} parent=1 // pred_check_branch
      %438 = sbr.rel (0) target = $region165
    $region164: #{branch_net_pallas.1} parent=1 // pred_region
      _
    $region165: #{branch_net_pallas.1} parent=1 // pred_fallthru
      _
    // Predicated region
    $region166: #{branch_net_pallas.1} parent=1 // pred_check
      _
    $region167: #{branch_net_pallas.1} parent=1 // pred_check_branch
      %440 = sbr.rel (0) target = $region169
    $region168: #{branch_net_pallas.1} parent=1 // pred_region
      _
    $region169: #{branch_net_pallas.1} parent=1 // pred_fallthru
      _
    // Predicated region
    $region170: #{branch_net_pallas.1} parent=1 // pred_check
      _
    $region171: #{branch_net_pallas.1} parent=1 // pred_check_branch
      %442 = sbr.rel (0) target = $region173
    $region172: #{branch_net_pallas.1} parent=1 // pred_region
      %444 = vsyncadd [#allocation45], 0
      %s445 = sshll.u32 %s85, 4
      %s446 = int_to_ptr.hbm [resolvable:$true] %s445
      %s447 = sshll.u32 [#allocation46], 4
      %s448 = int_to_ptr.vmem [resolvable:$true] %s447
      %453 = dma.hbm_to_vmem [thread:$0]  %s446, 2048, %s448, [#allocation45], 256, 256, 16
    $region173: #{branch_net_pallas.1} parent=1 // pred_fallthru
      _
    // Predicated region
    $region174: #{branch_net_pallas.1} parent=1 // pred_check
      _
    $region175: #{branch_net_pallas.1} parent=1 // pred_check_branch
      %455 = sbr.rel (0) target = $region177
    $region176: #{branch_net_pallas.1} parent=1 // pred_region
      %457 = vsyncadd [#allocation48], 0
      %s458 = sshll.u32 %s87, 4
      %s459 = int_to_ptr.hbm [resolvable:$true] %s458
      %s460 = sshll.u32 [#allocation47], 4
      %s461 = int_to_ptr.vmem [resolvable:$true] %s460
      %466 = dma.hbm_to_vmem [thread:$0]  %s459, 4096, %s461, [#allocation48], 128, 128, 8
    $region177: #{branch_net_pallas.1} parent=1 // pred_fallthru
      _
    // Predicated region
    $region178: #{branch_net_pallas.1} parent=1 // pred_check
      _
    $region179: #{branch_net_pallas.1} parent=1 // pred_check_branch
      %468 = sbr.rel (0) target = $region181
    $region180: #{branch_net_pallas.1} parent=1 // pred_region
      %470 = dma.done [#allocation9], 2048
    $region181: #{branch_net_pallas.1} parent=1 // pred_fallthru
      _
    // Predicated region
    $region182: #{branch_net_pallas.1} parent=1 // pred_check
      _
    $region183: #{branch_net_pallas.1} parent=1 // pred_check_branch
      %472 = sbr.rel (0) target = $region185
    $region184: #{branch_net_pallas.1} parent=1 // pred_region
      %474 = dma.done [#allocation12], 512
    $region185: #{branch_net_pallas.1} parent=1 // pred_fallthru
      _
    // Predicated region
    $region186: #{branch_net_pallas.1} parent=1 // pred_check
      _
    $region187: #{branch_net_pallas.1} parent=1 // pred_check_branch
      %476 = sbr.rel (0) target = $region189
    $region188: #{branch_net_pallas.1} parent=1 // pred_region
      %478 = dma.done [#allocation12], 512
    $region189: #{branch_net_pallas.1} parent=1 // pred_fallthru
      _
    // Predicated region
    $region190: #{branch_net_pallas.1} parent=1 // pred_check
      _
    $region191: #{branch_net_pallas.1} parent=1 // pred_check_branch
      %480 = sbr.rel (0) target = $region193
    $region192: #{branch_net_pallas.1} parent=1 // pred_region
      %482 = dma.done [#allocation15], 16
    $region193: #{branch_net_pallas.1} parent=1 // pred_fallthru
      _
    // Predicated region
    $region194: #{branch_net_pallas.1} parent=1 // pred_check
      _
    $region195: #{branch_net_pallas.1} parent=1 // pred_check_branch
      %484 = sbr.rel (0) target = $region197
    $region196: #{branch_net_pallas.1} parent=1 // pred_region
      %486 = dma.done [#allocation15], 16
    $region197: #{branch_net_pallas.1} parent=1 // pred_fallthru
      _
    // Predicated region
    $region198: #{branch_net_pallas.1} parent=1 // pred_check
      _
    $region199: #{branch_net_pallas.1} parent=1 // pred_check_branch
      %488 = sbr.rel (0) target = $region201
    $region200: #{branch_net_pallas.1} parent=1 // pred_region
      %490 = dma.done [#allocation18], 2048
    $region201: #{branch_net_pallas.1} parent=1 // pred_fallthru
      _
    // Predicated region
    $region202: #{branch_net_pallas.1} parent=1 // pred_check
      _
    $region203: #{branch_net_pallas.1} parent=1 // pred_check_branch
      %492 = sbr.rel (0) target = $region205
    $region204: #{branch_net_pallas.1} parent=1 // pred_region
      %494 = dma.done [#allocation18], 32
    $region205: #{branch_net_pallas.1} parent=1 // pred_fallthru
      _
    // Predicated region
    $region206: #{branch_net_pallas.1} parent=1 // pred_check
      _
    $region207: #{branch_net_pallas.1} parent=1 // pred_check_branch
      %496 = sbr.rel (0) target = $region209
    $region208: #{branch_net_pallas.1} parent=1 // pred_region
      %498 = dma.done [#allocation21], 16384
    $region209: #{branch_net_pallas.1} parent=1 // pred_fallthru
      _
    // Predicated region
    $region210: #{branch_net_pallas.1} parent=1 // pred_check
      _
    $region211: #{branch_net_pallas.1} parent=1 // pred_check_branch
      %500 = sbr.rel (0) target = $region213
    $region212: #{branch_net_pallas.1} parent=1 // pred_region
      %502 = dma.done [#allocation21], 16384
    $region213: #{branch_net_pallas.1} parent=1 // pred_fallthru
      _
    // Predicated region
    $region214: #{branch_net_pallas.1} parent=1 // pred_check
      _
    $region215: #{branch_net_pallas.1} parent=1 // pred_check_branch
      %504 = sbr.rel (0) target = $region217
    $region216: #{branch_net_pallas.1} parent=1 // pred_region
      %506 = dma.done [#allocation24], 32
    $region217: #{branch_net_pallas.1} parent=1 // pred_fallthru
      _
    // Predicated region
    $region218: #{branch_net_pallas.1} parent=1 // pred_check
      _
    $region219: #{branch_net_pallas.1} parent=1 // pred_check_branch
      %508 = sbr.rel (0) target = $region221
    $region220: #{branch_net_pallas.1} parent=1 // pred_region
      %510 = dma.done [#allocation24], 16
    $region221: #{branch_net_pallas.1} parent=1 // pred_fallthru
      _
    // Predicated region
    $region222: #{branch_net_pallas.1} parent=1 // pred_check
      _
    $region223: #{branch_net_pallas.1} parent=1 // pred_check_branch
      %512 = sbr.rel (0) target = $region225
    $region224: #{branch_net_pallas.1} parent=1 // pred_region
      %514 = dma.done [#allocation27], 16
    $region225: #{branch_net_pallas.1} parent=1 // pred_fallthru
      _
    // Predicated region
    $region226: #{branch_net_pallas.1} parent=1 // pred_check
      _
    $region227: #{branch_net_pallas.1} parent=1 // pred_check_branch
      %516 = sbr.rel (0) target = $region229
    $region228: #{branch_net_pallas.1} parent=1 // pred_region
      %518 = dma.done [#allocation27], 32
    $region229: #{branch_net_pallas.1} parent=1 // pred_fallthru
      _
    // Predicated region
    $region230: #{branch_net_pallas.1} parent=1 // pred_check
      _
    $region231: #{branch_net_pallas.1} parent=1 // pred_check_branch
      %520 = sbr.rel (0) target = $region233
    $region232: #{branch_net_pallas.1} parent=1 // pred_region
      %522 = dma.done [#allocation30], 32
    $region233: #{branch_net_pallas.1} parent=1 // pred_fallthru
      _
    // Predicated region
    $region234: #{branch_net_pallas.1} parent=1 // pred_check
      _
    $region235: #{branch_net_pallas.1} parent=1 // pred_check_branch
      %524 = sbr.rel (0) target = $region237
    $region236: #{branch_net_pallas.1} parent=1 // pred_region
      %526 = dma.done [#allocation30], 64
    $region237: #{branch_net_pallas.1} parent=1 // pred_fallthru
      _
    // Predicated region
    $region238: #{branch_net_pallas.1} parent=1 // pred_check
      _
    $region239: #{branch_net_pallas.1} parent=1 // pred_check_branch
      %528 = sbr.rel (0) target = $region241
    $region240: #{branch_net_pallas.1} parent=1 // pred_region
      %530 = dma.done [#allocation33], 64
    $region241: #{branch_net_pallas.1} parent=1 // pred_fallthru
      _
    // Predicated region
    $region242: #{branch_net_pallas.1} parent=1 // pred_check
      _
    $region243: #{branch_net_pallas.1} parent=1 // pred_check_branch
      %532 = sbr.rel (0) target = $region245
    $region244: #{branch_net_pallas.1} parent=1 // pred_region
      %534 = dma.done [#allocation33], 8192
    $region245: #{branch_net_pallas.1} parent=1 // pred_fallthru
      _
    // Predicated region
    $region246: #{branch_net_pallas.1} parent=1 // pred_check
      _
    $region247: #{branch_net_pallas.1} parent=1 // pred_check_branch
      %536 = sbr.rel (0) target = $region249
    $region248: #{branch_net_pallas.1} parent=1 // pred_region
      %538 = dma.done [#allocation36], 32768
    $region249: #{branch_net_pallas.1} parent=1 // pred_fallthru
      _
    // Predicated region
    $region250: #{branch_net_pallas.1} parent=1 // pred_check
      _
    $region251: #{branch_net_pallas.1} parent=1 // pred_check_branch
      %540 = sbr.rel (0) target = $region253
    $region252: #{branch_net_pallas.1} parent=1 // pred_region
      %542 = dma.done [#allocation36], 2048
    $region253: #{branch_net_pallas.1} parent=1 // pred_fallthru
      _
    // Predicated region
    $region254: #{branch_net_pallas.1} parent=1 // pred_check
      _
    $region255: #{branch_net_pallas.1} parent=1 // pred_check_branch
      %544 = sbr.rel (0) target = $region257
    $region256: #{branch_net_pallas.1} parent=1 // pred_region
      %546 = dma.done [#allocation39], 16
    $region257: #{branch_net_pallas.1} parent=1 // pred_fallthru
      _
    // Predicated region
    $region258: #{branch_net_pallas.1} parent=1 // pred_check
      _
    $region259: #{branch_net_pallas.1} parent=1 // pred_check_branch
      %548 = sbr.rel (0) target = $region261
    $region260: #{branch_net_pallas.1} parent=1 // pred_region
      %550 = dma.done [#allocation39], 32
    $region261: #{branch_net_pallas.1} parent=1 // pred_fallthru
      _
    // Predicated region
    $region262: #{branch_net_pallas.1} parent=1 // pred_check
      _
    $region263: #{branch_net_pallas.1} parent=1 // pred_check_branch
      %552 = sbr.rel (0) target = $region265
    $region264: #{branch_net_pallas.1} parent=1 // pred_region
      %554 = dma.done [#allocation42], 4096
    $region265: #{branch_net_pallas.1} parent=1 // pred_fallthru
      _
    // Predicated region
    $region266: #{branch_net_pallas.1} parent=1 // pred_check
      _
    $region267: #{branch_net_pallas.1} parent=1 // pred_check_branch
      %556 = sbr.rel (0) target = $region269
    $region268: #{branch_net_pallas.1} parent=1 // pred_region
      %558 = dma.done [#allocation42], 16
    $region269: #{branch_net_pallas.1} parent=1 // pred_fallthru
      _
    // Predicated region
    $region270: #{branch_net_pallas.1} parent=1 // pred_check
      _
    $region271: #{branch_net_pallas.1} parent=1 // pred_check_branch
      %560 = sbr.rel (0) target = $region273
    $region272: #{branch_net_pallas.1} parent=1 // pred_region
      %562 = dma.done [#allocation45], 16
    $region273: #{branch_net_pallas.1} parent=1 // pred_fallthru
      _
    // Predicated region
    $region274: #{branch_net_pallas.1} parent=1 // pred_check
      _
    $region275: #{branch_net_pallas.1} parent=1 // pred_check_branch
      %564 = sbr.rel (0) target = $region277
    $region276: #{branch_net_pallas.1} parent=1 // pred_region
      %566 = dma.done [#allocation45], 2048
    $region277: #{branch_net_pallas.1} parent=1 // pred_fallthru
      _
    // Predicated region
    $region278: #{branch_net_pallas.1} parent=1 // pred_check
      _
    $region279: #{branch_net_pallas.1} parent=1 // pred_check_branch
      %568 = sbr.rel (0) target = $region281
    $region280: #{branch_net_pallas.1} parent=1 // pred_region
      %570 = dma.done [#allocation48], 4096
    $region281: #{branch_net_pallas.1} parent=1 // pred_fallthru
      _
    %v571 = vld [vmem:[%s1] sm:$0x3]
    %v572 = vld [vmem:[%s15] sm:$0xff]
    %v573 = vld [vmem:[%s15 + $0x8] sm:$0xff]
    %v574 = vld [vmem:[%s15 + $0x10] sm:$0xff]
    %v575 = vld [vmem:[%s15 + $0x18] sm:$0xff]
    %v576 = vld [vmem:[%s15 + $0x20] sm:$0xff]
    %v577 = vld [vmem:[%s15 + $0x28] sm:$0xff]
    %v578 = vld [vmem:[%s15 + $0x30] sm:$0xff]
    %v579 = vld [vmem:[%s15 + $0x38] sm:$0xff]
    %v580 = vld [vmem:[%s15 + $0x40] sm:$0xff]
    %v581 = vld [vmem:[%s15 + $0x48] sm:$0xff]
    %v582 = vld [vmem:[%s15 + $0x50] sm:$0xff]
    %v583 = vld [vmem:[%s15 + $0x58] sm:$0xff]
    %v584 = vld [vmem:[%s15 + $0x60] sm:$0xff]
    %v585 = vld [vmem:[%s15 + $0x68] sm:$0xff]
    %v586 = vld [vmem:[%s15 + $0x70] sm:$0xff]
    %v587 = vld [vmem:[%s15 + $0x78] sm:$0xff]
    %v588 = vld [vmem:[#allocation14] sm:$0x1]
    %v590 = vperm.slane %v588, 0
    %592 = vmatpush.msra.mxu0 %v587
    %593 = vmatpush.msra.mxu0 %v586
    %594 = vmatpush.msra.mxu0 %v585
    %595 = vmatpush.msra.mxu0 %v584
    %596 = vmatpush.msra.mxu0 %v583
    %597 = vmatpush.msra.mxu0 %v582
    %598 = vmatpush.msra.mxu0 %v581
    %599 = vmatpush.msra.mxu0 %v580
    %600 = vmatpush.msra.mxu0 %v579
    %601 = vmatpush.msra.mxu0 %v578
    %602 = vmatpush.msra.mxu0 %v577
    %603 = vmatpush.msra.mxu0 %v576
    %604 = vmatpush.msra.mxu0 %v575
    %605 = vmatpush.msra.mxu0 %v574
    %606 = vmatpush.msra.mxu0 %v573
    %607 = vmatpush.msra.mxu0 %v572
    %608 = vmatmul.f32.gmra.mxu0 %v571
    %v609 = vpop.f32.mrf.mxu0
    %v610 = vadd.f32 %v590, %v609
    %611 = vdwg.mxu0
    %v612 = vmax.f32 %v610, 0.0
    %v613 = vld [vmem:[%s19] sm:$0xff]
    %v614 = vld [vmem:[%s19 + $0x8] sm:$0xff]
    %v615 = vld [vmem:[%s19 + $0x10] sm:$0xff]
    %v616 = vld [vmem:[%s19 + $0x18] sm:$0xff]
    %v617 = vld [vmem:[%s19 + $0x20] sm:$0xff]
    %v618 = vld [vmem:[%s19 + $0x28] sm:$0xff]
    %v619 = vld [vmem:[%s19 + $0x30] sm:$0xff]
    %v620 = vld [vmem:[%s19 + $0x38] sm:$0xff]
    %v621 = vld [vmem:[%s19 + $0x40] sm:$0xff]
    %v622 = vld [vmem:[%s19 + $0x48] sm:$0xff]
    %v623 = vld [vmem:[%s19 + $0x50] sm:$0xff]
    %v624 = vld [vmem:[%s19 + $0x58] sm:$0xff]
    %v625 = vld [vmem:[%s19 + $0x60] sm:$0xff]
    %v626 = vld [vmem:[%s19 + $0x68] sm:$0xff]
    %v627 = vld [vmem:[%s19 + $0x70] sm:$0xff]
    %v628 = vld [vmem:[%s19 + $0x78] sm:$0xff]
    %v629 = vld [vmem:[%s19 + $0x80] sm:$0xff]
    %v630 = vld [vmem:[%s19 + $0x88] sm:$0xff]
    %v631 = vld [vmem:[%s19 + $0x90] sm:$0xff]
    %v632 = vld [vmem:[%s19 + $0x98] sm:$0xff]
    %v633 = vld [vmem:[%s19 + $0xa0] sm:$0xff]
    %v634 = vld [vmem:[%s19 + $0xa8] sm:$0xff]
    %v635 = vld [vmem:[%s19 + $0xb0] sm:$0xff]
    %v636 = vld [vmem:[%s19 + $0xb8] sm:$0xff]
    %v637 = vld [vmem:[%s19 + $0xc0] sm:$0xff]
    %v638 = vld [vmem:[%s19 + $0xc8] sm:$0xff]
    %v639 = vld [vmem:[%s19 + $0xd0] sm:$0xff]
    %v640 = vld [vmem:[%s19 + $0xd8] sm:$0xff]
    %v641 = vld [vmem:[%s19 + $0xe0] sm:$0xff]
    %v642 = vld [vmem:[%s19 + $0xe8] sm:$0xff]
    %v643 = vld [vmem:[%s19 + $0xf0] sm:$0xff]
    %v644 = vld [vmem:[%s19 + $0xf8] sm:$0xff]
    %v645 = vld [vmem:[%s19 + $0x100] sm:$0xff]
    %v646 = vld [vmem:[%s19 + $0x108] sm:$0xff]
    %v647 = vld [vmem:[%s19 + $0x110] sm:$0xff]
    %v648 = vld [vmem:[%s19 + $0x118] sm:$0xff]
    %v649 = vld [vmem:[%s19 + $0x120] sm:$0xff]
    %v650 = vld [vmem:[%s19 + $0x128] sm:$0xff]
    %v651 = vld [vmem:[%s19 + $0x130] sm:$0xff]
    %v652 = vld [vmem:[%s19 + $0x138] sm:$0xff]
    %v653 = vld [vmem:[%s19 + $0x140] sm:$0xff]
    %v654 = vld [vmem:[%s19 + $0x148] sm:$0xff]
    %v655 = vld [vmem:[%s19 + $0x150] sm:$0xff]
    %v656 = vld [vmem:[%s19 + $0x158] sm:$0xff]
    %v657 = vld [vmem:[%s19 + $0x160] sm:$0xff]
    %v658 = vld [vmem:[%s19 + $0x168] sm:$0xff]
    %v659 = vld [vmem:[%s19 + $0x170] sm:$0xff]
    %v660 = vld [vmem:[%s19 + $0x178] sm:$0xff]
    %v661 = vld [vmem:[%s19 + $0x180] sm:$0xff]
    %v662 = vld [vmem:[%s19 + $0x188] sm:$0xff]
    %v663 = vld [vmem:[%s19 + $0x190] sm:$0xff]
    %v664 = vld [vmem:[%s19 + $0x198] sm:$0xff]
    %v665 = vld [vmem:[%s19 + $0x1a0] sm:$0xff]
    %v666 = vld [vmem:[%s19 + $0x1a8] sm:$0xff]
    %v667 = vld [vmem:[%s19 + $0x1b0] sm:$0xff]
    %v668 = vld [vmem:[%s19 + $0x1b8] sm:$0xff]
    %v669 = vld [vmem:[%s19 + $0x1c0] sm:$0xff]
    %v670 = vld [vmem:[%s19 + $0x1c8] sm:$0xff]
    %v671 = vld [vmem:[%s19 + $0x1d0] sm:$0xff]
    %v672 = vld [vmem:[%s19 + $0x1d8] sm:$0xff]
    %v673 = vld [vmem:[%s19 + $0x1e0] sm:$0xff]
    %v674 = vld [vmem:[%s19 + $0x1e8] sm:$0xff]
    %v675 = vld [vmem:[%s19 + $0x1f0] sm:$0xff]
    %v676 = vld [vmem:[%s19 + $0x1f8] sm:$0xff]
    %v677 = vld [vmem:[%s21] sm:$0xf]
    %v679 = vperm.slane %v677, 0
    %v680 = vperm.slane %v677, 1
    %v681 = vperm.slane %v677, 2
    %v682 = vperm.slane %v677, 3
    %687 = vmatpush.msra.mxu0 %v673
    %688 = vmatpush.msra.mxu0 %v669
    %689 = vmatpush.msra.mxu0 %v665
    %690 = vmatpush.msra.mxu0 %v661
    %691 = vmatpush.msra.mxu0 %v657
    %692 = vmatpush.msra.mxu0 %v653
    %693 = vmatpush.msra.mxu0 %v649
    %694 = vmatpush.msra.mxu0 %v645
    %695 = vmatpush.msra.mxu0 %v641
    %696 = vmatpush.msra.mxu0 %v637
    %697 = vmatpush.msra.mxu0 %v633
    %698 = vmatpush.msra.mxu0 %v629
    %699 = vmatpush.msra.mxu0 %v625
    %700 = vmatpush.msra.mxu0 %v621
    %701 = vmatpush.msra.mxu0 %v617
    %702 = vmatpush.msra.mxu0 %v613
    %703 = vmatmul.f32.gmra.mxu0 %v612
    %v704 = vpop.f32.mrf.mxu0
    %v705 = vadd.f32 %v679, %v704
    %706 = vdwg.mxu0
    %707 = vmatpush.msra.mxu0 %v674
    %708 = vmatpush.msra.mxu0 %v670
    %709 = vmatpush.msra.mxu0 %v666
    %710 = vmatpush.msra.mxu0 %v662
    %711 = vmatpush.msra.mxu0 %v658
    %712 = vmatpush.msra.mxu0 %v654
    %713 = vmatpush.msra.mxu0 %v650
    %714 = vmatpush.msra.mxu0 %v646
    %715 = vmatpush.msra.mxu0 %v642
    %716 = vmatpush.msra.mxu0 %v638
    %717 = vmatpush.msra.mxu0 %v634
    %718 = vmatpush.msra.mxu0 %v630
    %719 = vmatpush.msra.mxu0 %v626
    %720 = vmatpush.msra.mxu0 %v622
    %721 = vmatpush.msra.mxu0 %v618
    %722 = vmatpush.msra.mxu0 %v614
    %723 = vmatmul.f32.gmra.mxu0 %v612
    %v724 = vpop.f32.mrf.mxu0
    %v725 = vadd.f32 %v680, %v724
    %726 = vdwg.mxu0
    %727 = vmatpush.msra.mxu0 %v675
    %728 = vmatpush.msra.mxu0 %v671
    %729 = vmatpush.msra.mxu0 %v667
    %730 = vmatpush.msra.mxu0 %v663
    %731 = vmatpush.msra.mxu0 %v659
    %732 = vmatpush.msra.mxu0 %v655
    %733 = vmatpush.msra.mxu0 %v651
    %734 = vmatpush.msra.mxu0 %v647
    %735 = vmatpush.msra.mxu0 %v643
    %736 = vmatpush.msra.mxu0 %v639
    %737 = vmatpush.msra.mxu0 %v635
    %738 = vmatpush.msra.mxu0 %v631
    %739 = vmatpush.msra.mxu0 %v627
    %740 = vmatpush.msra.mxu0 %v623
    %741 = vmatpush.msra.mxu0 %v619
    %742 = vmatpush.msra.mxu0 %v615
    %743 = vmatmul.f32.gmra.mxu0 %v612
    %v744 = vpop.f32.mrf.mxu0
    %v745 = vadd.f32 %v681, %v744
    %746 = vdwg.mxu0
    %747 = vmatpush.msra.mxu0 %v676
    %748 = vmatpush.msra.mxu0 %v672
    %749 = vmatpush.msra.mxu0 %v668
    %750 = vmatpush.msra.mxu0 %v664
    %751 = vmatpush.msra.mxu0 %v660
    %752 = vmatpush.msra.mxu0 %v656
    %753 = vmatpush.msra.mxu0 %v652
    %754 = vmatpush.msra.mxu0 %v648
    %755 = vmatpush.msra.mxu0 %v644
    %756 = vmatpush.msra.mxu0 %v640
    %757 = vmatpush.msra.mxu0 %v636
    %758 = vmatpush.msra.mxu0 %v632
    %759 = vmatpush.msra.mxu0 %v628
    %760 = vmatpush.msra.mxu0 %v624
    %761 = vmatpush.msra.mxu0 %v620
    %762 = vmatpush.msra.mxu0 %v616
    %763 = vmatmul.f32.gmra.mxu0 %v612
    %v764 = vpop.f32.mrf.mxu0
    %v765 = vadd.f32 %v682, %v764
    %766 = vdwg.mxu0
    %v767 = vmax.f32 %v705, 0.0
    %v768 = vmax.f32 %v725, 0.0
    %v769 = vmax.f32 %v745, 0.0
    %v770 = vmax.f32 %v765, 0.0
    %v771 = vld [vmem:[%s5] sm:$0xff]
    %v772 = vld [vmem:[%s5 + $0x8] sm:$0xff]
    %v773 = vld [vmem:[%s5 + $0x10] sm:$0xff]
    %v774 = vld [vmem:[%s5 + $0x18] sm:$0xff]
    %vm775 = vcmask 15360
    %v777 = vsel %vm775, %v771, 0
    %v780 = vsel %vm775, %v772, 0
    %v783 = vsel %vm775, %v773, 0
    %v786 = vsel %vm775, %v774, 0
    %vm788 = vcmask 1041408
    %v790 = vsel %vm788, %v767, 0
    %v793 = vsel %vm788, %v768, 0
    %v796 = vsel %vm788, %v769, 0
    %v799 = vsel %vm788, %v770, 0
    %801 = vmatpush.msra.mxu0 0.0
    %802 = vmatpush.msra.mxu0 0.0
    %803 = vmatpush.msra.mxu0 0.0
    %804 = vmatpush.msra.mxu0 0.0
    %805 = vmatpush.msra.mxu0 0.0
    %806 = vmatpush.msra.mxu0 0.0
    %807 = vmatpush.msra.mxu0 0.0
    %808 = vmatpush.msra.mxu0 0.0
    %809 = vmatpush.msra.mxu0 0.0
    %810 = vmatpush.msra.mxu0 0.0
    %811 = vmatpush.msra.mxu0 0.0
    %812 = vmatpush.msra.mxu0 0.0
    %813 = vmatpush.msra.mxu0 0.0
    %814 = vmatpush.msra.mxu0 0.0
    %815 = vmatpush.msra.mxu0 0.0
    %816 = vmatpush.msra.mxu0 %v790
    %817 = vmatmul.f32.gmra.mxu0 %v777
    %v818 = vpop.f32.mrf.mxu0
    %v819 = vadd.f32 0.0, %v818
    %820 = vmatmul.f32.gmra.mxu0 %v780
    %v821 = vpop.f32.mrf.mxu0
    %v822 = vadd.f32 0.0, %v821
    %823 = vmatmul.f32.gmra.mxu0 %v783
    %v824 = vpop.f32.mrf.mxu0
    %v825 = vadd.f32 0.0, %v824
    %826 = vmatmul.f32.gmra.mxu0 %v786
    %v827 = vpop.f32.mrf.mxu0
    %v828 = vadd.f32 0.0, %v827
    %829 = vdwg.mxu0
    %830 = vmatpush.msra.mxu0 0.0
    %831 = vmatpush.msra.mxu0 0.0
    %832 = vmatpush.msra.mxu0 0.0
    %833 = vmatpush.msra.mxu0 0.0
    %834 = vmatpush.msra.mxu0 0.0
    %835 = vmatpush.msra.mxu0 0.0
    %836 = vmatpush.msra.mxu0 0.0
    %837 = vmatpush.msra.mxu0 0.0
    %838 = vmatpush.msra.mxu0 0.0
    %839 = vmatpush.msra.mxu0 0.0
    %840 = vmatpush.msra.mxu0 0.0
    %841 = vmatpush.msra.mxu0 0.0
    %842 = vmatpush.msra.mxu0 0.0
    %843 = vmatpush.msra.mxu0 0.0
    %844 = vmatpush.msra.mxu0 0.0
    %845 = vmatpush.msra.mxu0 %v793
    %846 = vmatmul.f32.gmra.mxu0 %v777
    %v847 = vpop.f32.mrf.mxu0
    %v848 = vadd.f32 0.0, %v847
    %849 = vmatmul.f32.gmra.mxu0 %v780
    %v850 = vpop.f32.mrf.mxu0
    %v851 = vadd.f32 0.0, %v850
    %852 = vmatmul.f32.gmra.mxu0 %v783
    %v853 = vpop.f32.mrf.mxu0
    %v854 = vadd.f32 0.0, %v853
    %855 = vmatmul.f32.gmra.mxu0 %v786
    %v856 = vpop.f32.mrf.mxu0
    %v857 = vadd.f32 0.0, %v856
    %858 = vdwg.mxu0
    %859 = vmatpush.msra.mxu0 0.0
    %860 = vmatpush.msra.mxu0 0.0
    %861 = vmatpush.msra.mxu0 0.0
    %862 = vmatpush.msra.mxu0 0.0
    %863 = vmatpush.msra.mxu0 0.0
    %864 = vmatpush.msra.mxu0 0.0
    %865 = vmatpush.msra.mxu0 0.0
    %866 = vmatpush.msra.mxu0 0.0
    %867 = vmatpush.msra.mxu0 0.0
    %868 = vmatpush.msra.mxu0 0.0
    %869 = vmatpush.msra.mxu0 0.0
    %870 = vmatpush.msra.mxu0 0.0
    %871 = vmatpush.msra.mxu0 0.0
    %872 = vmatpush.msra.mxu0 0.0
    %873 = vmatpush.msra.mxu0 0.0
    %874 = vmatpush.msra.mxu0 %v796
    %875 = vmatmul.f32.gmra.mxu0 %v777
    %v876 = vpop.f32.mrf.mxu0
    %v877 = vadd.f32 0.0, %v876
    %878 = vmatmul.f32.gmra.mxu0 %v780
    %v879 = vpop.f32.mrf.mxu0
    %v880 = vadd.f32 0.0, %v879
    %881 = vmatmul.f32.gmra.mxu0 %v783
    %v882 = vpop.f32.mrf.mxu0
    %v883 = vadd.f32 0.0, %v882
    %884 = vmatmul.f32.gmra.mxu0 %v786
    %v885 = vpop.f32.mrf.mxu0
    %v886 = vadd.f32 0.0, %v885
    %887 = vdwg.mxu0
    %888 = vmatpush.msra.mxu0 0.0
    %889 = vmatpush.msra.mxu0 0.0
    %890 = vmatpush.msra.mxu0 0.0
    %891 = vmatpush.msra.mxu0 0.0
    %892 = vmatpush.msra.mxu0 0.0
    %893 = vmatpush.msra.mxu0 0.0
    %894 = vmatpush.msra.mxu0 0.0
    %895 = vmatpush.msra.mxu0 0.0
    %896 = vmatpush.msra.mxu0 0.0
    %897 = vmatpush.msra.mxu0 0.0
    %898 = vmatpush.msra.mxu0 0.0
    %899 = vmatpush.msra.mxu0 0.0
    %900 = vmatpush.msra.mxu0 0.0
    %901 = vmatpush.msra.mxu0 0.0
    %902 = vmatpush.msra.mxu0 0.0
    %903 = vmatpush.msra.mxu0 %v799
    %904 = vmatmul.f32.gmra.mxu0 %v777
    %v905 = vpop.f32.mrf.mxu0
    %v906 = vadd.f32 0.0, %v905
    %907 = vmatmul.f32.gmra.mxu0 %v780
    %v908 = vpop.f32.mrf.mxu0
    %v909 = vadd.f32 0.0, %v908
    %910 = vmatmul.f32.gmra.mxu0 %v783
    %v911 = vpop.f32.mrf.mxu0
    %v912 = vadd.f32 0.0, %v911
    %913 = vmatmul.f32.gmra.mxu0 %v786
    %v914 = vpop.f32.mrf.mxu0
    %v915 = vadd.f32 0.0, %v914
    %916 = vdwg.mxu0
    %v917 = vld [vmem:[#allocation8] sm:$0xff]
    %v918 = vld [vmem:[#allocation8 + $0x8] sm:$0xff]
    %v919 = vld [vmem:[#allocation8 + $0x10] sm:$0xff]
    %v920 = vld [vmem:[#allocation8 + $0x18] sm:$0xff]
    %v921 = vld [vmem:[#allocation8 + $0x20] sm:$0xff]
    %v922 = vld [vmem:[#allocation8 + $0x28] sm:$0xff]
    %v923 = vld [vmem:[#allocation8 + $0x30] sm:$0xff]
    %v924 = vld [vmem:[#allocation8 + $0x38] sm:$0xff]
    %v925 = vld [vmem:[#allocation8 + $0x40] sm:$0xff]
    %v926 = vld [vmem:[#allocation8 + $0x48] sm:$0xff]
    %v927 = vld [vmem:[#allocation8 + $0x50] sm:$0xff]
    %v928 = vld [vmem:[#allocation8 + $0x58] sm:$0xff]
    %v929 = vld [vmem:[#allocation8 + $0x60] sm:$0xff]
    %v930 = vld [vmem:[#allocation8 + $0x68] sm:$0xff]
    %v931 = vld [vmem:[#allocation8 + $0x70] sm:$0xff]
    %v932 = vld [vmem:[#allocation8 + $0x78] sm:$0xff]
    %v933 = vmul.f32 %v819, %v917
    %v934 = vmul.f32 %v848, %v918
    %v935 = vmul.f32 %v877, %v919
    %v936 = vmul.f32 %v906, %v920
    %v937 = vmul.f32 %v822, %v921
    %v938 = vmul.f32 %v851, %v922
    %v939 = vmul.f32 %v880, %v923
    %v940 = vmul.f32 %v909, %v924
    %v941 = vmul.f32 %v825, %v925
    %v942 = vmul.f32 %v854, %v926
    %v943 = vmul.f32 %v883, %v927
    %v944 = vmul.f32 %v912, %v928
    %v945 = vmul.f32 %v828, %v929
    %v946 = vmul.f32 %v857, %v930
    %v947 = vmul.f32 %v886, %v931
    %v948 = vmul.f32 %v915, %v932
    %v949 = vld [vmem:[%s23] sm:$0xff]
    %v950 = vld [vmem:[%s23 + $0x8] sm:$0xff]
    %v951 = vld [vmem:[%s23 + $0x10] sm:$0xff]
    %v952 = vld [vmem:[%s23 + $0x18] sm:$0xff]
    %v953 = vld [vmem:[%s23 + $0x20] sm:$0xff]
    %v954 = vld [vmem:[%s23 + $0x28] sm:$0xff]
    %v955 = vld [vmem:[%s23 + $0x30] sm:$0xff]
    %v956 = vld [vmem:[%s23 + $0x38] sm:$0xff]
    %v957 = vld [vmem:[%s23 + $0x40] sm:$0xff]
    %v958 = vld [vmem:[%s23 + $0x48] sm:$0xff]
    %v959 = vld [vmem:[%s23 + $0x50] sm:$0xff]
    %v960 = vld [vmem:[%s23 + $0x58] sm:$0xff]
    %v961 = vld [vmem:[%s23 + $0x60] sm:$0xff]
    %v962 = vld [vmem:[%s23 + $0x68] sm:$0xff]
    %v963 = vld [vmem:[%s23 + $0x70] sm:$0xff]
    %v964 = vld [vmem:[%s23 + $0x78] sm:$0xff]
    %v965 = vld [vmem:[%s23 + $0x80] sm:$0xff]
    %v966 = vld [vmem:[%s23 + $0x88] sm:$0xff]
    %v967 = vld [vmem:[%s23 + $0x90] sm:$0xff]
    %v968 = vld [vmem:[%s23 + $0x98] sm:$0xff]
    %v969 = vld [vmem:[%s23 + $0xa0] sm:$0xff]
    %v970 = vld [vmem:[%s23 + $0xa8] sm:$0xff]
    %v971 = vld [vmem:[%s23 + $0xb0] sm:$0xff]
    %v972 = vld [vmem:[%s23 + $0xb8] sm:$0xff]
    %v973 = vld [vmem:[%s23 + $0xc0] sm:$0xff]
    %v974 = vld [vmem:[%s23 + $0xc8] sm:$0xff]
    %v975 = vld [vmem:[%s23 + $0xd0] sm:$0xff]
    %v976 = vld [vmem:[%s23 + $0xd8] sm:$0xff]
    %v977 = vld [vmem:[%s23 + $0xe0] sm:$0xff]
    %v978 = vld [vmem:[%s23 + $0xe8] sm:$0xff]
    %v979 = vld [vmem:[%s23 + $0xf0] sm:$0xff]
    %v980 = vld [vmem:[%s23 + $0xf8] sm:$0xff]
    %v981 = vld [vmem:[%s23 + $0x100] sm:$0xff]
    %v982 = vld [vmem:[%s23 + $0x108] sm:$0xff]
    %v983 = vld [vmem:[%s23 + $0x110] sm:$0xff]
    %v984 = vld [vmem:[%s23 + $0x118] sm:$0xff]
    %v985 = vld [vmem:[%s23 + $0x120] sm:$0xff]
    %v986 = vld [vmem:[%s23 + $0x128] sm:$0xff]
    %v987 = vld [vmem:[%s23 + $0x130] sm:$0xff]
    %v988 = vld [vmem:[%s23 + $0x138] sm:$0xff]
    %v989 = vld [vmem:[%s23 + $0x140] sm:$0xff]
    %v990 = vld [vmem:[%s23 + $0x148] sm:$0xff]
    %v991 = vld [vmem:[%s23 + $0x150] sm:$0xff]
    %v992 = vld [vmem:[%s23 + $0x158] sm:$0xff]
    %v993 = vld [vmem:[%s23 + $0x160] sm:$0xff]
    %v994 = vld [vmem:[%s23 + $0x168] sm:$0xff]
    %v995 = vld [vmem:[%s23 + $0x170] sm:$0xff]
    %v996 = vld [vmem:[%s23 + $0x178] sm:$0xff]
    %v997 = vld [vmem:[%s23 + $0x180] sm:$0xff]
    %v998 = vld [vmem:[%s23 + $0x188] sm:$0xff]
    %v999 = vld [vmem:[%s23 + $0x190] sm:$0xff]
    %v1000 = vld [vmem:[%s23 + $0x198] sm:$0xff]
    %v1001 = vld [vmem:[%s23 + $0x1a0] sm:$0xff]
    %v1002 = vld [vmem:[%s23 + $0x1a8] sm:$0xff]
    %v1003 = vld [vmem:[%s23 + $0x1b0] sm:$0xff]
    %v1004 = vld [vmem:[%s23 + $0x1b8] sm:$0xff]
    %v1005 = vld [vmem:[%s23 + $0x1c0] sm:$0xff]
    %v1006 = vld [vmem:[%s23 + $0x1c8] sm:$0xff]
    %v1007 = vld [vmem:[%s23 + $0x1d0] sm:$0xff]
    %v1008 = vld [vmem:[%s23 + $0x1d8] sm:$0xff]
    %v1009 = vld [vmem:[%s23 + $0x1e0] sm:$0xff]
    %v1010 = vld [vmem:[%s23 + $0x1e8] sm:$0xff]
    %v1011 = vld [vmem:[%s23 + $0x1f0] sm:$0xff]
    %v1012 = vld [vmem:[%s23 + $0x1f8] sm:$0xff]
    %v1013 = vld [vmem:[#allocation16] sm:$0x1]
    %v1015 = vperm.slane %v1013, 0
    %1017 = vmatpush.msra.mxu0 %v964
    %1018 = vmatpush.msra.mxu0 %v963
    %1019 = vmatpush.msra.mxu0 %v962
    %1020 = vmatpush.msra.mxu0 %v961
    %1021 = vmatpush.msra.mxu0 %v960
    %1022 = vmatpush.msra.mxu0 %v959
    %1023 = vmatpush.msra.mxu0 %v958
    %1024 = vmatpush.msra.mxu0 %v957
    %1025 = vmatpush.msra.mxu0 %v956
    %1026 = vmatpush.msra.mxu0 %v955
    %1027 = vmatpush.msra.mxu0 %v954
    %1028 = vmatpush.msra.mxu0 %v953
    %1029 = vmatpush.msra.mxu0 %v952
    %1030 = vmatpush.msra.mxu0 %v951
    %1031 = vmatpush.msra.mxu0 %v950
    %1032 = vmatpush.msra.mxu0 %v949
    %1033 = vmatmul.f32.gmra.mxu0 %v933
    %v1034 = vpop.f32.mrf.mxu0
    %v1035 = vadd.f32 %v1015, %v1034
    %1036 = vmatmul.f32.gmra.mxu0 %v937
    %v1037 = vpop.f32.mrf.mxu0
    %v1038 = vadd.f32 %v1015, %v1037
    %1039 = vmatmul.f32.gmra.mxu0 %v941
    %v1040 = vpop.f32.mrf.mxu0
    %v1041 = vadd.f32 %v1015, %v1040
    %1042 = vmatmul.f32.gmra.mxu0 %v945
    %v1043 = vpop.f32.mrf.mxu0
    %v1044 = vadd.f32 %v1015, %v1043
    %1045 = vdwg.mxu0
    %1046 = vmatpush.msra.mxu0 %v980
    %1047 = vmatpush.msra.mxu0 %v979
    %1048 = vmatpush.msra.mxu0 %v978
    %1049 = vmatpush.msra.mxu0 %v977
    %1050 = vmatpush.msra.mxu0 %v976
    %1051 = vmatpush.msra.mxu0 %v975
    %1052 = vmatpush.msra.mxu0 %v974
    %1053 = vmatpush.msra.mxu0 %v973
    %1054 = vmatpush.msra.mxu0 %v972
    %1055 = vmatpush.msra.mxu0 %v971
    %1056 = vmatpush.msra.mxu0 %v970
    %1057 = vmatpush.msra.mxu0 %v969
    %1058 = vmatpush.msra.mxu0 %v968
    %1059 = vmatpush.msra.mxu0 %v967
    %1060 = vmatpush.msra.mxu0 %v966
    %1061 = vmatpush.msra.mxu0 %v965
    %1062 = vmatmul.f32.gmra.mxu0 %v934
    %v1063 = vpop.f32.mrf.mxu0
    %v1064 = vadd.f32 %v1035, %v1063
    %1065 = vmatmul.f32.gmra.mxu0 %v938
    %v1066 = vpop.f32.mrf.mxu0
    %v1067 = vadd.f32 %v1038, %v1066
    %1068 = vmatmul.f32.gmra.mxu0 %v942
    %v1069 = vpop.f32.mrf.mxu0
    %v1070 = vadd.f32 %v1041, %v1069
    %1071 = vmatmul.f32.gmra.mxu0 %v946
    %v1072 = vpop.f32.mrf.mxu0
    %v1073 = vadd.f32 %v1044, %v1072
    %1074 = vdwg.mxu0
    %1075 = vmatpush.msra.mxu0 %v996
    %1076 = vmatpush.msra.mxu0 %v995
    %1077 = vmatpush.msra.mxu0 %v994
    %1078 = vmatpush.msra.mxu0 %v993
    %1079 = vmatpush.msra.mxu0 %v992
    %1080 = vmatpush.msra.mxu0 %v991
    %1081 = vmatpush.msra.mxu0 %v990
    %1082 = vmatpush.msra.mxu0 %v989
    %1083 = vmatpush.msra.mxu0 %v988
    %1084 = vmatpush.msra.mxu0 %v987
    %1085 = vmatpush.msra.mxu0 %v986
    %1086 = vmatpush.msra.mxu0 %v985
    %1087 = vmatpush.msra.mxu0 %v984
    %1088 = vmatpush.msra.mxu0 %v983
    %1089 = vmatpush.msra.mxu0 %v982
    %1090 = vmatpush.msra.mxu0 %v981
    %1091 = vmatmul.f32.gmra.mxu0 %v935
    %v1092 = vpop.f32.mrf.mxu0
    %v1093 = vadd.f32 %v1064, %v1092
    %1094 = vmatmul.f32.gmra.mxu0 %v939
    %v1095 = vpop.f32.mrf.mxu0
    %v1096 = vadd.f32 %v1067, %v1095
    %1097 = vmatmul.f32.gmra.mxu0 %v943
    %v1098 = vpop.f32.mrf.mxu0
    %v1099 = vadd.f32 %v1070, %v1098
    %1100 = vmatmul.f32.gmra.mxu0 %v947
    %v1101 = vpop.f32.mrf.mxu0
    %v1102 = vadd.f32 %v1073, %v1101
    %1103 = vdwg.mxu0
    %1104 = vmatpush.msra.mxu0 %v1012
    %1105 = vmatpush.msra.mxu0 %v1011
    %1106 = vmatpush.msra.mxu0 %v1010
    %1107 = vmatpush.msra.mxu0 %v1009
    %1108 = vmatpush.msra.mxu0 %v1008
    %1109 = vmatpush.msra.mxu0 %v1007
    %1110 = vmatpush.msra.mxu0 %v1006
    %1111 = vmatpush.msra.mxu0 %v1005
    %1112 = vmatpush.msra.mxu0 %v1004
    %1113 = vmatpush.msra.mxu0 %v1003
    %1114 = vmatpush.msra.mxu0 %v1002
    %1115 = vmatpush.msra.mxu0 %v1001
    %1116 = vmatpush.msra.mxu0 %v1000
    %1117 = vmatpush.msra.mxu0 %v999
    %1118 = vmatpush.msra.mxu0 %v998
    %1119 = vmatpush.msra.mxu0 %v997
    %1120 = vmatmul.f32.gmra.mxu0 %v936
    %v1121 = vpop.f32.mrf.mxu0
    %v1122 = vadd.f32 %v1093, %v1121
    %1123 = vmatmul.f32.gmra.mxu0 %v940
    %v1124 = vpop.f32.mrf.mxu0
    %v1125 = vadd.f32 %v1096, %v1124
    %1126 = vmatmul.f32.gmra.mxu0 %v944
    %v1127 = vpop.f32.mrf.mxu0
    %v1128 = vadd.f32 %v1099, %v1127
    %1129 = vmatmul.f32.gmra.mxu0 %v948
    %v1130 = vpop.f32.mrf.mxu0
    %v1131 = vadd.f32 %v1102, %v1130
    %1132 = vdwg.mxu0
    %v1133 = vmax.f32 %v1122, 0.0
    %v1134 = vmax.f32 %v1125, 0.0
    %v1135 = vmax.f32 %v1128, 0.0
    %v1136 = vmax.f32 %v1131, 0.0
    %vm1137 = vcmask 523264
    %v1138 = vsel %vm1137, %v1133, 0.0
    %v1139 = vsel %vm1137, %v1134, 0.0
    %v1140 = vadd.f32 %v1138, %v1139
    %v1141 = vsel %vm1137, %v1135, 0.0
    %v1142 = vadd.f32 %v1140, %v1141
    %v1143 = vsel %vm1137, %v1136, 0.0
    %v1144 = vadd.f32 %v1142, %v1143
    %v1145 = vrot.slane %v1144, 4
    %v1146 = vadd.f32 %v1144, %v1145
    %v1147 = vrot.slane %v1146, 2
    %v1148 = vadd.f32 %v1146, %v1147
    %v1149 = vrot.slane %v1148, 1
    %v1150 = vadd.f32 %v1148, %v1149
    %v1151 = vmul.f32 %v1133, %v1133
    %v1152 = vmul.f32 %v1134, %v1134
    %v1153 = vmul.f32 %v1135, %v1135
    %v1154 = vmul.f32 %v1136, %v1136
    %v1155 = vsel %vm1137, %v1151, 0.0
    %v1156 = vsel %vm1137, %v1152, 0.0
    %v1157 = vadd.f32 %v1155, %v1156
    %v1158 = vsel %vm1137, %v1153, 0.0
    %v1159 = vadd.f32 %v1157, %v1158
    %v1160 = vsel %vm1137, %v1154, 0.0
    %v1161 = vadd.f32 %v1159, %v1160
    %v1162 = vrot.slane %v1161, 4
    %v1163 = vadd.f32 %v1161, %v1162
    %v1164 = vrot.slane %v1163, 2
    %v1165 = vadd.f32 %v1163, %v1164
    %v1166 = vrot.slane %v1165, 1
    %v1167 = vadd.f32 %v1165, %v1166
    %vm1168 = vcmask 1040384
    %v1169 = vsel %vm1168, %v1150, %v1167
    %v1170 = vld [vmem:[%s51] sm:$0xff]
    %v1171 = vld [vmem:[%s51 + $0x8] sm:$0xff]
    %v1172 = vld [vmem:[%s51 + $0x10] sm:$0xff]
    %v1173 = vld [vmem:[%s51 + $0x18] sm:$0xff]
    %v1174 = vld [vmem:[%s51 + $0x20] sm:$0xff]
    %v1175 = vld [vmem:[%s51 + $0x28] sm:$0xff]
    %v1176 = vld [vmem:[%s51 + $0x30] sm:$0xff]
    %v1177 = vld [vmem:[%s51 + $0x38] sm:$0xff]
    %v1179 = vsel %vm1137, %v1169, 0
    %1181 = vmatpush.msra.mxu0 0.0
    %1182 = vmatpush.msra.mxu0 0.0
    %1183 = vmatpush.msra.mxu0 0.0
    %1184 = vmatpush.msra.mxu0 0.0
    %1185 = vmatpush.msra.mxu0 0.0
    %1186 = vmatpush.msra.mxu0 0.0
    %1187 = vmatpush.msra.mxu0 0.0
    %1188 = vmatpush.msra.mxu0 0.0
    %1189 = vmatpush.msra.mxu0 %v1177
    %1190 = vmatpush.msra.mxu0 %v1176
    %1191 = vmatpush.msra.mxu0 %v1175
    %1192 = vmatpush.msra.mxu0 %v1174
    %1193 = vmatpush.msra.mxu0 %v1173
    %1194 = vmatpush.msra.mxu0 %v1172
    %1195 = vmatpush.msra.mxu0 %v1171
    %1196 = vmatpush.msra.mxu0 %v1170
    %1197 = vmatmul.f32.gmra.mxu0 %v1179
    %v1198 = vpop.f32.mrf.mxu0
    %v1199 = vadd.f32 0.0, %v1198
    %1200 = vdwg.mxu0
    %v1201 = vmul.f32 %v1199, 0.0078125
    %v1202 = vmul.f32 %v1201, %v1201
    %v1204 = vrot.slane %v1202, 7
    %v1206 = vsub.f32 %v1201, %v1204
    %v1207 = vadd.f32 %v1206, 1e-05
    %v1208 = vrsqrt.pop %v1207
    %v1209 = vmul.f32 %v1208, %v1207
    %v1210 = vmul.f32 %v1209, %v1208
    %v1211 = vmul.f32 0.5, %v1210
    %v1212 = vsub.f32 1.5, %v1211
    %v1213 = vmul.f32 %v1208, %v1212
    %vm1214 = vweird.f32 %v1207
    %vm1215 = vweird.f32 %v1208
    %vm1216 = vmor %vm1214, %vm1215
    %v1217 = vsel %vm1216, %v1208, %v1213
    %v1218 = vld [vmem:[#allocation25] sm:$0x1]
    %v1220 = vperm.slane %v1218, 0
    %v1222 = vmul.f32 %v1217, %v1220
    %v1223 = vperm.slane %v1201, 0
    %v1224 = vsub.f32 %v1133, %v1223
    %v1225 = vsub.f32 %v1134, %v1223
    %v1226 = vsub.f32 %v1135, %v1223
    %v1227 = vsub.f32 %v1136, %v1223
    %v1228 = vperm.slane %v1222, 1
    %v1229 = vmul.f32 %v1224, %v1228
    %v1230 = vmul.f32 %v1225, %v1228
    %v1231 = vmul.f32 %v1226, %v1228
    %v1232 = vmul.f32 %v1227, %v1228
    %v1233 = vld [vmem:[#allocation26] sm:$0x1]
    %v1235 = vperm.slane %v1233, 0
    %v1237 = vadd.f32 %v1229, %v1235
    %v1238 = vadd.f32 %v1230, %v1235
    %v1239 = vadd.f32 %v1231, %v1235
    %v1240 = vadd.f32 %v1232, %v1235
    %v1241 = vld [vmem:[#allocation17] sm:$0xff]
    %v1242 = vld [vmem:[#allocation17 + $0x8] sm:$0xff]
    %v1243 = vld [vmem:[#allocation17 + $0x10] sm:$0xff]
    %v1244 = vld [vmem:[#allocation17 + $0x18] sm:$0xff]
    %v1245 = vld [vmem:[#allocation17 + $0x20] sm:$0xff]
    %v1246 = vld [vmem:[#allocation17 + $0x28] sm:$0xff]
    %v1247 = vld [vmem:[#allocation17 + $0x30] sm:$0xff]
    %v1248 = vld [vmem:[#allocation17 + $0x38] sm:$0xff]
    %v1249 = vld [vmem:[#allocation17 + $0x40] sm:$0xff]
    %v1250 = vld [vmem:[#allocation17 + $0x48] sm:$0xff]
    %v1251 = vld [vmem:[#allocation17 + $0x50] sm:$0xff]
    %v1252 = vld [vmem:[#allocation17 + $0x58] sm:$0xff]
    %v1253 = vld [vmem:[#allocation17 + $0x60] sm:$0xff]
    %v1254 = vld [vmem:[#allocation17 + $0x68] sm:$0xff]
    %v1255 = vld [vmem:[#allocation17 + $0x70] sm:$0xff]
    %v1256 = vld [vmem:[#allocation17 + $0x78] sm:$0xff]
    %v1257 = vld [vmem:[#allocation19] sm:$0x3]
    %v1259 = vperm.slane %v1257, 0
    %v1260 = vperm.slane %v1257, 1
    %v1264 = vsel %vm1137, %v1237, 0
    %v1267 = vsel %vm1137, %v1238, 0
    %v1270 = vsel %vm1137, %v1239, 0
    %v1273 = vsel %vm1137, %v1240, 0
    %1275 = vmatpush.msra.mxu0 0.0
    %1276 = vmatpush.msra.mxu0 0.0
    %1277 = vmatpush.msra.mxu0 0.0
    %1278 = vmatpush.msra.mxu0 0.0
    %1279 = vmatpush.msra.mxu0 0.0
    %1280 = vmatpush.msra.mxu0 0.0
    %1281 = vmatpush.msra.mxu0 0.0
    %1282 = vmatpush.msra.mxu0 0.0
    %1283 = vmatpush.msra.mxu0 %v1255
    %1284 = vmatpush.msra.mxu0 %v1253
    %1285 = vmatpush.msra.mxu0 %v1251
    %1286 = vmatpush.msra.mxu0 %v1249
    %1287 = vmatpush.msra.mxu0 %v1247
    %1288 = vmatpush.msra.mxu0 %v1245
    %1289 = vmatpush.msra.mxu0 %v1243
    %1290 = vmatpush.msra.mxu0 %v1241
    %1291 = vmatmul.f32.gmra.mxu0 %v1264
    %v1292 = vpop.f32.mrf.mxu0
    %v1293 = vadd.f32 %v1259, %v1292
    %1294 = vmatmul.f32.gmra.mxu0 %v1267
    %v1295 = vpop.f32.mrf.mxu0
    %v1296 = vadd.f32 %v1259, %v1295
    %1297 = vmatmul.f32.gmra.mxu0 %v1270
    %v1298 = vpop.f32.mrf.mxu0
    %v1299 = vadd.f32 %v1259, %v1298
    %1300 = vmatmul.f32.gmra.mxu0 %v1273
    %v1301 = vpop.f32.mrf.mxu0
    %v1302 = vadd.f32 %v1259, %v1301
    %1303 = vdwg.mxu0
    %1304 = vmatpush.msra.mxu0 0.0
    %1305 = vmatpush.msra.mxu0 0.0
    %1306 = vmatpush.msra.mxu0 0.0
    %1307 = vmatpush.msra.mxu0 0.0
    %1308 = vmatpush.msra.mxu0 0.0
    %1309 = vmatpush.msra.mxu0 0.0
    %1310 = vmatpush.msra.mxu0 0.0
    %1311 = vmatpush.msra.mxu0 0.0
    %1312 = vmatpush.msra.mxu0 %v1256
    %1313 = vmatpush.msra.mxu0 %v1254
    %1314 = vmatpush.msra.mxu0 %v1252
    %1315 = vmatpush.msra.mxu0 %v1250
    %1316 = vmatpush.msra.mxu0 %v1248
    %1317 = vmatpush.msra.mxu0 %v1246
    %1318 = vmatpush.msra.mxu0 %v1244
    %1319 = vmatpush.msra.mxu0 %v1242
    %1320 = vmatmul.f32.gmra.mxu0 %v1264
    %v1321 = vpop.f32.mrf.mxu0
    %v1322 = vadd.f32 %v1260, %v1321
    %1323 = vmatmul.f32.gmra.mxu0 %v1267
    %v1324 = vpop.f32.mrf.mxu0
    %v1325 = vadd.f32 %v1260, %v1324
    %1326 = vmatmul.f32.gmra.mxu0 %v1270
    %v1327 = vpop.f32.mrf.mxu0
    %v1328 = vadd.f32 %v1260, %v1327
    %1329 = vmatmul.f32.gmra.mxu0 %v1273
    %v1330 = vpop.f32.mrf.mxu0
    %v1331 = vadd.f32 %v1260, %v1330
    %1332 = vdwg.mxu0
    %v1333 = vmax.f32 %v1293, 0.0
    %v1334 = vmax.f32 %v1322, 0.0
    %v1335 = vmax.f32 %v1296, 0.0
    %v1336 = vmax.f32 %v1325, 0.0
    %v1337 = vmax.f32 %v1299, 0.0
    %v1338 = vmax.f32 %v1328, 0.0
    %v1339 = vmax.f32 %v1302, 0.0
    %v1340 = vmax.f32 %v1331, 0.0
    %v1341 = vadd.f32 %v1333, %v1335
    %v1342 = vadd.f32 %v1341, %v1337
    %v1343 = vadd.f32 %v1342, %v1339
    %v1344 = vrot.slane %v1343, 4
    %v1345 = vadd.f32 %v1343, %v1344
    %v1346 = vrot.slane %v1345, 2
    %v1347 = vadd.f32 %v1345, %v1346
    %v1348 = vrot.slane %v1347, 1
    %v1349 = vadd.f32 %v1347, %v1348
    %v1350 = vadd.f32 %v1334, %v1336
    %v1351 = vadd.f32 %v1350, %v1338
    %v1352 = vadd.f32 %v1351, %v1340
    %v1353 = vrot.slane %v1352, 4
    %v1354 = vadd.f32 %v1352, %v1353
    %v1355 = vrot.slane %v1354, 2
    %v1356 = vadd.f32 %v1354, %v1355
    %v1357 = vrot.slane %v1356, 1
    %v1358 = vadd.f32 %v1356, %v1357
    %v1359 = vmul.f32 %v1333, %v1333
    %v1360 = vmul.f32 %v1334, %v1334
    %v1361 = vmul.f32 %v1335, %v1335
    %v1362 = vmul.f32 %v1336, %v1336
    %v1363 = vmul.f32 %v1337, %v1337
    %v1364 = vmul.f32 %v1338, %v1338
    %v1365 = vmul.f32 %v1339, %v1339
    %v1366 = vmul.f32 %v1340, %v1340
    %v1367 = vadd.f32 %v1359, %v1361
    %v1368 = vadd.f32 %v1367, %v1363
    %v1369 = vadd.f32 %v1368, %v1365
    %v1370 = vrot.slane %v1369, 4
    %v1371 = vadd.f32 %v1369, %v1370
    %v1372 = vrot.slane %v1371, 2
    %v1373 = vadd.f32 %v1371, %v1372
    %v1374 = vrot.slane %v1373, 1
    %v1375 = vadd.f32 %v1373, %v1374
    %v1376 = vadd.f32 %v1360, %v1362
    %v1377 = vadd.f32 %v1376, %v1364
    %v1378 = vadd.f32 %v1377, %v1366
    %v1379 = vrot.slane %v1378, 4
    %v1380 = vadd.f32 %v1378, %v1379
    %v1381 = vrot.slane %v1380, 2
    %v1382 = vadd.f32 %v1380, %v1381
    %v1383 = vrot.slane %v1382, 1
    %v1384 = vadd.f32 %v1382, %v1383
    %v1385 = vsel %vm1168, %v1349, %v1375
    %v1386 = vsel %vm1168, %v1358, %v1384
    %v1387 = vld [vmem:[#allocation34] sm:$0xff]
    %v1388 = vld [vmem:[#allocation34 + $0x8] sm:$0xff]
    %v1389 = vld [vmem:[#allocation34 + $0x10] sm:$0xff]
    %v1390 = vld [vmem:[#allocation34 + $0x18] sm:$0xff]
    %v1391 = vld [vmem:[#allocation34 + $0x20] sm:$0xff]
    %v1392 = vld [vmem:[#allocation34 + $0x28] sm:$0xff]
    %v1393 = vld [vmem:[#allocation34 + $0x30] sm:$0xff]
    %v1394 = vld [vmem:[#allocation34 + $0x38] sm:$0xff]
    %v1395 = vld [vmem:[#allocation34 + $0x40] sm:$0xff]
    %v1396 = vld [vmem:[#allocation34 + $0x48] sm:$0xff]
    %v1397 = vld [vmem:[#allocation34 + $0x50] sm:$0xff]
    %v1398 = vld [vmem:[#allocation34 + $0x58] sm:$0xff]
    %v1399 = vld [vmem:[#allocation34 + $0x60] sm:$0xff]
    %v1400 = vld [vmem:[#allocation34 + $0x68] sm:$0xff]
    %v1401 = vld [vmem:[#allocation34 + $0x70] sm:$0xff]
    %v1402 = vld [vmem:[#allocation34 + $0x78] sm:$0xff]
    %v1403 = vld [vmem:[#allocation34 + $0x80] sm:$0xff]
    %v1404 = vld [vmem:[#allocation34 + $0x88] sm:$0xff]
    %v1405 = vld [vmem:[#allocation34 + $0x90] sm:$0xff]
    %v1406 = vld [vmem:[#allocation34 + $0x98] sm:$0xff]
    %v1407 = vld [vmem:[#allocation34 + $0xa0] sm:$0xff]
    %v1408 = vld [vmem:[#allocation34 + $0xa8] sm:$0xff]
    %v1409 = vld [vmem:[#allocation34 + $0xb0] sm:$0xff]
    %v1410 = vld [vmem:[#allocation34 + $0xb8] sm:$0xff]
    %v1411 = vld [vmem:[#allocation34 + $0xc0] sm:$0xff]
    %v1412 = vld [vmem:[#allocation34 + $0xc8] sm:$0xff]
    %v1413 = vld [vmem:[#allocation34 + $0xd0] sm:$0xff]
    %v1414 = vld [vmem:[#allocation34 + $0xd8] sm:$0xff]
    %v1415 = vld [vmem:[#allocation34 + $0xe0] sm:$0xff]
    %v1416 = vld [vmem:[#allocation34 + $0xe8] sm:$0xff]
    %v1417 = vld [vmem:[#allocation34 + $0xf0] sm:$0xff]
    %v1418 = vld [vmem:[#allocation34 + $0xf8] sm:$0xff]
    %v1419 = vld [vmem:[#allocation34 + $0x100] sm:$0xff]
    %v1420 = vld [vmem:[#allocation34 + $0x108] sm:$0xff]
    %v1421 = vld [vmem:[#allocation34 + $0x110] sm:$0xff]
    %v1422 = vld [vmem:[#allocation34 + $0x118] sm:$0xff]
    %v1423 = vld [vmem:[#allocation34 + $0x120] sm:$0xff]
    %v1424 = vld [vmem:[#allocation34 + $0x128] sm:$0xff]
    %v1425 = vld [vmem:[#allocation34 + $0x130] sm:$0xff]
    %v1426 = vld [vmem:[#allocation34 + $0x138] sm:$0xff]
    %v1427 = vld [vmem:[#allocation34 + $0x140] sm:$0xff]
    %v1428 = vld [vmem:[#allocation34 + $0x148] sm:$0xff]
    %v1429 = vld [vmem:[#allocation34 + $0x150] sm:$0xff]
    %v1430 = vld [vmem:[#allocation34 + $0x158] sm:$0xff]
    %v1431 = vld [vmem:[#allocation34 + $0x160] sm:$0xff]
    %v1432 = vld [vmem:[#allocation34 + $0x168] sm:$0xff]
    %v1433 = vld [vmem:[#allocation34 + $0x170] sm:$0xff]
    %v1434 = vld [vmem:[#allocation34 + $0x178] sm:$0xff]
    %v1435 = vld [vmem:[#allocation34 + $0x180] sm:$0xff]
    %v1436 = vld [vmem:[#allocation34 + $0x188] sm:$0xff]
    %v1437 = vld [vmem:[#allocation34 + $0x190] sm:$0xff]
    %v1438 = vld [vmem:[#allocation34 + $0x198] sm:$0xff]
    %v1439 = vld [vmem:[#allocation34 + $0x1a0] sm:$0xff]
    %v1440 = vld [vmem:[#allocation34 + $0x1a8] sm:$0xff]
    %v1441 = vld [vmem:[#allocation34 + $0x1b0] sm:$0xff]
    %v1442 = vld [vmem:[#allocation34 + $0x1b8] sm:$0xff]
    %v1443 = vld [vmem:[#allocation34 + $0x1c0] sm:$0xff]
    %v1444 = vld [vmem:[#allocation34 + $0x1c8] sm:$0xff]
    %v1445 = vld [vmem:[#allocation34 + $0x1d0] sm:$0xff]
    %v1446 = vld [vmem:[#allocation34 + $0x1d8] sm:$0xff]
    %v1447 = vld [vmem:[#allocation34 + $0x1e0] sm:$0xff]
    %v1448 = vld [vmem:[#allocation34 + $0x1e8] sm:$0xff]
    %v1449 = vld [vmem:[#allocation34 + $0x1f0] sm:$0xff]
    %v1450 = vld [vmem:[#allocation34 + $0x1f8] sm:$0xff]
    %1451 = vmatpush.msra.mxu0 %v1417
    %1452 = vmatpush.msra.mxu0 %v1415
    %1453 = vmatpush.msra.mxu0 %v1413
    %1454 = vmatpush.msra.mxu0 %v1411
    %1455 = vmatpush.msra.mxu0 %v1409
    %1456 = vmatpush.msra.mxu0 %v1407
    %1457 = vmatpush.msra.mxu0 %v1405
    %1458 = vmatpush.msra.mxu0 %v1403
    %1459 = vmatpush.msra.mxu0 %v1401
    %1460 = vmatpush.msra.mxu0 %v1399
    %1461 = vmatpush.msra.mxu0 %v1397
    %1462 = vmatpush.msra.mxu0 %v1395
    %1463 = vmatpush.msra.mxu0 %v1393
    %1464 = vmatpush.msra.mxu0 %v1391
    %1465 = vmatpush.msra.mxu0 %v1389
    %1466 = vmatpush.msra.mxu0 %v1387
    %1467 = vmatmul.f32.gmra.mxu0 %v1385
    %v1468 = vpop.f32.mrf.mxu0
    %v1469 = vadd.f32 0.0, %v1468
    %1470 = vdwg.mxu0
    %1471 = vmatpush.msra.mxu0 %v1449
    %1472 = vmatpush.msra.mxu0 %v1447
    %1473 = vmatpush.msra.mxu0 %v1445
    %1474 = vmatpush.msra.mxu0 %v1443
    %1475 = vmatpush.msra.mxu0 %v1441
    %1476 = vmatpush.msra.mxu0 %v1439
    %1477 = vmatpush.msra.mxu0 %v1437
    %1478 = vmatpush.msra.mxu0 %v1435
    %1479 = vmatpush.msra.mxu0 %v1433
    %1480 = vmatpush.msra.mxu0 %v1431
    %1481 = vmatpush.msra.mxu0 %v1429
    %1482 = vmatpush.msra.mxu0 %v1427
    %1483 = vmatpush.msra.mxu0 %v1425
    %1484 = vmatpush.msra.mxu0 %v1423
    %1485 = vmatpush.msra.mxu0 %v1421
    %1486 = vmatpush.msra.mxu0 %v1419
    %1487 = vmatmul.f32.gmra.mxu0 %v1386
    %v1488 = vpop.f32.mrf.mxu0
    %v1489 = vadd.f32 %v1469, %v1488
    %1490 = vdwg.mxu0
    %1491 = vmatpush.msra.mxu0 %v1418
    %1492 = vmatpush.msra.mxu0 %v1416
    %1493 = vmatpush.msra.mxu0 %v1414
    %1494 = vmatpush.msra.mxu0 %v1412
    %1495 = vmatpush.msra.mxu0 %v1410
    %1496 = vmatpush.msra.mxu0 %v1408
    %1497 = vmatpush.msra.mxu0 %v1406
    %1498 = vmatpush.msra.mxu0 %v1404
    %1499 = vmatpush.msra.mxu0 %v1402
    %1500 = vmatpush.msra.mxu0 %v1400
    %1501 = vmatpush.msra.mxu0 %v1398
    %1502 = vmatpush.msra.mxu0 %v1396
    %1503 = vmatpush.msra.mxu0 %v1394
    %1504 = vmatpush.msra.mxu0 %v1392
    %1505 = vmatpush.msra.mxu0 %v1390
    %1506 = vmatpush.msra.mxu0 %v1388
    %1507 = vmatmul.f32.gmra.mxu0 %v1385
    %v1508 = vpop.f32.mrf.mxu0
    %v1509 = vadd.f32 0.0, %v1508
    %1510 = vdwg.mxu0
    %1511 = vmatpush.msra.mxu0 %v1450
    %1512 = vmatpush.msra.mxu0 %v1448
    %1513 = vmatpush.msra.mxu0 %v1446
    %1514 = vmatpush.msra.mxu0 %v1444
    %1515 = vmatpush.msra.mxu0 %v1442
    %1516 = vmatpush.msra.mxu0 %v1440
    %1517 = vmatpush.msra.mxu0 %v1438
    %1518 = vmatpush.msra.mxu0 %v1436
    %1519 = vmatpush.msra.mxu0 %v1434
    %1520 = vmatpush.msra.mxu0 %v1432
    %1521 = vmatpush.msra.mxu0 %v1430
    %1522 = vmatpush.msra.mxu0 %v1428
    %1523 = vmatpush.msra.mxu0 %v1426
    %1524 = vmatpush.msra.mxu0 %v1424
    %1525 = vmatpush.msra.mxu0 %v1422
    %1526 = vmatpush.msra.mxu0 %v1420
    %1527 = vmatmul.f32.gmra.mxu0 %v1386
    %v1528 = vpop.f32.mrf.mxu0
    %v1529 = vadd.f32 %v1509, %v1528
    %1530 = vdwg.mxu0
    %v1531 = vmul.f32 %v1489, 0.001953125
    %v1532 = vmul.f32 %v1529, 0.001953125
    %v1533 = vmul.f32 %v1531, %v1531
    %v1534 = vmul.f32 %v1532, %v1532
    %v1537 = vrot.slane %v1533, 7
    %v1538 = vrot.slane %v1534, 7
    %v1541 = vsub.f32 %v1531, %v1537
    %v1542 = vsub.f32 %v1532, %v1538
    %v1543 = vadd.f32 %v1541, 1e-05
    %v1544 = vadd.f32 %v1542, 1e-05
    %v1545 = vrsqrt.pop %v1543
    %v1546 = vmul.f32 %v1545, %v1543
    %v1547 = vmul.f32 %v1546, %v1545
    %v1548 = vmul.f32 0.5, %v1547
    %v1549 = vsub.f32 1.5, %v1548
    %v1550 = vmul.f32 %v1545, %v1549
    %vm1551 = vweird.f32 %v1543
    %vm1552 = vweird.f32 %v1545
    %vm1553 = vmor %vm1551, %vm1552
    %v1554 = vsel %vm1553, %v1545, %v1550
    %v1555 = vrsqrt.pop %v1544
    %v1556 = vmul.f32 %v1555, %v1544
    %v1557 = vmul.f32 %v1556, %v1555
    %v1558 = vmul.f32 0.5, %v1557
    %v1559 = vsub.f32 1.5, %v1558
    %v1560 = vmul.f32 %v1555, %v1559
    %vm1561 = vweird.f32 %v1544
    %vm1562 = vweird.f32 %v1555
    %vm1563 = vmor %vm1561, %vm1562
    %v1564 = vsel %vm1563, %v1555, %v1560
    %v1565 = vld [vmem:[#allocation28] sm:$0x3]
    %v1567 = vperm.slane %v1565, 0
    %v1568 = vperm.slane %v1565, 1
    %v1571 = vmul.f32 %v1554, %v1567
    %v1572 = vmul.f32 %v1564, %v1568
    %v1573 = vperm.slane %v1531, 0
    %v1574 = vperm.slane %v1532, 0
    %v1575 = vsub.f32 %v1333, %v1573
    %v1576 = vsub.f32 %v1334, %v1574
    %v1577 = vsub.f32 %v1335, %v1573
    %v1578 = vsub.f32 %v1336, %v1574
    %v1579 = vsub.f32 %v1337, %v1573
    %v1580 = vsub.f32 %v1338, %v1574
    %v1581 = vsub.f32 %v1339, %v1573
    %v1582 = vsub.f32 %v1340, %v1574
    %v1583 = vperm.slane %v1571, 1
    %v1584 = vperm.slane %v1572, 1
    %v1585 = vmul.f32 %v1575, %v1583
    %v1586 = vmul.f32 %v1576, %v1584
    %v1587 = vmul.f32 %v1577, %v1583
    %v1588 = vmul.f32 %v1578, %v1584
    %v1589 = vmul.f32 %v1579, %v1583
    %v1590 = vmul.f32 %v1580, %v1584
    %v1591 = vmul.f32 %v1581, %v1583
    %v1592 = vmul.f32 %v1582, %v1584
    %v1593 = vld [vmem:[#allocation29] sm:$0x3]
    %v1595 = vperm.slane %v1593, 0
    %v1596 = vperm.slane %v1593, 1
    %v1599 = vadd.f32 %v1585, %v1595
    %v1600 = vadd.f32 %v1586, %v1596
    %v1601 = vadd.f32 %v1587, %v1595
    %v1602 = vadd.f32 %v1588, %v1596
    %v1603 = vadd.f32 %v1589, %v1595
    %v1604 = vadd.f32 %v1590, %v1596
    %v1605 = vadd.f32 %v1591, %v1595
    %v1606 = vadd.f32 %v1592, %v1596
    %v1607 = vld [vmem:[#allocation20] sm:$0xff]
    %v1608 = vld [vmem:[#allocation20 + $0x8] sm:$0xff]
    %v1609 = vld [vmem:[#allocation20 + $0x10] sm:$0xff]
    %v1610 = vld [vmem:[#allocation20 + $0x18] sm:$0xff]
    %v1611 = vld [vmem:[#allocation20 + $0x20] sm:$0xff]
    %v1612 = vld [vmem:[#allocation20 + $0x28] sm:$0xff]
    %v1613 = vld [vmem:[#allocation20 + $0x30] sm:$0xff]
    %v1614 = vld [vmem:[#allocation20 + $0x38] sm:$0xff]
    %v1615 = vld [vmem:[#allocation20 + $0x40] sm:$0xff]
    %v1616 = vld [vmem:[#allocation20 + $0x48] sm:$0xff]
    %v1617 = vld [vmem:[#allocation20 + $0x50] sm:$0xff]
    %v1618 = vld [vmem:[#allocation20 + $0x58] sm:$0xff]
    %v1619 = vld [vmem:[#allocation20 + $0x60] sm:$0xff]
    %v1620 = vld [vmem:[#allocation20 + $0x68] sm:$0xff]
    %v1621 = vld [vmem:[#allocation20 + $0x70] sm:$0xff]
    %v1622 = vld [vmem:[#allocation20 + $0x78] sm:$0xff]
    %v1623 = vld [vmem:[#allocation20 + $0x80] sm:$0xff]
    %v1624 = vld [vmem:[#allocation20 + $0x88] sm:$0xff]
    %v1625 = vld [vmem:[#allocation20 + $0x90] sm:$0xff]
    %v1626 = vld [vmem:[#allocation20 + $0x98] sm:$0xff]
    %v1627 = vld [vmem:[#allocation20 + $0xa0] sm:$0xff]
    %v1628 = vld [vmem:[#allocation20 + $0xa8] sm:$0xff]
    %v1629 = vld [vmem:[#allocation20 + $0xb0] sm:$0xff]
    %v1630 = vld [vmem:[#allocation20 + $0xb8] sm:$0xff]
    %v1631 = vld [vmem:[#allocation20 + $0xc0] sm:$0xff]
    %v1632 = vld [vmem:[#allocation20 + $0xc8] sm:$0xff]
    %v1633 = vld [vmem:[#allocation20 + $0xd0] sm:$0xff]
    %v1634 = vld [vmem:[#allocation20 + $0xd8] sm:$0xff]
    %v1635 = vld [vmem:[#allocation20 + $0xe0] sm:$0xff]
    %v1636 = vld [vmem:[#allocation20 + $0xe8] sm:$0xff]
    %v1637 = vld [vmem:[#allocation20 + $0xf0] sm:$0xff]
    %v1638 = vld [vmem:[#allocation20 + $0xf8] sm:$0xff]
    %v1639 = vld [vmem:[#allocation20 + $0x100] sm:$0xff]
    %v1640 = vld [vmem:[#allocation20 + $0x108] sm:$0xff]
    %v1641 = vld [vmem:[#allocation20 + $0x110] sm:$0xff]
    %v1642 = vld [vmem:[#allocation20 + $0x118] sm:$0xff]
    %v1643 = vld [vmem:[#allocation20 + $0x120] sm:$0xff]
    %v1644 = vld [vmem:[#allocation20 + $0x128] sm:$0xff]
    %v1645 = vld [vmem:[#allocation20 + $0x130] sm:$0xff]
    %v1646 = vld [vmem:[#allocation20 + $0x138] sm:$0xff]
    %v1647 = vld [vmem:[#allocation20 + $0x140] sm:$0xff]
    %v1648 = vld [vmem:[#allocation20 + $0x148] sm:$0xff]
    %v1649 = vld [vmem:[#allocation20 + $0x150] sm:$0xff]
    %v1650 = vld [vmem:[#allocation20 + $0x158] sm:$0xff]
    %v1651 = vld [vmem:[#allocation20 + $0x160] sm:$0xff]
    %v1652 = vld [vmem:[#allocation20 + $0x168] sm:$0xff]
    %v1653 = vld [vmem:[#allocation20 + $0x170] sm:$0xff]
    %v1654 = vld [vmem:[#allocation20 + $0x178] sm:$0xff]
    %v1655 = vld [vmem:[#allocation20 + $0x180] sm:$0xff]
    %v1656 = vld [vmem:[#allocation20 + $0x188] sm:$0xff]
    %v1657 = vld [vmem:[#allocation20 + $0x190] sm:$0xff]
    %v1658 = vld [vmem:[#allocation20 + $0x198] sm:$0xff]
    %v1659 = vld [vmem:[#allocation20 + $0x1a0] sm:$0xff]
    %v1660 = vld [vmem:[#allocation20 + $0x1a8] sm:$0xff]
    %v1661 = vld [vmem:[#allocation20 + $0x1b0] sm:$0xff]
    %v1662 = vld [vmem:[#allocation20 + $0x1b8] sm:$0xff]
    %v1663 = vld [vmem:[#allocation20 + $0x1c0] sm:$0xff]
    %v1664 = vld [vmem:[#allocation20 + $0x1c8] sm:$0xff]
    %v1665 = vld [vmem:[#allocation20 + $0x1d0] sm:$0xff]
    %v1666 = vld [vmem:[#allocation20 + $0x1d8] sm:$0xff]
    %v1667 = vld [vmem:[#allocation20 + $0x1e0] sm:$0xff]
    %v1668 = vld [vmem:[#allocation20 + $0x1e8] sm:$0xff]
    %v1669 = vld [vmem:[#allocation20 + $0x1f0] sm:$0xff]
    %v1670 = vld [vmem:[#allocation20 + $0x1f8] sm:$0xff]
    %v1671 = vld [vmem:[#allocation20 + $0x200] sm:$0xff]
    %v1672 = vld [vmem:[#allocation20 + $0x208] sm:$0xff]
    %v1673 = vld [vmem:[#allocation20 + $0x210] sm:$0xff]
    %v1674 = vld [vmem:[#allocation20 + $0x218] sm:$0xff]
    %v1675 = vld [vmem:[#allocation20 + $0x220] sm:$0xff]
    %v1676 = vld [vmem:[#allocation20 + $0x228] sm:$0xff]
    %v1677 = vld [vmem:[#allocation20 + $0x230] sm:$0xff]
    %v1678 = vld [vmem:[#allocation20 + $0x238] sm:$0xff]
    %v1679 = vld [vmem:[#allocation20 + $0x240] sm:$0xff]
    %v1680 = vld [vmem:[#allocation20 + $0x248] sm:$0xff]
    %v1681 = vld [vmem:[#allocation20 + $0x250] sm:$0xff]
    %v1682 = vld [vmem:[#allocation20 + $0x258] sm:$0xff]
    %v1683 = vld [vmem:[#allocation20 + $0x260] sm:$0xff]
    %v1684 = vld [vmem:[#allocation20 + $0x268] sm:$0xff]
    %v1685 = vld [vmem:[#allocation20 + $0x270] sm:$0xff]
    %v1686 = vld [vmem:[#allocation20 + $0x278] sm:$0xff]
    %v1687 = vld [vmem:[#allocation20 + $0x280] sm:$0xff]
    %v1688 = vld [vmem:[#allocation20 + $0x288] sm:$0xff]
    %v1689 = vld [vmem:[#allocation20 + $0x290] sm:$0xff]
    %v1690 = vld [vmem:[#allocation20 + $0x298] sm:$0xff]
    %v1691 = vld [vmem:[#allocation20 + $0x2a0] sm:$0xff]
    %v1692 = vld [vmem:[#allocation20 + $0x2a8] sm:$0xff]
    %v1693 = vld [vmem:[#allocation20 + $0x2b0] sm:$0xff]
    %v1694 = vld [vmem:[#allocation20 + $0x2b8] sm:$0xff]
    %v1695 = vld [vmem:[#allocation20 + $0x2c0] sm:$0xff]
    %v1696 = vld [vmem:[#allocation20 + $0x2c8] sm:$0xff]
    %v1697 = vld [vmem:[#allocation20 + $0x2d0] sm:$0xff]
    %v1698 = vld [vmem:[#allocation20 + $0x2d8] sm:$0xff]
    %v1699 = vld [vmem:[#allocation20 + $0x2e0] sm:$0xff]
    %v1700 = vld [vmem:[#allocation20 + $0x2e8] sm:$0xff]
    %v1701 = vld [vmem:[#allocation20 + $0x2f0] sm:$0xff]
    %v1702 = vld [vmem:[#allocation20 + $0x2f8] sm:$0xff]
    %v1703 = vld [vmem:[#allocation20 + $0x300] sm:$0xff]
    %v1704 = vld [vmem:[#allocation20 + $0x308] sm:$0xff]
    %v1705 = vld [vmem:[#allocation20 + $0x310] sm:$0xff]
    %v1706 = vld [vmem:[#allocation20 + $0x318] sm:$0xff]
    %v1707 = vld [vmem:[#allocation20 + $0x320] sm:$0xff]
    %v1708 = vld [vmem:[#allocation20 + $0x328] sm:$0xff]
    %v1709 = vld [vmem:[#allocation20 + $0x330] sm:$0xff]
    %v1710 = vld [vmem:[#allocation20 + $0x338] sm:$0xff]
    %v1711 = vld [vmem:[#allocation20 + $0x340] sm:$0xff]
    %v1712 = vld [vmem:[#allocation20 + $0x348] sm:$0xff]
    %v1713 = vld [vmem:[#allocation20 + $0x350] sm:$0xff]
    %v1714 = vld [vmem:[#allocation20 + $0x358] sm:$0xff]
    %v1715 = vld [vmem:[#allocation20 + $0x360] sm:$0xff]
    %v1716 = vld [vmem:[#allocation20 + $0x368] sm:$0xff]
    %v1717 = vld [vmem:[#allocation20 + $0x370] sm:$0xff]
    %v1718 = vld [vmem:[#allocation20 + $0x378] sm:$0xff]
    %v1719 = vld [vmem:[#allocation20 + $0x380] sm:$0xff]
    %v1720 = vld [vmem:[#allocation20 + $0x388] sm:$0xff]
    %v1721 = vld [vmem:[#allocation20 + $0x390] sm:$0xff]
    %v1722 = vld [vmem:[#allocation20 + $0x398] sm:$0xff]
    %v1723 = vld [vmem:[#allocation20 + $0x3a0] sm:$0xff]
    %v1724 = vld [vmem:[#allocation20 + $0x3a8] sm:$0xff]
    %v1725 = vld [vmem:[#allocation20 + $0x3b0] sm:$0xff]
    %v1726 = vld [vmem:[#allocation20 + $0x3b8] sm:$0xff]
    %v1727 = vld [vmem:[#allocation20 + $0x3c0] sm:$0xff]
    %v1728 = vld [vmem:[#allocation20 + $0x3c8] sm:$0xff]
    %v1729 = vld [vmem:[#allocation20 + $0x3d0] sm:$0xff]
    %v1730 = vld [vmem:[#allocation20 + $0x3d8] sm:$0xff]
    %v1731 = vld [vmem:[#allocation20 + $0x3e0] sm:$0xff]
    %v1732 = vld [vmem:[#allocation20 + $0x3e8] sm:$0xff]
    %v1733 = vld [vmem:[#allocation20 + $0x3f0] sm:$0xff]
    %v1734 = vld [vmem:[#allocation20 + $0x3f8] sm:$0xff]
    %v1735 = vld [vmem:[%s33] sm:$0xf]
    %v1737 = vperm.slane %v1735, 0
    %v1738 = vperm.slane %v1735, 1
    %v1739 = vperm.slane %v1735, 2
    %v1740 = vperm.slane %v1735, 3
    %1745 = vmatpush.msra.mxu0 %v1667
    %1746 = vmatpush.msra.mxu0 %v1663
    %1747 = vmatpush.msra.mxu0 %v1659
    %1748 = vmatpush.msra.mxu0 %v1655
    %1749 = vmatpush.msra.mxu0 %v1651
    %1750 = vmatpush.msra.mxu0 %v1647
    %1751 = vmatpush.msra.mxu0 %v1643
    %1752 = vmatpush.msra.mxu0 %v1639
    %1753 = vmatpush.msra.mxu0 %v1635
    %1754 = vmatpush.msra.mxu0 %v1631
    %1755 = vmatpush.msra.mxu0 %v1627
    %1756 = vmatpush.msra.mxu0 %v1623
    %1757 = vmatpush.msra.mxu0 %v1619
    %1758 = vmatpush.msra.mxu0 %v1615
    %1759 = vmatpush.msra.mxu0 %v1611
    %1760 = vmatpush.msra.mxu0 %v1607
    %1761 = vmatmul.f32.gmra.mxu0 %v1599
    %v1762 = vpop.f32.mrf.mxu0
    %v1763 = vadd.f32 %v1737, %v1762
    %1764 = vmatmul.f32.gmra.mxu0 %v1601
    %v1765 = vpop.f32.mrf.mxu0
    %v1766 = vadd.f32 %v1737, %v1765
    %1767 = vmatmul.f32.gmra.mxu0 %v1603
    %v1768 = vpop.f32.mrf.mxu0
    %v1769 = vadd.f32 %v1737, %v1768
    %1770 = vmatmul.f32.gmra.mxu0 %v1605
    %v1771 = vpop.f32.mrf.mxu0
    %v1772 = vadd.f32 %v1737, %v1771
    %1773 = vdwg.mxu0
    %1774 = vmatpush.msra.mxu0 %v1731
    %1775 = vmatpush.msra.mxu0 %v1727
    %1776 = vmatpush.msra.mxu0 %v1723
    %1777 = vmatpush.msra.mxu0 %v1719
    %1778 = vmatpush.msra.mxu0 %v1715
    %1779 = vmatpush.msra.mxu0 %v1711
    %1780 = vmatpush.msra.mxu0 %v1707
    %1781 = vmatpush.msra.mxu0 %v1703
    %1782 = vmatpush.msra.mxu0 %v1699
    %1783 = vmatpush.msra.mxu0 %v1695
    %1784 = vmatpush.msra.mxu0 %v1691
    %1785 = vmatpush.msra.mxu0 %v1687
    %1786 = vmatpush.msra.mxu0 %v1683
    %1787 = vmatpush.msra.mxu0 %v1679
    %1788 = vmatpush.msra.mxu0 %v1675
    %1789 = vmatpush.msra.mxu0 %v1671
    %1790 = vmatmul.f32.gmra.mxu0 %v1600
    %v1791 = vpop.f32.mrf.mxu0
    %v1792 = vadd.f32 %v1763, %v1791
    %1793 = vmatmul.f32.gmra.mxu0 %v1602
    %v1794 = vpop.f32.mrf.mxu0
    %v1795 = vadd.f32 %v1766, %v1794
    %1796 = vmatmul.f32.gmra.mxu0 %v1604
    %v1797 = vpop.f32.mrf.mxu0
    %v1798 = vadd.f32 %v1769, %v1797
    %1799 = vmatmul.f32.gmra.mxu0 %v1606
    %v1800 = vpop.f32.mrf.mxu0
    %v1801 = vadd.f32 %v1772, %v1800
    %1802 = vdwg.mxu0
    %1803 = vmatpush.msra.mxu0 %v1668
    %1804 = vmatpush.msra.mxu0 %v1664
    %1805 = vmatpush.msra.mxu0 %v1660
    %1806 = vmatpush.msra.mxu0 %v1656
    %1807 = vmatpush.msra.mxu0 %v1652
    %1808 = vmatpush.msra.mxu0 %v1648
    %1809 = vmatpush.msra.mxu0 %v1644
    %1810 = vmatpush.msra.mxu0 %v1640
    %1811 = vmatpush.msra.mxu0 %v1636
    %1812 = vmatpush.msra.mxu0 %v1632
    %1813 = vmatpush.msra.mxu0 %v1628
    %1814 = vmatpush.msra.mxu0 %v1624
    %1815 = vmatpush.msra.mxu0 %v1620
    %1816 = vmatpush.msra.mxu0 %v1616
    %1817 = vmatpush.msra.mxu0 %v1612
    %1818 = vmatpush.msra.mxu0 %v1608
    %1819 = vmatmul.f32.gmra.mxu0 %v1599
    %v1820 = vpop.f32.mrf.mxu0
    %v1821 = vadd.f32 %v1738, %v1820
    %1822 = vmatmul.f32.gmra.mxu0 %v1601
    %v1823 = vpop.f32.mrf.mxu0
    %v1824 = vadd.f32 %v1738, %v1823
    %1825 = vmatmul.f32.gmra.mxu0 %v1603
    %v1826 = vpop.f32.mrf.mxu0
    %v1827 = vadd.f32 %v1738, %v1826
    %1828 = vmatmul.f32.gmra.mxu0 %v1605
    %v1829 = vpop.f32.mrf.mxu0
    %v1830 = vadd.f32 %v1738, %v1829
    %1831 = vdwg.mxu0
    %1832 = vmatpush.msra.mxu0 %v1732
    %1833 = vmatpush.msra.mxu0 %v1728
    %1834 = vmatpush.msra.mxu0 %v1724
    %1835 = vmatpush.msra.mxu0 %v1720
    %1836 = vmatpush.msra.mxu0 %v1716
    %1837 = vmatpush.msra.mxu0 %v1712
    %1838 = vmatpush.msra.mxu0 %v1708
    %1839 = vmatpush.msra.mxu0 %v1704
    %1840 = vmatpush.msra.mxu0 %v1700
    %1841 = vmatpush.msra.mxu0 %v1696
    %1842 = vmatpush.msra.mxu0 %v1692
    %1843 = vmatpush.msra.mxu0 %v1688
    %1844 = vmatpush.msra.mxu0 %v1684
    %1845 = vmatpush.msra.mxu0 %v1680
    %1846 = vmatpush.msra.mxu0 %v1676
    %1847 = vmatpush.msra.mxu0 %v1672
    %1848 = vmatmul.f32.gmra.mxu0 %v1600
    %v1849 = vpop.f32.mrf.mxu0
    %v1850 = vadd.f32 %v1821, %v1849
    %1851 = vmatmul.f32.gmra.mxu0 %v1602
    %v1852 = vpop.f32.mrf.mxu0
    %v1853 = vadd.f32 %v1824, %v1852
    %1854 = vmatmul.f32.gmra.mxu0 %v1604
    %v1855 = vpop.f32.mrf.mxu0
    %v1856 = vadd.f32 %v1827, %v1855
    %1857 = vmatmul.f32.gmra.mxu0 %v1606
    %v1858 = vpop.f32.mrf.mxu0
    %v1859 = vadd.f32 %v1830, %v1858
    %1860 = vdwg.mxu0
    %1861 = vmatpush.msra.mxu0 %v1669
    %1862 = vmatpush.msra.mxu0 %v1665
    %1863 = vmatpush.msra.mxu0 %v1661
    %1864 = vmatpush.msra.mxu0 %v1657
    %1865 = vmatpush.msra.mxu0 %v1653
    %1866 = vmatpush.msra.mxu0 %v1649
    %1867 = vmatpush.msra.mxu0 %v1645
    %1868 = vmatpush.msra.mxu0 %v1641
    %1869 = vmatpush.msra.mxu0 %v1637
    %1870 = vmatpush.msra.mxu0 %v1633
    %1871 = vmatpush.msra.mxu0 %v1629
    %1872 = vmatpush.msra.mxu0 %v1625
    %1873 = vmatpush.msra.mxu0 %v1621
    %1874 = vmatpush.msra.mxu0 %v1617
    %1875 = vmatpush.msra.mxu0 %v1613
    %1876 = vmatpush.msra.mxu0 %v1609
    %1877 = vmatmul.f32.gmra.mxu0 %v1599
    %v1878 = vpop.f32.mrf.mxu0
    %v1879 = vadd.f32 %v1739, %v1878
    %1880 = vmatmul.f32.gmra.mxu0 %v1601
    %v1881 = vpop.f32.mrf.mxu0
    %v1882 = vadd.f32 %v1739, %v1881
    %1883 = vmatmul.f32.gmra.mxu0 %v1603
    %v1884 = vpop.f32.mrf.mxu0
    %v1885 = vadd.f32 %v1739, %v1884
    %1886 = vmatmul.f32.gmra.mxu0 %v1605
    %v1887 = vpop.f32.mrf.mxu0
    %v1888 = vadd.f32 %v1739, %v1887
    %1889 = vdwg.mxu0
    %1890 = vmatpush.msra.mxu0 %v1733
    %1891 = vmatpush.msra.mxu0 %v1729
    %1892 = vmatpush.msra.mxu0 %v1725
    %1893 = vmatpush.msra.mxu0 %v1721
    %1894 = vmatpush.msra.mxu0 %v1717
    %1895 = vmatpush.msra.mxu0 %v1713
    %1896 = vmatpush.msra.mxu0 %v1709
    %1897 = vmatpush.msra.mxu0 %v1705
    %1898 = vmatpush.msra.mxu0 %v1701
    %1899 = vmatpush.msra.mxu0 %v1697
    %1900 = vmatpush.msra.mxu0 %v1693
    %1901 = vmatpush.msra.mxu0 %v1689
    %1902 = vmatpush.msra.mxu0 %v1685
    %1903 = vmatpush.msra.mxu0 %v1681
    %1904 = vmatpush.msra.mxu0 %v1677
    %1905 = vmatpush.msra.mxu0 %v1673
    %1906 = vmatmul.f32.gmra.mxu0 %v1600
    %v1907 = vpop.f32.mrf.mxu0
    %v1908 = vadd.f32 %v1879, %v1907
    %1909 = vmatmul.f32.gmra.mxu0 %v1602
    %v1910 = vpop.f32.mrf.mxu0
    %v1911 = vadd.f32 %v1882, %v1910
    %1912 = vmatmul.f32.gmra.mxu0 %v1604
    %v1913 = vpop.f32.mrf.mxu0
    %v1914 = vadd.f32 %v1885, %v1913
    %1915 = vmatmul.f32.gmra.mxu0 %v1606
    %v1916 = vpop.f32.mrf.mxu0
    %v1917 = vadd.f32 %v1888, %v1916
    %1918 = vdwg.mxu0
    %1919 = vmatpush.msra.mxu0 %v1670
    %1920 = vmatpush.msra.mxu0 %v1666
    %1921 = vmatpush.msra.mxu0 %v1662
    %1922 = vmatpush.msra.mxu0 %v1658
    %1923 = vmatpush.msra.mxu0 %v1654
    %1924 = vmatpush.msra.mxu0 %v1650
    %1925 = vmatpush.msra.mxu0 %v1646
    %1926 = vmatpush.msra.mxu0 %v1642
    %1927 = vmatpush.msra.mxu0 %v1638
    %1928 = vmatpush.msra.mxu0 %v1634
    %1929 = vmatpush.msra.mxu0 %v1630
    %1930 = vmatpush.msra.mxu0 %v1626
    %1931 = vmatpush.msra.mxu0 %v1622
    %1932 = vmatpush.msra.mxu0 %v1618
    %1933 = vmatpush.msra.mxu0 %v1614
    %1934 = vmatpush.msra.mxu0 %v1610
    %1935 = vmatmul.f32.gmra.mxu0 %v1599
    %v1936 = vpop.f32.mrf.mxu0
    %v1937 = vadd.f32 %v1740, %v1936
    %1938 = vmatmul.f32.gmra.mxu0 %v1601
    %v1939 = vpop.f32.mrf.mxu0
    %v1940 = vadd.f32 %v1740, %v1939
    %1941 = vmatmul.f32.gmra.mxu0 %v1603
    %v1942 = vpop.f32.mrf.mxu0
    %v1943 = vadd.f32 %v1740, %v1942
    %1944 = vmatmul.f32.gmra.mxu0 %v1605
    %v1945 = vpop.f32.mrf.mxu0
    %v1946 = vadd.f32 %v1740, %v1945
    %1947 = vdwg.mxu0
    %1948 = vmatpush.msra.mxu0 %v1734
    %1949 = vmatpush.msra.mxu0 %v1730
    %1950 = vmatpush.msra.mxu0 %v1726
    %1951 = vmatpush.msra.mxu0 %v1722
    %1952 = vmatpush.msra.mxu0 %v1718
    %1953 = vmatpush.msra.mxu0 %v1714
    %1954 = vmatpush.msra.mxu0 %v1710
    %1955 = vmatpush.msra.mxu0 %v1706
    %1956 = vmatpush.msra.mxu0 %v1702
    %1957 = vmatpush.msra.mxu0 %v1698
    %1958 = vmatpush.msra.mxu0 %v1694
    %1959 = vmatpush.msra.mxu0 %v1690
    %1960 = vmatpush.msra.mxu0 %v1686
    %1961 = vmatpush.msra.mxu0 %v1682
    %1962 = vmatpush.msra.mxu0 %v1678
    %1963 = vmatpush.msra.mxu0 %v1674
    %1964 = vmatmul.f32.gmra.mxu0 %v1600
    %v1965 = vpop.f32.mrf.mxu0
    %v1966 = vadd.f32 %v1937, %v1965
    %1967 = vmatmul.f32.gmra.mxu0 %v1602
    %v1968 = vpop.f32.mrf.mxu0
    %v1969 = vadd.f32 %v1940, %v1968
    %1970 = vmatmul.f32.gmra.mxu0 %v1604
    %v1971 = vpop.f32.mrf.mxu0
    %v1972 = vadd.f32 %v1943, %v1971
    %1973 = vmatmul.f32.gmra.mxu0 %v1606
    %v1974 = vpop.f32.mrf.mxu0
    %v1975 = vadd.f32 %v1946, %v1974
    %1976 = vdwg.mxu0
    %v1977 = vmax.f32 %v1792, 0.0
    %v1978 = vmax.f32 %v1850, 0.0
    %v1979 = vmax.f32 %v1908, 0.0
    %v1980 = vmax.f32 %v1966, 0.0
    %v1981 = vmax.f32 %v1795, 0.0
    %v1982 = vmax.f32 %v1853, 0.0
    %v1983 = vmax.f32 %v1911, 0.0
    %v1984 = vmax.f32 %v1969, 0.0
    %v1985 = vmax.f32 %v1798, 0.0
    %v1986 = vmax.f32 %v1856, 0.0
    %v1987 = vmax.f32 %v1914, 0.0
    %v1988 = vmax.f32 %v1972, 0.0
    %v1989 = vmax.f32 %v1801, 0.0
    %v1990 = vmax.f32 %v1859, 0.0
    %v1991 = vmax.f32 %v1917, 0.0
    %v1992 = vmax.f32 %v1975, 0.0
    %v1993 = vadd.f32 %v1977, %v1981
    %v1994 = vadd.f32 %v1993, %v1985
    %v1995 = vadd.f32 %v1994, %v1989
    %v1996 = vrot.slane %v1995, 4
    %v1997 = vadd.f32 %v1995, %v1996
    %v1998 = vrot.slane %v1997, 2
    %v1999 = vadd.f32 %v1997, %v1998
    %v2000 = vrot.slane %v1999, 1
    %v2001 = vadd.f32 %v1999, %v2000
    %v2002 = vadd.f32 %v1978, %v1982
    %v2003 = vadd.f32 %v2002, %v1986
    %v2004 = vadd.f32 %v2003, %v1990
    %v2005 = vrot.slane %v2004, 4
    %v2006 = vadd.f32 %v2004, %v2005
    %v2007 = vrot.slane %v2006, 2
    %v2008 = vadd.f32 %v2006, %v2007
    %v2009 = vrot.slane %v2008, 1
    %v2010 = vadd.f32 %v2008, %v2009
    %v2011 = vadd.f32 %v1979, %v1983
    %v2012 = vadd.f32 %v2011, %v1987
    %v2013 = vadd.f32 %v2012, %v1991
    %v2014 = vrot.slane %v2013, 4
    %v2015 = vadd.f32 %v2013, %v2014
    %v2016 = vrot.slane %v2015, 2
    %v2017 = vadd.f32 %v2015, %v2016
    %v2018 = vrot.slane %v2017, 1
    %v2019 = vadd.f32 %v2017, %v2018
    %v2020 = vadd.f32 %v1980, %v1984
    %v2021 = vadd.f32 %v2020, %v1988
    %v2022 = vadd.f32 %v2021, %v1992
    %v2023 = vrot.slane %v2022, 4
    %v2024 = vadd.f32 %v2022, %v2023
    %v2025 = vrot.slane %v2024, 2
    %v2026 = vadd.f32 %v2024, %v2025
    %v2027 = vrot.slane %v2026, 1
    %v2028 = vadd.f32 %v2026, %v2027
    %v2029 = vmul.f32 %v1977, %v1977
    %v2030 = vmul.f32 %v1978, %v1978
    %v2031 = vmul.f32 %v1979, %v1979
    %v2032 = vmul.f32 %v1980, %v1980
    %v2033 = vmul.f32 %v1981, %v1981
    %v2034 = vmul.f32 %v1982, %v1982
    %v2035 = vmul.f32 %v1983, %v1983
    %v2036 = vmul.f32 %v1984, %v1984
    %v2037 = vmul.f32 %v1985, %v1985
    %v2038 = vmul.f32 %v1986, %v1986
    %v2039 = vmul.f32 %v1987, %v1987
    %v2040 = vmul.f32 %v1988, %v1988
    %v2041 = vmul.f32 %v1989, %v1989
    %v2042 = vmul.f32 %v1990, %v1990
    %v2043 = vmul.f32 %v1991, %v1991
    %v2044 = vmul.f32 %v1992, %v1992
    %v2045 = vadd.f32 %v2029, %v2033
    %v2046 = vadd.f32 %v2045, %v2037
    %v2047 = vadd.f32 %v2046, %v2041
    %v2048 = vrot.slane %v2047, 4
    %v2049 = vadd.f32 %v2047, %v2048
    %v2050 = vrot.slane %v2049, 2
    %v2051 = vadd.f32 %v2049, %v2050
    %v2052 = vrot.slane %v2051, 1
    %v2053 = vadd.f32 %v2051, %v2052
    %v2054 = vadd.f32 %v2030, %v2034
    %v2055 = vadd.f32 %v2054, %v2038
    %v2056 = vadd.f32 %v2055, %v2042
    %v2057 = vrot.slane %v2056, 4
    %v2058 = vadd.f32 %v2056, %v2057
    %v2059 = vrot.slane %v2058, 2
    %v2060 = vadd.f32 %v2058, %v2059
    %v2061 = vrot.slane %v2060, 1
    %v2062 = vadd.f32 %v2060, %v2061
    %v2063 = vadd.f32 %v2031, %v2035
    %v2064 = vadd.f32 %v2063, %v2039
    %v2065 = vadd.f32 %v2064, %v2043
    %v2066 = vrot.slane %v2065, 4
    %v2067 = vadd.f32 %v2065, %v2066
    %v2068 = vrot.slane %v2067, 2
    %v2069 = vadd.f32 %v2067, %v2068
    %v2070 = vrot.slane %v2069, 1
    %v2071 = vadd.f32 %v2069, %v2070
    %v2072 = vadd.f32 %v2032, %v2036
    %v2073 = vadd.f32 %v2072, %v2040
    %v2074 = vadd.f32 %v2073, %v2044
    %v2075 = vrot.slane %v2074, 4
    %v2076 = vadd.f32 %v2074, %v2075
    %v2077 = vrot.slane %v2076, 2
    %v2078 = vadd.f32 %v2076, %v2077
    %v2079 = vrot.slane %v2078, 1
    %v2080 = vadd.f32 %v2078, %v2079
    %v2081 = vsel %vm1168, %v2001, %v2053
    %v2082 = vsel %vm1168, %v2010, %v2062
    %v2083 = vsel %vm1168, %v2019, %v2071
    %v2084 = vsel %vm1168, %v2028, %v2080
    %v2085 = vld [vmem:[#allocation35] sm:$0xff]
    %v2086 = vld [vmem:[#allocation35 + $0x8] sm:$0xff]
    %v2087 = vld [vmem:[#allocation35 + $0x10] sm:$0xff]
    %v2088 = vld [vmem:[#allocation35 + $0x18] sm:$0xff]
    %v2089 = vld [vmem:[#allocation35 + $0x20] sm:$0xff]
    %v2090 = vld [vmem:[#allocation35 + $0x28] sm:$0xff]
    %v2091 = vld [vmem:[#allocation35 + $0x30] sm:$0xff]
    %v2092 = vld [vmem:[#allocation35 + $0x38] sm:$0xff]
    %v2093 = vld [vmem:[#allocation35 + $0x40] sm:$0xff]
    %v2094 = vld [vmem:[#allocation35 + $0x48] sm:$0xff]
    %v2095 = vld [vmem:[#allocation35 + $0x50] sm:$0xff]
    %v2096 = vld [vmem:[#allocation35 + $0x58] sm:$0xff]
    %v2097 = vld [vmem:[#allocation35 + $0x60] sm:$0xff]
    %v2098 = vld [vmem:[#allocation35 + $0x68] sm:$0xff]
    %v2099 = vld [vmem:[#allocation35 + $0x70] sm:$0xff]
    %v2100 = vld [vmem:[#allocation35 + $0x78] sm:$0xff]
    %v2101 = vld [vmem:[#allocation35 + $0x80] sm:$0xff]
    %v2102 = vld [vmem:[#allocation35 + $0x88] sm:$0xff]
    %v2103 = vld [vmem:[#allocation35 + $0x90] sm:$0xff]
    %v2104 = vld [vmem:[#allocation35 + $0x98] sm:$0xff]
    %v2105 = vld [vmem:[#allocation35 + $0xa0] sm:$0xff]
    %v2106 = vld [vmem:[#allocation35 + $0xa8] sm:$0xff]
    %v2107 = vld [vmem:[#allocation35 + $0xb0] sm:$0xff]
    %v2108 = vld [vmem:[#allocation35 + $0xb8] sm:$0xff]
    %v2109 = vld [vmem:[#allocation35 + $0xc0] sm:$0xff]
    %v2110 = vld [vmem:[#allocation35 + $0xc8] sm:$0xff]
    %v2111 = vld [vmem:[#allocation35 + $0xd0] sm:$0xff]
    %v2112 = vld [vmem:[#allocation35 + $0xd8] sm:$0xff]
    %v2113 = vld [vmem:[#allocation35 + $0xe0] sm:$0xff]
    %v2114 = vld [vmem:[#allocation35 + $0xe8] sm:$0xff]
    %v2115 = vld [vmem:[#allocation35 + $0xf0] sm:$0xff]
    %v2116 = vld [vmem:[#allocation35 + $0xf8] sm:$0xff]
    %v2117 = vld [vmem:[#allocation35 + $0x100] sm:$0xff]
    %v2118 = vld [vmem:[#allocation35 + $0x108] sm:$0xff]
    %v2119 = vld [vmem:[#allocation35 + $0x110] sm:$0xff]
    %v2120 = vld [vmem:[#allocation35 + $0x118] sm:$0xff]
    %v2121 = vld [vmem:[#allocation35 + $0x120] sm:$0xff]
    %v2122 = vld [vmem:[#allocation35 + $0x128] sm:$0xff]
    %v2123 = vld [vmem:[#allocation35 + $0x130] sm:$0xff]
    %v2124 = vld [vmem:[#allocation35 + $0x138] sm:$0xff]
    %v2125 = vld [vmem:[#allocation35 + $0x140] sm:$0xff]
    %v2126 = vld [vmem:[#allocation35 + $0x148] sm:$0xff]
    %v2127 = vld [vmem:[#allocation35 + $0x150] sm:$0xff]
    %v2128 = vld [vmem:[#allocation35 + $0x158] sm:$0xff]
    %v2129 = vld [vmem:[#allocation35 + $0x160] sm:$0xff]
    %v2130 = vld [vmem:[#allocation35 + $0x168] sm:$0xff]
    %v2131 = vld [vmem:[#allocation35 + $0x170] sm:$0xff]
    %v2132 = vld [vmem:[#allocation35 + $0x178] sm:$0xff]
    %v2133 = vld [vmem:[#allocation35 + $0x180] sm:$0xff]
    %v2134 = vld [vmem:[#allocation35 + $0x188] sm:$0xff]
    %v2135 = vld [vmem:[#allocation35 + $0x190] sm:$0xff]
    %v2136 = vld [vmem:[#allocation35 + $0x198] sm:$0xff]
    %v2137 = vld [vmem:[#allocation35 + $0x1a0] sm:$0xff]
    %v2138 = vld [vmem:[#allocation35 + $0x1a8] sm:$0xff]
    %v2139 = vld [vmem:[#allocation35 + $0x1b0] sm:$0xff]
    %v2140 = vld [vmem:[#allocation35 + $0x1b8] sm:$0xff]
    %v2141 = vld [vmem:[#allocation35 + $0x1c0] sm:$0xff]
    %v2142 = vld [vmem:[#allocation35 + $0x1c8] sm:$0xff]
    %v2143 = vld [vmem:[#allocation35 + $0x1d0] sm:$0xff]
    %v2144 = vld [vmem:[#allocation35 + $0x1d8] sm:$0xff]
    %v2145 = vld [vmem:[#allocation35 + $0x1e0] sm:$0xff]
    %v2146 = vld [vmem:[#allocation35 + $0x1e8] sm:$0xff]
    %v2147 = vld [vmem:[#allocation35 + $0x1f0] sm:$0xff]
    %v2148 = vld [vmem:[#allocation35 + $0x1f8] sm:$0xff]
    %v2149 = vld [vmem:[#allocation35 + $0x200] sm:$0xff]
    %v2150 = vld [vmem:[#allocation35 + $0x208] sm:$0xff]
    %v2151 = vld [vmem:[#allocation35 + $0x210] sm:$0xff]
    %v2152 = vld [vmem:[#allocation35 + $0x218] sm:$0xff]
    %v2153 = vld [vmem:[#allocation35 + $0x220] sm:$0xff]
    %v2154 = vld [vmem:[#allocation35 + $0x228] sm:$0xff]
    %v2155 = vld [vmem:[#allocation35 + $0x230] sm:$0xff]
    %v2156 = vld [vmem:[#allocation35 + $0x238] sm:$0xff]
    %v2157 = vld [vmem:[#allocation35 + $0x240] sm:$0xff]
    %v2158 = vld [vmem:[#allocation35 + $0x248] sm:$0xff]
    %v2159 = vld [vmem:[#allocation35 + $0x250] sm:$0xff]
    %v2160 = vld [vmem:[#allocation35 + $0x258] sm:$0xff]
    %v2161 = vld [vmem:[#allocation35 + $0x260] sm:$0xff]
    %v2162 = vld [vmem:[#allocation35 + $0x268] sm:$0xff]
    %v2163 = vld [vmem:[#allocation35 + $0x270] sm:$0xff]
    %v2164 = vld [vmem:[#allocation35 + $0x278] sm:$0xff]
    %v2165 = vld [vmem:[#allocation35 + $0x280] sm:$0xff]
    %v2166 = vld [vmem:[#allocation35 + $0x288] sm:$0xff]
    %v2167 = vld [vmem:[#allocation35 + $0x290] sm:$0xff]
    %v2168 = vld [vmem:[#allocation35 + $0x298] sm:$0xff]
    %v2169 = vld [vmem:[#allocation35 + $0x2a0] sm:$0xff]
    %v2170 = vld [vmem:[#allocation35 + $0x2a8] sm:$0xff]
    %v2171 = vld [vmem:[#allocation35 + $0x2b0] sm:$0xff]
    %v2172 = vld [vmem:[#allocation35 + $0x2b8] sm:$0xff]
    %v2173 = vld [vmem:[#allocation35 + $0x2c0] sm:$0xff]
    %v2174 = vld [vmem:[#allocation35 + $0x2c8] sm:$0xff]
    %v2175 = vld [vmem:[#allocation35 + $0x2d0] sm:$0xff]
    %v2176 = vld [vmem:[#allocation35 + $0x2d8] sm:$0xff]
    %v2177 = vld [vmem:[#allocation35 + $0x2e0] sm:$0xff]
    %v2178 = vld [vmem:[#allocation35 + $0x2e8] sm:$0xff]
    %v2179 = vld [vmem:[#allocation35 + $0x2f0] sm:$0xff]
    %v2180 = vld [vmem:[#allocation35 + $0x2f8] sm:$0xff]
    %v2181 = vld [vmem:[#allocation35 + $0x300] sm:$0xff]
    %v2182 = vld [vmem:[#allocation35 + $0x308] sm:$0xff]
    %v2183 = vld [vmem:[#allocation35 + $0x310] sm:$0xff]
    %v2184 = vld [vmem:[#allocation35 + $0x318] sm:$0xff]
    %v2185 = vld [vmem:[#allocation35 + $0x320] sm:$0xff]
    %v2186 = vld [vmem:[#allocation35 + $0x328] sm:$0xff]
    %v2187 = vld [vmem:[#allocation35 + $0x330] sm:$0xff]
    %v2188 = vld [vmem:[#allocation35 + $0x338] sm:$0xff]
    %v2189 = vld [vmem:[#allocation35 + $0x340] sm:$0xff]
    %v2190 = vld [vmem:[#allocation35 + $0x348] sm:$0xff]
    %v2191 = vld [vmem:[#allocation35 + $0x350] sm:$0xff]
    %v2192 = vld [vmem:[#allocation35 + $0x358] sm:$0xff]
    %v2193 = vld [vmem:[#allocation35 + $0x360] sm:$0xff]
    %v2194 = vld [vmem:[#allocation35 + $0x368] sm:$0xff]
    %v2195 = vld [vmem:[#allocation35 + $0x370] sm:$0xff]
    %v2196 = vld [vmem:[#allocation35 + $0x378] sm:$0xff]
    %v2197 = vld [vmem:[#allocation35 + $0x380] sm:$0xff]
    %v2198 = vld [vmem:[#allocation35 + $0x388] sm:$0xff]
    %v2199 = vld [vmem:[#allocation35 + $0x390] sm:$0xff]
    %v2200 = vld [vmem:[#allocation35 + $0x398] sm:$0xff]
    %v2201 = vld [vmem:[#allocation35 + $0x3a0] sm:$0xff]
    %v2202 = vld [vmem:[#allocation35 + $0x3a8] sm:$0xff]
    %v2203 = vld [vmem:[#allocation35 + $0x3b0] sm:$0xff]
    %v2204 = vld [vmem:[#allocation35 + $0x3b8] sm:$0xff]
    %v2205 = vld [vmem:[#allocation35 + $0x3c0] sm:$0xff]
    %v2206 = vld [vmem:[#allocation35 + $0x3c8] sm:$0xff]
    %v2207 = vld [vmem:[#allocation35 + $0x3d0] sm:$0xff]
    %v2208 = vld [vmem:[#allocation35 + $0x3d8] sm:$0xff]
    %v2209 = vld [vmem:[#allocation35 + $0x3e0] sm:$0xff]
    %v2210 = vld [vmem:[#allocation35 + $0x3e8] sm:$0xff]
    %v2211 = vld [vmem:[#allocation35 + $0x3f0] sm:$0xff]
    %v2212 = vld [vmem:[#allocation35 + $0x3f8] sm:$0xff]
    %v2213 = vld [vmem:[#allocation35 + $0x400] sm:$0xff]
    %v2214 = vld [vmem:[#allocation35 + $0x408] sm:$0xff]
    %v2215 = vld [vmem:[#allocation35 + $0x410] sm:$0xff]
    %v2216 = vld [vmem:[#allocation35 + $0x418] sm:$0xff]
    %v2217 = vld [vmem:[#allocation35 + $0x420] sm:$0xff]
    %v2218 = vld [vmem:[#allocation35 + $0x428] sm:$0xff]
    %v2219 = vld [vmem:[#allocation35 + $0x430] sm:$0xff]
    %v2220 = vld [vmem:[#allocation35 + $0x438] sm:$0xff]
    %v2221 = vld [vmem:[#allocation35 + $0x440] sm:$0xff]
    %v2222 = vld [vmem:[#allocation35 + $0x448] sm:$0xff]
    %v2223 = vld [vmem:[#allocation35 + $0x450] sm:$0xff]
    %v2224 = vld [vmem:[#allocation35 + $0x458] sm:$0xff]
    %v2225 = vld [vmem:[#allocation35 + $0x460] sm:$0xff]
    %v2226 = vld [vmem:[#allocation35 + $0x468] sm:$0xff]
    %v2227 = vld [vmem:[#allocation35 + $0x470] sm:$0xff]
    %v2228 = vld [vmem:[#allocation35 + $0x478] sm:$0xff]
    %v2229 = vld [vmem:[#allocation35 + $0x480] sm:$0xff]
    %v2230 = vld [vmem:[#allocation35 + $0x488] sm:$0xff]
    %v2231 = vld [vmem:[#allocation35 + $0x490] sm:$0xff]
    %v2232 = vld [vmem:[#allocation35 + $0x498] sm:$0xff]
    %v2233 = vld [vmem:[#allocation35 + $0x4a0] sm:$0xff]
    %v2234 = vld [vmem:[#allocation35 + $0x4a8] sm:$0xff]
    %v2235 = vld [vmem:[#allocation35 + $0x4b0] sm:$0xff]
    %v2236 = vld [vmem:[#allocation35 + $0x4b8] sm:$0xff]
    %v2237 = vld [vmem:[#allocation35 + $0x4c0] sm:$0xff]
    %v2238 = vld [vmem:[#allocation35 + $0x4c8] sm:$0xff]
    %v2239 = vld [vmem:[#allocation35 + $0x4d0] sm:$0xff]
    %v2240 = vld [vmem:[#allocation35 + $0x4d8] sm:$0xff]
    %v2241 = vld [vmem:[#allocation35 + $0x4e0] sm:$0xff]
    %v2242 = vld [vmem:[#allocation35 + $0x4e8] sm:$0xff]
    %v2243 = vld [vmem:[#allocation35 + $0x4f0] sm:$0xff]
    %v2244 = vld [vmem:[#allocation35 + $0x4f8] sm:$0xff]
    %v2245 = vld [vmem:[#allocation35 + $0x500] sm:$0xff]
    %v2246 = vld [vmem:[#allocation35 + $0x508] sm:$0xff]
    %v2247 = vld [vmem:[#allocation35 + $0x510] sm:$0xff]
    %v2248 = vld [vmem:[#allocation35 + $0x518] sm:$0xff]
    %v2249 = vld [vmem:[#allocation35 + $0x520] sm:$0xff]
    %v2250 = vld [vmem:[#allocation35 + $0x528] sm:$0xff]
    %v2251 = vld [vmem:[#allocation35 + $0x530] sm:$0xff]
    %v2252 = vld [vmem:[#allocation35 + $0x538] sm:$0xff]
    %v2253 = vld [vmem:[#allocation35 + $0x540] sm:$0xff]
    %v2254 = vld [vmem:[#allocation35 + $0x548] sm:$0xff]
    %v2255 = vld [vmem:[#allocation35 + $0x550] sm:$0xff]
    %v2256 = vld [vmem:[#allocation35 + $0x558] sm:$0xff]
    %v2257 = vld [vmem:[#allocation35 + $0x560] sm:$0xff]
    %v2258 = vld [vmem:[#allocation35 + $0x568] sm:$0xff]
    %v2259 = vld [vmem:[#allocation35 + $0x570] sm:$0xff]
    %v2260 = vld [vmem:[#allocation35 + $0x578] sm:$0xff]
    %v2261 = vld [vmem:[#allocation35 + $0x580] sm:$0xff]
    %v2262 = vld [vmem:[#allocation35 + $0x588] sm:$0xff]
    %v2263 = vld [vmem:[#allocation35 + $0x590] sm:$0xff]
    %v2264 = vld [vmem:[#allocation35 + $0x598] sm:$0xff]
    %v2265 = vld [vmem:[#allocation35 + $0x5a0] sm:$0xff]
    %v2266 = vld [vmem:[#allocation35 + $0x5a8] sm:$0xff]
    %v2267 = vld [vmem:[#allocation35 + $0x5b0] sm:$0xff]
    %v2268 = vld [vmem:[#allocation35 + $0x5b8] sm:$0xff]
    %v2269 = vld [vmem:[#allocation35 + $0x5c0] sm:$0xff]
    %v2270 = vld [vmem:[#allocation35 + $0x5c8] sm:$0xff]
    %v2271 = vld [vmem:[#allocation35 + $0x5d0] sm:$0xff]
    %v2272 = vld [vmem:[#allocation35 + $0x5d8] sm:$0xff]
    %v2273 = vld [vmem:[#allocation35 + $0x5e0] sm:$0xff]
    %v2274 = vld [vmem:[#allocation35 + $0x5e8] sm:$0xff]
    %v2275 = vld [vmem:[#allocation35 + $0x5f0] sm:$0xff]
    %v2276 = vld [vmem:[#allocation35 + $0x5f8] sm:$0xff]
    %v2277 = vld [vmem:[#allocation35 + $0x600] sm:$0xff]
    %v2278 = vld [vmem:[#allocation35 + $0x608] sm:$0xff]
    %v2279 = vld [vmem:[#allocation35 + $0x610] sm:$0xff]
    %v2280 = vld [vmem:[#allocation35 + $0x618] sm:$0xff]
    %v2281 = vld [vmem:[#allocation35 + $0x620] sm:$0xff]
    %v2282 = vld [vmem:[#allocation35 + $0x628] sm:$0xff]
    %v2283 = vld [vmem:[#allocation35 + $0x630] sm:$0xff]
    %v2284 = vld [vmem:[#allocation35 + $0x638] sm:$0xff]
    %v2285 = vld [vmem:[#allocation35 + $0x640] sm:$0xff]
    %v2286 = vld [vmem:[#allocation35 + $0x648] sm:$0xff]
    %v2287 = vld [vmem:[#allocation35 + $0x650] sm:$0xff]
    %v2288 = vld [vmem:[#allocation35 + $0x658] sm:$0xff]
    %v2289 = vld [vmem:[#allocation35 + $0x660] sm:$0xff]
    %v2290 = vld [vmem:[#allocation35 + $0x668] sm:$0xff]
    %v2291 = vld [vmem:[#allocation35 + $0x670] sm:$0xff]
    %v2292 = vld [vmem:[#allocation35 + $0x678] sm:$0xff]
    %v2293 = vld [vmem:[#allocation35 + $0x680] sm:$0xff]
    %v2294 = vld [vmem:[#allocation35 + $0x688] sm:$0xff]
    %v2295 = vld [vmem:[#allocation35 + $0x690] sm:$0xff]
    %v2296 = vld [vmem:[#allocation35 + $0x698] sm:$0xff]
    %v2297 = vld [vmem:[#allocation35 + $0x6a0] sm:$0xff]
    %v2298 = vld [vmem:[#allocation35 + $0x6a8] sm:$0xff]
    %v2299 = vld [vmem:[#allocation35 + $0x6b0] sm:$0xff]
    %v2300 = vld [vmem:[#allocation35 + $0x6b8] sm:$0xff]
    %v2301 = vld [vmem:[#allocation35 + $0x6c0] sm:$0xff]
    %v2302 = vld [vmem:[#allocation35 + $0x6c8] sm:$0xff]
    %v2303 = vld [vmem:[#allocation35 + $0x6d0] sm:$0xff]
    %v2304 = vld [vmem:[#allocation35 + $0x6d8] sm:$0xff]
    %v2305 = vld [vmem:[#allocation35 + $0x6e0] sm:$0xff]
    %v2306 = vld [vmem:[#allocation35 + $0x6e8] sm:$0xff]
    %v2307 = vld [vmem:[#allocation35 + $0x6f0] sm:$0xff]
    %v2308 = vld [vmem:[#allocation35 + $0x6f8] sm:$0xff]
    %v2309 = vld [vmem:[#allocation35 + $0x700] sm:$0xff]
    %v2310 = vld [vmem:[#allocation35 + $0x708] sm:$0xff]
    %v2311 = vld [vmem:[#allocation35 + $0x710] sm:$0xff]
    %v2312 = vld [vmem:[#allocation35 + $0x718] sm:$0xff]
    %v2313 = vld [vmem:[#allocation35 + $0x720] sm:$0xff]
    %v2314 = vld [vmem:[#allocation35 + $0x728] sm:$0xff]
    %v2315 = vld [vmem:[#allocation35 + $0x730] sm:$0xff]
    %v2316 = vld [vmem:[#allocation35 + $0x738] sm:$0xff]
    %v2317 = vld [vmem:[#allocation35 + $0x740] sm:$0xff]
    %v2318 = vld [vmem:[#allocation35 + $0x748] sm:$0xff]
    %v2319 = vld [vmem:[#allocation35 + $0x750] sm:$0xff]
    %v2320 = vld [vmem:[#allocation35 + $0x758] sm:$0xff]
    %v2321 = vld [vmem:[#allocation35 + $0x760] sm:$0xff]
    %v2322 = vld [vmem:[#allocation35 + $0x768] sm:$0xff]
    %v2323 = vld [vmem:[#allocation35 + $0x770] sm:$0xff]
    %v2324 = vld [vmem:[#allocation35 + $0x778] sm:$0xff]
    %v2325 = vld [vmem:[#allocation35 + $0x780] sm:$0xff]
    %v2326 = vld [vmem:[#allocation35 + $0x788] sm:$0xff]
    %v2327 = vld [vmem:[#allocation35 + $0x790] sm:$0xff]
    %v2328 = vld [vmem:[#allocation35 + $0x798] sm:$0xff]
    %v2329 = vld [vmem:[#allocation35 + $0x7a0] sm:$0xff]
    %v2330 = vld [vmem:[#allocation35 + $0x7a8] sm:$0xff]
    %v2331 = vld [vmem:[#allocation35 + $0x7b0] sm:$0xff]
    %v2332 = vld [vmem:[#allocation35 + $0x7b8] sm:$0xff]
    %v2333 = vld [vmem:[#allocation35 + $0x7c0] sm:$0xff]
    %v2334 = vld [vmem:[#allocation35 + $0x7c8] sm:$0xff]
    %v2335 = vld [vmem:[#allocation35 + $0x7d0] sm:$0xff]
    %v2336 = vld [vmem:[#allocation35 + $0x7d8] sm:$0xff]
    %v2337 = vld [vmem:[#allocation35 + $0x7e0] sm:$0xff]
    %v2338 = vld [vmem:[#allocation35 + $0x7e8] sm:$0xff]
    %v2339 = vld [vmem:[#allocation35 + $0x7f0] sm:$0xff]
    %v2340 = vld [vmem:[#allocation35 + $0x7f8] sm:$0xff]
    %2341 = vmatpush.msra.mxu0 %v2145
    %2342 = vmatpush.msra.mxu0 %v2141
    %2343 = vmatpush.msra.mxu0 %v2137
    %2344 = vmatpush.msra.mxu0 %v2133
    %2345 = vmatpush.msra.mxu0 %v2129
    %2346 = vmatpush.msra.mxu0 %v2125
    %2347 = vmatpush.msra.mxu0 %v2121
    %2348 = vmatpush.msra.mxu0 %v2117
    %2349 = vmatpush.msra.mxu0 %v2113
    %2350 = vmatpush.msra.mxu0 %v2109
    %2351 = vmatpush.msra.mxu0 %v2105
    %2352 = vmatpush.msra.mxu0 %v2101
    %2353 = vmatpush.msra.mxu0 %v2097
    %2354 = vmatpush.msra.mxu0 %v2093
    %2355 = vmatpush.msra.mxu0 %v2089
    %2356 = vmatpush.msra.mxu0 %v2085
    %2357 = vmatmul.f32.gmra.mxu0 %v2081
    %v2358 = vpop.f32.mrf.mxu0
    %v2359 = vadd.f32 0.0, %v2358
    %2360 = vdwg.mxu0
    %2361 = vmatpush.msra.mxu0 %v2209
    %2362 = vmatpush.msra.mxu0 %v2205
    %2363 = vmatpush.msra.mxu0 %v2201
    %2364 = vmatpush.msra.mxu0 %v2197
    %2365 = vmatpush.msra.mxu0 %v2193
    %2366 = vmatpush.msra.mxu0 %v2189
    %2367 = vmatpush.msra.mxu0 %v2185
    %2368 = vmatpush.msra.mxu0 %v2181
    %2369 = vmatpush.msra.mxu0 %v2177
    %2370 = vmatpush.msra.mxu0 %v2173
    %2371 = vmatpush.msra.mxu0 %v2169
    %2372 = vmatpush.msra.mxu0 %v2165
    %2373 = vmatpush.msra.mxu0 %v2161
    %2374 = vmatpush.msra.mxu0 %v2157
    %2375 = vmatpush.msra.mxu0 %v2153
    %2376 = vmatpush.msra.mxu0 %v2149
    %2377 = vmatmul.f32.gmra.mxu0 %v2082
    %v2378 = vpop.f32.mrf.mxu0
    %v2379 = vadd.f32 %v2359, %v2378
    %2380 = vdwg.mxu0
    %2381 = vmatpush.msra.mxu0 %v2273
    %2382 = vmatpush.msra.mxu0 %v2269
    %2383 = vmatpush.msra.mxu0 %v2265
    %2384 = vmatpush.msra.mxu0 %v2261
    %2385 = vmatpush.msra.mxu0 %v2257
    %2386 = vmatpush.msra.mxu0 %v2253
    %2387 = vmatpush.msra.mxu0 %v2249
    %2388 = vmatpush.msra.mxu0 %v2245
    %2389 = vmatpush.msra.mxu0 %v2241
    %2390 = vmatpush.msra.mxu0 %v2237
    %2391 = vmatpush.msra.mxu0 %v2233
    %2392 = vmatpush.msra.mxu0 %v2229
    %2393 = vmatpush.msra.mxu0 %v2225
    %2394 = vmatpush.msra.mxu0 %v2221
    %2395 = vmatpush.msra.mxu0 %v2217
    %2396 = vmatpush.msra.mxu0 %v2213
    %2397 = vmatmul.f32.gmra.mxu0 %v2083
    %v2398 = vpop.f32.mrf.mxu0
    %v2399 = vadd.f32 %v2379, %v2398
    %2400 = vdwg.mxu0
    %2401 = vmatpush.msra.mxu0 %v2337
    %2402 = vmatpush.msra.mxu0 %v2333
    %2403 = vmatpush.msra.mxu0 %v2329
    %2404 = vmatpush.msra.mxu0 %v2325
    %2405 = vmatpush.msra.mxu0 %v2321
    %2406 = vmatpush.msra.mxu0 %v2317
    %2407 = vmatpush.msra.mxu0 %v2313
    %2408 = vmatpush.msra.mxu0 %v2309
    %2409 = vmatpush.msra.mxu0 %v2305
    %2410 = vmatpush.msra.mxu0 %v2301
    %2411 = vmatpush.msra.mxu0 %v2297
    %2412 = vmatpush.msra.mxu0 %v2293
    %2413 = vmatpush.msra.mxu0 %v2289
    %2414 = vmatpush.msra.mxu0 %v2285
    %2415 = vmatpush.msra.mxu0 %v2281
    %2416 = vmatpush.msra.mxu0 %v2277
    %2417 = vmatmul.f32.gmra.mxu0 %v2084
    %v2418 = vpop.f32.mrf.mxu0
    %v2419 = vadd.f32 %v2399, %v2418
    %2420 = vdwg.mxu0
    %2421 = vmatpush.msra.mxu0 %v2146
    %2422 = vmatpush.msra.mxu0 %v2142
    %2423 = vmatpush.msra.mxu0 %v2138
    %2424 = vmatpush.msra.mxu0 %v2134
    %2425 = vmatpush.msra.mxu0 %v2130
    %2426 = vmatpush.msra.mxu0 %v2126
    %2427 = vmatpush.msra.mxu0 %v2122
    %2428 = vmatpush.msra.mxu0 %v2118
    %2429 = vmatpush.msra.mxu0 %v2114
    %2430 = vmatpush.msra.mxu0 %v2110
    %2431 = vmatpush.msra.mxu0 %v2106
    %2432 = vmatpush.msra.mxu0 %v2102
    %2433 = vmatpush.msra.mxu0 %v2098
    %2434 = vmatpush.msra.mxu0 %v2094
    %2435 = vmatpush.msra.mxu0 %v2090
    %2436 = vmatpush.msra.mxu0 %v2086
    %2437 = vmatmul.f32.gmra.mxu0 %v2081
    %v2438 = vpop.f32.mrf.mxu0
    %v2439 = vadd.f32 0.0, %v2438
    %2440 = vdwg.mxu0
    %2441 = vmatpush.msra.mxu0 %v2210
    %2442 = vmatpush.msra.mxu0 %v2206
    %2443 = vmatpush.msra.mxu0 %v2202
    %2444 = vmatpush.msra.mxu0 %v2198
    %2445 = vmatpush.msra.mxu0 %v2194
    %2446 = vmatpush.msra.mxu0 %v2190
    %2447 = vmatpush.msra.mxu0 %v2186
    %2448 = vmatpush.msra.mxu0 %v2182
    %2449 = vmatpush.msra.mxu0 %v2178
    %2450 = vmatpush.msra.mxu0 %v2174
    %2451 = vmatpush.msra.mxu0 %v2170
    %2452 = vmatpush.msra.mxu0 %v2166
    %2453 = vmatpush.msra.mxu0 %v2162
    %2454 = vmatpush.msra.mxu0 %v2158
    %2455 = vmatpush.msra.mxu0 %v2154
    %2456 = vmatpush.msra.mxu0 %v2150
    %2457 = vmatmul.f32.gmra.mxu0 %v2082
    %v2458 = vpop.f32.mrf.mxu0
    %v2459 = vadd.f32 %v2439, %v2458
    %2460 = vdwg.mxu0
    %2461 = vmatpush.msra.mxu0 %v2274
    %2462 = vmatpush.msra.mxu0 %v2270
    %2463 = vmatpush.msra.mxu0 %v2266
    %2464 = vmatpush.msra.mxu0 %v2262
    %2465 = vmatpush.msra.mxu0 %v2258
    %2466 = vmatpush.msra.mxu0 %v2254
    %2467 = vmatpush.msra.mxu0 %v2250
    %2468 = vmatpush.msra.mxu0 %v2246
    %2469 = vmatpush.msra.mxu0 %v2242
    %2470 = vmatpush.msra.mxu0 %v2238
    %2471 = vmatpush.msra.mxu0 %v2234
    %2472 = vmatpush.msra.mxu0 %v2230
    %2473 = vmatpush.msra.mxu0 %v2226
    %2474 = vmatpush.msra.mxu0 %v2222
    %2475 = vmatpush.msra.mxu0 %v2218
    %2476 = vmatpush.msra.mxu0 %v2214
    %2477 = vmatmul.f32.gmra.mxu0 %v2083
    %v2478 = vpop.f32.mrf.mxu0
    %v2479 = vadd.f32 %v2459, %v2478
    %2480 = vdwg.mxu0
    %2481 = vmatpush.msra.mxu0 %v2338
    %2482 = vmatpush.msra.mxu0 %v2334
    %2483 = vmatpush.msra.mxu0 %v2330
    %2484 = vmatpush.msra.mxu0 %v2326
    %2485 = vmatpush.msra.mxu0 %v2322
    %2486 = vmatpush.msra.mxu0 %v2318
    %2487 = vmatpush.msra.mxu0 %v2314
    %2488 = vmatpush.msra.mxu0 %v2310
    %2489 = vmatpush.msra.mxu0 %v2306
    %2490 = vmatpush.msra.mxu0 %v2302
    %2491 = vmatpush.msra.mxu0 %v2298
    %2492 = vmatpush.msra.mxu0 %v2294
    %2493 = vmatpush.msra.mxu0 %v2290
    %2494 = vmatpush.msra.mxu0 %v2286
    %2495 = vmatpush.msra.mxu0 %v2282
    %2496 = vmatpush.msra.mxu0 %v2278
    %2497 = vmatmul.f32.gmra.mxu0 %v2084
    %v2498 = vpop.f32.mrf.mxu0
    %v2499 = vadd.f32 %v2479, %v2498
    %2500 = vdwg.mxu0
    %2501 = vmatpush.msra.mxu0 %v2147
    %2502 = vmatpush.msra.mxu0 %v2143
    %2503 = vmatpush.msra.mxu0 %v2139
    %2504 = vmatpush.msra.mxu0 %v2135
    %2505 = vmatpush.msra.mxu0 %v2131
    %2506 = vmatpush.msra.mxu0 %v2127
    %2507 = vmatpush.msra.mxu0 %v2123
    %2508 = vmatpush.msra.mxu0 %v2119
    %2509 = vmatpush.msra.mxu0 %v2115
    %2510 = vmatpush.msra.mxu0 %v2111
    %2511 = vmatpush.msra.mxu0 %v2107
    %2512 = vmatpush.msra.mxu0 %v2103
    %2513 = vmatpush.msra.mxu0 %v2099
    %2514 = vmatpush.msra.mxu0 %v2095
    %2515 = vmatpush.msra.mxu0 %v2091
    %2516 = vmatpush.msra.mxu0 %v2087
    %2517 = vmatmul.f32.gmra.mxu0 %v2081
    %v2518 = vpop.f32.mrf.mxu0
    %v2519 = vadd.f32 0.0, %v2518
    %2520 = vdwg.mxu0
    %2521 = vmatpush.msra.mxu0 %v2211
    %2522 = vmatpush.msra.mxu0 %v2207
    %2523 = vmatpush.msra.mxu0 %v2203
    %2524 = vmatpush.msra.mxu0 %v2199
    %2525 = vmatpush.msra.mxu0 %v2195
    %2526 = vmatpush.msra.mxu0 %v2191
    %2527 = vmatpush.msra.mxu0 %v2187
    %2528 = vmatpush.msra.mxu0 %v2183
    %2529 = vmatpush.msra.mxu0 %v2179
    %2530 = vmatpush.msra.mxu0 %v2175
    %2531 = vmatpush.msra.mxu0 %v2171
    %2532 = vmatpush.msra.mxu0 %v2167
    %2533 = vmatpush.msra.mxu0 %v2163
    %2534 = vmatpush.msra.mxu0 %v2159
    %2535 = vmatpush.msra.mxu0 %v2155
    %2536 = vmatpush.msra.mxu0 %v2151
    %2537 = vmatmul.f32.gmra.mxu0 %v2082
    %v2538 = vpop.f32.mrf.mxu0
    %v2539 = vadd.f32 %v2519, %v2538
    %2540 = vdwg.mxu0
    %2541 = vmatpush.msra.mxu0 %v2275
    %2542 = vmatpush.msra.mxu0 %v2271
    %2543 = vmatpush.msra.mxu0 %v2267
    %2544 = vmatpush.msra.mxu0 %v2263
    %2545 = vmatpush.msra.mxu0 %v2259
    %2546 = vmatpush.msra.mxu0 %v2255
    %2547 = vmatpush.msra.mxu0 %v2251
    %2548 = vmatpush.msra.mxu0 %v2247
    %2549 = vmatpush.msra.mxu0 %v2243
    %2550 = vmatpush.msra.mxu0 %v2239
    %2551 = vmatpush.msra.mxu0 %v2235
    %2552 = vmatpush.msra.mxu0 %v2231
    %2553 = vmatpush.msra.mxu0 %v2227
    %2554 = vmatpush.msra.mxu0 %v2223
    %2555 = vmatpush.msra.mxu0 %v2219
    %2556 = vmatpush.msra.mxu0 %v2215
    %2557 = vmatmul.f32.gmra.mxu0 %v2083
    %v2558 = vpop.f32.mrf.mxu0
    %v2559 = vadd.f32 %v2539, %v2558
    %2560 = vdwg.mxu0
    %2561 = vmatpush.msra.mxu0 %v2339
    %2562 = vmatpush.msra.mxu0 %v2335
    %2563 = vmatpush.msra.mxu0 %v2331
    %2564 = vmatpush.msra.mxu0 %v2327
    %2565 = vmatpush.msra.mxu0 %v2323
    %2566 = vmatpush.msra.mxu0 %v2319
    %2567 = vmatpush.msra.mxu0 %v2315
    %2568 = vmatpush.msra.mxu0 %v2311
    %2569 = vmatpush.msra.mxu0 %v2307
    %2570 = vmatpush.msra.mxu0 %v2303
    %2571 = vmatpush.msra.mxu0 %v2299
    %2572 = vmatpush.msra.mxu0 %v2295
    %2573 = vmatpush.msra.mxu0 %v2291
    %2574 = vmatpush.msra.mxu0 %v2287
    %2575 = vmatpush.msra.mxu0 %v2283
    %2576 = vmatpush.msra.mxu0 %v2279
    %2577 = vmatmul.f32.gmra.mxu0 %v2084
    %v2578 = vpop.f32.mrf.mxu0
    %v2579 = vadd.f32 %v2559, %v2578
    %2580 = vdwg.mxu0
    %2581 = vmatpush.msra.mxu0 %v2148
    %2582 = vmatpush.msra.mxu0 %v2144
    %2583 = vmatpush.msra.mxu0 %v2140
    %2584 = vmatpush.msra.mxu0 %v2136
    %2585 = vmatpush.msra.mxu0 %v2132
    %2586 = vmatpush.msra.mxu0 %v2128
    %2587 = vmatpush.msra.mxu0 %v2124
    %2588 = vmatpush.msra.mxu0 %v2120
    %2589 = vmatpush.msra.mxu0 %v2116
    %2590 = vmatpush.msra.mxu0 %v2112
    %2591 = vmatpush.msra.mxu0 %v2108
    %2592 = vmatpush.msra.mxu0 %v2104
    %2593 = vmatpush.msra.mxu0 %v2100
    %2594 = vmatpush.msra.mxu0 %v2096
    %2595 = vmatpush.msra.mxu0 %v2092
    %2596 = vmatpush.msra.mxu0 %v2088
    %2597 = vmatmul.f32.gmra.mxu0 %v2081
    %v2598 = vpop.f32.mrf.mxu0
    %v2599 = vadd.f32 0.0, %v2598
    %2600 = vdwg.mxu0
    %2601 = vmatpush.msra.mxu0 %v2212
    %2602 = vmatpush.msra.mxu0 %v2208
    %2603 = vmatpush.msra.mxu0 %v2204
    %2604 = vmatpush.msra.mxu0 %v2200
    %2605 = vmatpush.msra.mxu0 %v2196
    %2606 = vmatpush.msra.mxu0 %v2192
    %2607 = vmatpush.msra.mxu0 %v2188
    %2608 = vmatpush.msra.mxu0 %v2184
    %2609 = vmatpush.msra.mxu0 %v2180
    %2610 = vmatpush.msra.mxu0 %v2176
    %2611 = vmatpush.msra.mxu0 %v2172
    %2612 = vmatpush.msra.mxu0 %v2168
    %2613 = vmatpush.msra.mxu0 %v2164
    %2614 = vmatpush.msra.mxu0 %v2160
    %2615 = vmatpush.msra.mxu0 %v2156
    %2616 = vmatpush.msra.mxu0 %v2152
    %2617 = vmatmul.f32.gmra.mxu0 %v2082
    %v2618 = vpop.f32.mrf.mxu0
    %v2619 = vadd.f32 %v2599, %v2618
    %2620 = vdwg.mxu0
    %2621 = vmatpush.msra.mxu0 %v2276
    %2622 = vmatpush.msra.mxu0 %v2272
    %2623 = vmatpush.msra.mxu0 %v2268
    %2624 = vmatpush.msra.mxu0 %v2264
    %2625 = vmatpush.msra.mxu0 %v2260
    %2626 = vmatpush.msra.mxu0 %v2256
    %2627 = vmatpush.msra.mxu0 %v2252
    %2628 = vmatpush.msra.mxu0 %v2248
    %2629 = vmatpush.msra.mxu0 %v2244
    %2630 = vmatpush.msra.mxu0 %v2240
    %2631 = vmatpush.msra.mxu0 %v2236
    %2632 = vmatpush.msra.mxu0 %v2232
    %2633 = vmatpush.msra.mxu0 %v2228
    %2634 = vmatpush.msra.mxu0 %v2224
    %2635 = vmatpush.msra.mxu0 %v2220
    %2636 = vmatpush.msra.mxu0 %v2216
    %2637 = vmatmul.f32.gmra.mxu0 %v2083
    %v2638 = vpop.f32.mrf.mxu0
    %v2639 = vadd.f32 %v2619, %v2638
    %2640 = vdwg.mxu0
    %2641 = vmatpush.msra.mxu0 %v2340
    %2642 = vmatpush.msra.mxu0 %v2336
    %2643 = vmatpush.msra.mxu0 %v2332
    %2644 = vmatpush.msra.mxu0 %v2328
    %2645 = vmatpush.msra.mxu0 %v2324
    %2646 = vmatpush.msra.mxu0 %v2320
    %2647 = vmatpush.msra.mxu0 %v2316
    %2648 = vmatpush.msra.mxu0 %v2312
    %2649 = vmatpush.msra.mxu0 %v2308
    %2650 = vmatpush.msra.mxu0 %v2304
    %2651 = vmatpush.msra.mxu0 %v2300
    %2652 = vmatpush.msra.mxu0 %v2296
    %2653 = vmatpush.msra.mxu0 %v2292
    %2654 = vmatpush.msra.mxu0 %v2288
    %2655 = vmatpush.msra.mxu0 %v2284
    %2656 = vmatpush.msra.mxu0 %v2280
    %2657 = vmatmul.f32.gmra.mxu0 %v2084
    %v2658 = vpop.f32.mrf.mxu0
    %v2659 = vadd.f32 %v2639, %v2658
    %2660 = vdwg.mxu0
    %v2661 = vmul.f32 %v2419, 0.00048828125
    %v2662 = vmul.f32 %v2499, 0.00048828125
    %v2663 = vmul.f32 %v2579, 0.00048828125
    %v2664 = vmul.f32 %v2659, 0.00048828125
    %v2665 = vmul.f32 %v2661, %v2661
    %v2666 = vmul.f32 %v2662, %v2662
    %v2667 = vmul.f32 %v2663, %v2663
    %v2668 = vmul.f32 %v2664, %v2664
    %v2673 = vrot.slane %v2665, 7
    %v2674 = vrot.slane %v2666, 7
    %v2675 = vrot.slane %v2667, 7
    %v2676 = vrot.slane %v2668, 7
    %v2681 = vsub.f32 %v2661, %v2673
    %v2682 = vsub.f32 %v2662, %v2674
    %v2683 = vsub.f32 %v2663, %v2675
    %v2684 = vsub.f32 %v2664, %v2676
    %v2685 = vadd.f32 %v2681, 1e-05
    %v2686 = vadd.f32 %v2682, 1e-05
    %v2687 = vadd.f32 %v2683, 1e-05
    %v2688 = vadd.f32 %v2684, 1e-05
    %v2689 = vrsqrt.pop %v2685
    %v2690 = vmul.f32 %v2689, %v2685
    %v2691 = vmul.f32 %v2690, %v2689
    %v2692 = vmul.f32 0.5, %v2691
    %v2693 = vsub.f32 1.5, %v2692
    %v2694 = vmul.f32 %v2689, %v2693
    %vm2695 = vweird.f32 %v2685
    %vm2696 = vweird.f32 %v2689
    %vm2697 = vmor %vm2695, %vm2696
    %v2698 = vsel %vm2697, %v2689, %v2694
    %v2699 = vrsqrt.pop %v2686
    %v2700 = vmul.f32 %v2699, %v2686
    %v2701 = vmul.f32 %v2700, %v2699
    %v2702 = vmul.f32 0.5, %v2701
    %v2703 = vsub.f32 1.5, %v2702
    %v2704 = vmul.f32 %v2699, %v2703
    %vm2705 = vweird.f32 %v2686
    %vm2706 = vweird.f32 %v2699
    %vm2707 = vmor %vm2705, %vm2706
    %v2708 = vsel %vm2707, %v2699, %v2704
    %v2709 = vrsqrt.pop %v2687
    %v2710 = vmul.f32 %v2709, %v2687
    %v2711 = vmul.f32 %v2710, %v2709
    %v2712 = vmul.f32 0.5, %v2711
    %v2713 = vsub.f32 1.5, %v2712
    %v2714 = vmul.f32 %v2709, %v2713
    %vm2715 = vweird.f32 %v2687
    %vm2716 = vweird.f32 %v2709
    %vm2717 = vmor %vm2715, %vm2716
    %v2718 = vsel %vm2717, %v2709, %v2714
    %v2719 = vrsqrt.pop %v2688
    %v2720 = vmul.f32 %v2719, %v2688
    %v2721 = vmul.f32 %v2720, %v2719
    %v2722 = vmul.f32 0.5, %v2721
    %v2723 = vsub.f32 1.5, %v2722
    %v2724 = vmul.f32 %v2719, %v2723
    %vm2725 = vweird.f32 %v2688
    %vm2726 = vweird.f32 %v2719
    %vm2727 = vmor %vm2725, %vm2726
    %v2728 = vsel %vm2727, %v2719, %v2724
    %v2729 = vld [vmem:[#allocation31] sm:$0xf]
    %v2731 = vperm.slane %v2729, 0
    %v2732 = vperm.slane %v2729, 1
    %v2733 = vperm.slane %v2729, 2
    %v2734 = vperm.slane %v2729, 3
    %v2739 = vmul.f32 %v2698, %v2731
    %v2740 = vmul.f32 %v2708, %v2732
    %v2741 = vmul.f32 %v2718, %v2733
    %v2742 = vmul.f32 %v2728, %v2734
    %v2743 = vperm.slane %v2661, 0
    %v2744 = vperm.slane %v2662, 0
    %v2745 = vperm.slane %v2663, 0
    %v2746 = vperm.slane %v2664, 0
    %v2747 = vsub.f32 %v1977, %v2743
    %v2748 = vsub.f32 %v1978, %v2744
    %v2749 = vsub.f32 %v1979, %v2745
    %v2750 = vsub.f32 %v1980, %v2746
    %v2751 = vsub.f32 %v1981, %v2743
    %v2752 = vsub.f32 %v1982, %v2744
    %v2753 = vsub.f32 %v1983, %v2745
    %v2754 = vsub.f32 %v1984, %v2746
    %v2755 = vsub.f32 %v1985, %v2743
    %v2756 = vsub.f32 %v1986, %v2744
    %v2757 = vsub.f32 %v1987, %v2745
    %v2758 = vsub.f32 %v1988, %v2746
    %v2759 = vsub.f32 %v1989, %v2743
    %v2760 = vsub.f32 %v1990, %v2744
    %v2761 = vsub.f32 %v1991, %v2745
    %v2762 = vsub.f32 %v1992, %v2746
    %v2763 = vperm.slane %v2739, 1
    %v2764 = vperm.slane %v2740, 1
    %v2765 = vperm.slane %v2741, 1
    %v2766 = vperm.slane %v2742, 1
    %v2767 = vmul.f32 %v2747, %v2763
    %v2768 = vmul.f32 %v2748, %v2764
    %v2769 = vmul.f32 %v2749, %v2765
    %v2770 = vmul.f32 %v2750, %v2766
    %v2771 = vmul.f32 %v2751, %v2763
    %v2772 = vmul.f32 %v2752, %v2764
    %v2773 = vmul.f32 %v2753, %v2765
    %v2774 = vmul.f32 %v2754, %v2766
    %v2775 = vmul.f32 %v2755, %v2763
    %v2776 = vmul.f32 %v2756, %v2764
    %v2777 = vmul.f32 %v2757, %v2765
    %v2778 = vmul.f32 %v2758, %v2766
    %v2779 = vmul.f32 %v2759, %v2763
    %v2780 = vmul.f32 %v2760, %v2764
    %v2781 = vmul.f32 %v2761, %v2765
    %v2782 = vmul.f32 %v2762, %v2766
    %v2783 = vld [vmem:[#allocation32] sm:$0xf]
    %v2785 = vperm.slane %v2783, 0
    %v2786 = vperm.slane %v2783, 1
    %v2787 = vperm.slane %v2783, 2
    %v2788 = vperm.slane %v2783, 3
    %v2793 = vadd.f32 %v2767, %v2785
    %v2794 = vadd.f32 %v2768, %v2786
    %v2795 = vadd.f32 %v2769, %v2787
    %v2796 = vadd.f32 %v2770, %v2788
    %v2797 = vadd.f32 %v2771, %v2785
    %v2798 = vadd.f32 %v2772, %v2786
    %v2799 = vadd.f32 %v2773, %v2787
    %v2800 = vadd.f32 %v2774, %v2788
    %v2801 = vadd.f32 %v2775, %v2785
    %v2802 = vadd.f32 %v2776, %v2786
    %v2803 = vadd.f32 %v2777, %v2787
    %v2804 = vadd.f32 %v2778, %v2788
    %v2805 = vadd.f32 %v2779, %v2785
    %v2806 = vadd.f32 %v2780, %v2786
    %v2807 = vadd.f32 %v2781, %v2787
    %v2808 = vadd.f32 %v2782, %v2788
    %v2809 = vld [vmem:[#allocation22] sm:$0xff]
    %v2810 = vld [vmem:[#allocation22 + $0x8] sm:$0xff]
    %v2811 = vld [vmem:[#allocation22 + $0x10] sm:$0xff]
    %v2812 = vld [vmem:[#allocation22 + $0x18] sm:$0xff]
    %v2813 = vld [vmem:[#allocation22 + $0x20] sm:$0xff]
    %v2814 = vld [vmem:[#allocation22 + $0x28] sm:$0xff]
    %v2815 = vld [vmem:[#allocation22 + $0x30] sm:$0xff]
    %v2816 = vld [vmem:[#allocation22 + $0x38] sm:$0xff]
    %v2817 = vld [vmem:[#allocation22 + $0x40] sm:$0xff]
    %v2818 = vld [vmem:[#allocation22 + $0x48] sm:$0xff]
    %v2819 = vld [vmem:[#allocation22 + $0x50] sm:$0xff]
    %v2820 = vld [vmem:[#allocation22 + $0x58] sm:$0xff]
    %v2821 = vld [vmem:[#allocation22 + $0x60] sm:$0xff]
    %v2822 = vld [vmem:[#allocation22 + $0x68] sm:$0xff]
    %v2823 = vld [vmem:[#allocation22 + $0x70] sm:$0xff]
    %v2824 = vld [vmem:[#allocation22 + $0x78] sm:$0xff]
    %v2825 = vld [vmem:[#allocation22 + $0x80] sm:$0xff]
    %v2826 = vld [vmem:[#allocation22 + $0x88] sm:$0xff]
    %v2827 = vld [vmem:[#allocation22 + $0x90] sm:$0xff]
    %v2828 = vld [vmem:[#allocation22 + $0x98] sm:$0xff]
    %v2829 = vld [vmem:[#allocation22 + $0xa0] sm:$0xff]
    %v2830 = vld [vmem:[#allocation22 + $0xa8] sm:$0xff]
    %v2831 = vld [vmem:[#allocation22 + $0xb0] sm:$0xff]
    %v2832 = vld [vmem:[#allocation22 + $0xb8] sm:$0xff]
    %v2833 = vld [vmem:[#allocation22 + $0xc0] sm:$0xff]
    %v2834 = vld [vmem:[#allocation22 + $0xc8] sm:$0xff]
    %v2835 = vld [vmem:[#allocation22 + $0xd0] sm:$0xff]
    %v2836 = vld [vmem:[#allocation22 + $0xd8] sm:$0xff]
    %v2837 = vld [vmem:[#allocation22 + $0xe0] sm:$0xff]
    %v2838 = vld [vmem:[#allocation22 + $0xe8] sm:$0xff]
    %v2839 = vld [vmem:[#allocation22 + $0xf0] sm:$0xff]
    %v2840 = vld [vmem:[#allocation22 + $0xf8] sm:$0xff]
    %v2841 = vld [vmem:[#allocation22 + $0x100] sm:$0xff]
    %v2842 = vld [vmem:[#allocation22 + $0x108] sm:$0xff]
    %v2843 = vld [vmem:[#allocation22 + $0x110] sm:$0xff]
    %v2844 = vld [vmem:[#allocation22 + $0x118] sm:$0xff]
    %v2845 = vld [vmem:[#allocation22 + $0x120] sm:$0xff]
    %v2846 = vld [vmem:[#allocation22 + $0x128] sm:$0xff]
    %v2847 = vld [vmem:[#allocation22 + $0x130] sm:$0xff]
    %v2848 = vld [vmem:[#allocation22 + $0x138] sm:$0xff]
    %v2849 = vld [vmem:[#allocation22 + $0x140] sm:$0xff]
    %v2850 = vld [vmem:[#allocation22 + $0x148] sm:$0xff]
    %v2851 = vld [vmem:[#allocation22 + $0x150] sm:$0xff]
    %v2852 = vld [vmem:[#allocation22 + $0x158] sm:$0xff]
    %v2853 = vld [vmem:[#allocation22 + $0x160] sm:$0xff]
    %v2854 = vld [vmem:[#allocation22 + $0x168] sm:$0xff]
    %v2855 = vld [vmem:[#allocation22 + $0x170] sm:$0xff]
    %v2856 = vld [vmem:[#allocation22 + $0x178] sm:$0xff]
    %v2857 = vld [vmem:[#allocation22 + $0x180] sm:$0xff]
    %v2858 = vld [vmem:[#allocation22 + $0x188] sm:$0xff]
    %v2859 = vld [vmem:[#allocation22 + $0x190] sm:$0xff]
    %v2860 = vld [vmem:[#allocation22 + $0x198] sm:$0xff]
    %v2861 = vld [vmem:[#allocation22 + $0x1a0] sm:$0xff]
    %v2862 = vld [vmem:[#allocation22 + $0x1a8] sm:$0xff]
    %v2863 = vld [vmem:[#allocation22 + $0x1b0] sm:$0xff]
    %v2864 = vld [vmem:[#allocation22 + $0x1b8] sm:$0xff]
    %v2865 = vld [vmem:[#allocation22 + $0x1c0] sm:$0xff]
    %v2866 = vld [vmem:[#allocation22 + $0x1c8] sm:$0xff]
    %v2867 = vld [vmem:[#allocation22 + $0x1d0] sm:$0xff]
    %v2868 = vld [vmem:[#allocation22 + $0x1d8] sm:$0xff]
    %v2869 = vld [vmem:[#allocation22 + $0x1e0] sm:$0xff]
    %v2870 = vld [vmem:[#allocation22 + $0x1e8] sm:$0xff]
    %v2871 = vld [vmem:[#allocation22 + $0x1f0] sm:$0xff]
    %v2872 = vld [vmem:[#allocation22 + $0x1f8] sm:$0xff]
    %v2873 = vld [vmem:[#allocation22 + $0x200] sm:$0xff]
    %v2874 = vld [vmem:[#allocation22 + $0x208] sm:$0xff]
    %v2875 = vld [vmem:[#allocation22 + $0x210] sm:$0xff]
    %v2876 = vld [vmem:[#allocation22 + $0x218] sm:$0xff]
    %v2877 = vld [vmem:[#allocation22 + $0x220] sm:$0xff]
    %v2878 = vld [vmem:[#allocation22 + $0x228] sm:$0xff]
    %v2879 = vld [vmem:[#allocation22 + $0x230] sm:$0xff]
    %v2880 = vld [vmem:[#allocation22 + $0x238] sm:$0xff]
    %v2881 = vld [vmem:[#allocation22 + $0x240] sm:$0xff]
    %v2882 = vld [vmem:[#allocation22 + $0x248] sm:$0xff]
    %v2883 = vld [vmem:[#allocation22 + $0x250] sm:$0xff]
    %v2884 = vld [vmem:[#allocation22 + $0x258] sm:$0xff]
    %v2885 = vld [vmem:[#allocation22 + $0x260] sm:$0xff]
    %v2886 = vld [vmem:[#allocation22 + $0x268] sm:$0xff]
    %v2887 = vld [vmem:[#allocation22 + $0x270] sm:$0xff]
    %v2888 = vld [vmem:[#allocation22 + $0x278] sm:$0xff]
    %v2889 = vld [vmem:[#allocation22 + $0x280] sm:$0xff]
    %v2890 = vld [vmem:[#allocation22 + $0x288] sm:$0xff]
    %v2891 = vld [vmem:[#allocation22 + $0x290] sm:$0xff]
    %v2892 = vld [vmem:[#allocation22 + $0x298] sm:$0xff]
    %v2893 = vld [vmem:[#allocation22 + $0x2a0] sm:$0xff]
    %v2894 = vld [vmem:[#allocation22 + $0x2a8] sm:$0xff]
    %v2895 = vld [vmem:[#allocation22 + $0x2b0] sm:$0xff]
    %v2896 = vld [vmem:[#allocation22 + $0x2b8] sm:$0xff]
    %v2897 = vld [vmem:[#allocation22 + $0x2c0] sm:$0xff]
    %v2898 = vld [vmem:[#allocation22 + $0x2c8] sm:$0xff]
    %v2899 = vld [vmem:[#allocation22 + $0x2d0] sm:$0xff]
    %v2900 = vld [vmem:[#allocation22 + $0x2d8] sm:$0xff]
    %v2901 = vld [vmem:[#allocation22 + $0x2e0] sm:$0xff]
    %v2902 = vld [vmem:[#allocation22 + $0x2e8] sm:$0xff]
    %v2903 = vld [vmem:[#allocation22 + $0x2f0] sm:$0xff]
    %v2904 = vld [vmem:[#allocation22 + $0x2f8] sm:$0xff]
    %v2905 = vld [vmem:[#allocation22 + $0x300] sm:$0xff]
    %v2906 = vld [vmem:[#allocation22 + $0x308] sm:$0xff]
    %v2907 = vld [vmem:[#allocation22 + $0x310] sm:$0xff]
    %v2908 = vld [vmem:[#allocation22 + $0x318] sm:$0xff]
    %v2909 = vld [vmem:[#allocation22 + $0x320] sm:$0xff]
    %v2910 = vld [vmem:[#allocation22 + $0x328] sm:$0xff]
    %v2911 = vld [vmem:[#allocation22 + $0x330] sm:$0xff]
    %v2912 = vld [vmem:[#allocation22 + $0x338] sm:$0xff]
    %v2913 = vld [vmem:[#allocation22 + $0x340] sm:$0xff]
    %v2914 = vld [vmem:[#allocation22 + $0x348] sm:$0xff]
    %v2915 = vld [vmem:[#allocation22 + $0x350] sm:$0xff]
    %v2916 = vld [vmem:[#allocation22 + $0x358] sm:$0xff]
    %v2917 = vld [vmem:[#allocation22 + $0x360] sm:$0xff]
    %v2918 = vld [vmem:[#allocation22 + $0x368] sm:$0xff]
    %v2919 = vld [vmem:[#allocation22 + $0x370] sm:$0xff]
    %v2920 = vld [vmem:[#allocation22 + $0x378] sm:$0xff]
    %v2921 = vld [vmem:[#allocation22 + $0x380] sm:$0xff]
    %v2922 = vld [vmem:[#allocation22 + $0x388] sm:$0xff]
    %v2923 = vld [vmem:[#allocation22 + $0x390] sm:$0xff]
    %v2924 = vld [vmem:[#allocation22 + $0x398] sm:$0xff]
    %v2925 = vld [vmem:[#allocation22 + $0x3a0] sm:$0xff]
    %v2926 = vld [vmem:[#allocation22 + $0x3a8] sm:$0xff]
    %v2927 = vld [vmem:[#allocation22 + $0x3b0] sm:$0xff]
    %v2928 = vld [vmem:[#allocation22 + $0x3b8] sm:$0xff]
    %v2929 = vld [vmem:[#allocation22 + $0x3c0] sm:$0xff]
    %v2930 = vld [vmem:[#allocation22 + $0x3c8] sm:$0xff]
    %v2931 = vld [vmem:[#allocation22 + $0x3d0] sm:$0xff]
    %v2932 = vld [vmem:[#allocation22 + $0x3d8] sm:$0xff]
    %v2933 = vld [vmem:[#allocation22 + $0x3e0] sm:$0xff]
    %v2934 = vld [vmem:[#allocation22 + $0x3e8] sm:$0xff]
    %v2935 = vld [vmem:[#allocation22 + $0x3f0] sm:$0xff]
    %v2936 = vld [vmem:[#allocation22 + $0x3f8] sm:$0xff]
    %v2937 = vld [vmem:[#allocation23] sm:$0x3]
    %v2939 = vperm.slane %v2937, 0
    %v2940 = vperm.slane %v2937, 1
    %2943 = vmatpush.msra.mxu0 %v2839
    %2944 = vmatpush.msra.mxu0 %v2837
    %2945 = vmatpush.msra.mxu0 %v2835
    %2946 = vmatpush.msra.mxu0 %v2833
    %2947 = vmatpush.msra.mxu0 %v2831
    %2948 = vmatpush.msra.mxu0 %v2829
    %2949 = vmatpush.msra.mxu0 %v2827
    %2950 = vmatpush.msra.mxu0 %v2825
    %2951 = vmatpush.msra.mxu0 %v2823
    %2952 = vmatpush.msra.mxu0 %v2821
    %2953 = vmatpush.msra.mxu0 %v2819
    %2954 = vmatpush.msra.mxu0 %v2817
    %2955 = vmatpush.msra.mxu0 %v2815
    %2956 = vmatpush.msra.mxu0 %v2813
    %2957 = vmatpush.msra.mxu0 %v2811
    %2958 = vmatpush.msra.mxu0 %v2809
    %2959 = vmatmul.f32.gmra.mxu0 %v2793
    %v2960 = vpop.f32.mrf.mxu0
    %v2961 = vadd.f32 %v2939, %v2960
    %2962 = vmatmul.f32.gmra.mxu0 %v2797
    %v2963 = vpop.f32.mrf.mxu0
    %v2964 = vadd.f32 %v2939, %v2963
    %2965 = vmatmul.f32.gmra.mxu0 %v2801
    %v2966 = vpop.f32.mrf.mxu0
    %v2967 = vadd.f32 %v2939, %v2966
    %2968 = vmatmul.f32.gmra.mxu0 %v2805
    %v2969 = vpop.f32.mrf.mxu0
    %v2970 = vadd.f32 %v2939, %v2969
    %2971 = vdwg.mxu0
    %2972 = vmatpush.msra.mxu0 %v2871
    %2973 = vmatpush.msra.mxu0 %v2869
    %2974 = vmatpush.msra.mxu0 %v2867
    %2975 = vmatpush.msra.mxu0 %v2865
    %2976 = vmatpush.msra.mxu0 %v2863
    %2977 = vmatpush.msra.mxu0 %v2861
    %2978 = vmatpush.msra.mxu0 %v2859
    %2979 = vmatpush.msra.mxu0 %v2857
    %2980 = vmatpush.msra.mxu0 %v2855
    %2981 = vmatpush.msra.mxu0 %v2853
    %2982 = vmatpush.msra.mxu0 %v2851
    %2983 = vmatpush.msra.mxu0 %v2849
    %2984 = vmatpush.msra.mxu0 %v2847
    %2985 = vmatpush.msra.mxu0 %v2845
    %2986 = vmatpush.msra.mxu0 %v2843
    %2987 = vmatpush.msra.mxu0 %v2841
    %2988 = vmatmul.f32.gmra.mxu0 %v2794
    %v2989 = vpop.f32.mrf.mxu0
    %v2990 = vadd.f32 %v2961, %v2989
    %2991 = vmatmul.f32.gmra.mxu0 %v2798
    %v2992 = vpop.f32.mrf.mxu0
    %v2993 = vadd.f32 %v2964, %v2992
    %2994 = vmatmul.f32.gmra.mxu0 %v2802
    %v2995 = vpop.f32.mrf.mxu0
    %v2996 = vadd.f32 %v2967, %v2995
    %2997 = vmatmul.f32.gmra.mxu0 %v2806
    %v2998 = vpop.f32.mrf.mxu0
    %v2999 = vadd.f32 %v2970, %v2998
    %3000 = vdwg.mxu0
    %3001 = vmatpush.msra.mxu0 %v2903
    %3002 = vmatpush.msra.mxu0 %v2901
    %3003 = vmatpush.msra.mxu0 %v2899
    %3004 = vmatpush.msra.mxu0 %v2897
    %3005 = vmatpush.msra.mxu0 %v2895
    %3006 = vmatpush.msra.mxu0 %v2893
    %3007 = vmatpush.msra.mxu0 %v2891
    %3008 = vmatpush.msra.mxu0 %v2889
    %3009 = vmatpush.msra.mxu0 %v2887
    %3010 = vmatpush.msra.mxu0 %v2885
    %3011 = vmatpush.msra.mxu0 %v2883
    %3012 = vmatpush.msra.mxu0 %v2881
    %3013 = vmatpush.msra.mxu0 %v2879
    %3014 = vmatpush.msra.mxu0 %v2877
    %3015 = vmatpush.msra.mxu0 %v2875
    %3016 = vmatpush.msra.mxu0 %v2873
    %3017 = vmatmul.f32.gmra.mxu0 %v2795
    %v3018 = vpop.f32.mrf.mxu0
    %v3019 = vadd.f32 %v2990, %v3018
    %3020 = vmatmul.f32.gmra.mxu0 %v2799
    %v3021 = vpop.f32.mrf.mxu0
    %v3022 = vadd.f32 %v2993, %v3021
    %3023 = vmatmul.f32.gmra.mxu0 %v2803
    %v3024 = vpop.f32.mrf.mxu0
    %v3025 = vadd.f32 %v2996, %v3024
    %3026 = vmatmul.f32.gmra.mxu0 %v2807
    %v3027 = vpop.f32.mrf.mxu0
    %v3028 = vadd.f32 %v2999, %v3027
    %3029 = vdwg.mxu0
    %3030 = vmatpush.msra.mxu0 %v2935
    %3031 = vmatpush.msra.mxu0 %v2933
    %3032 = vmatpush.msra.mxu0 %v2931
    %3033 = vmatpush.msra.mxu0 %v2929
    %3034 = vmatpush.msra.mxu0 %v2927
    %3035 = vmatpush.msra.mxu0 %v2925
    %3036 = vmatpush.msra.mxu0 %v2923
    %3037 = vmatpush.msra.mxu0 %v2921
    %3038 = vmatpush.msra.mxu0 %v2919
    %3039 = vmatpush.msra.mxu0 %v2917
    %3040 = vmatpush.msra.mxu0 %v2915
    %3041 = vmatpush.msra.mxu0 %v2913
    %3042 = vmatpush.msra.mxu0 %v2911
    %3043 = vmatpush.msra.mxu0 %v2909
    %3044 = vmatpush.msra.mxu0 %v2907
    %3045 = vmatpush.msra.mxu0 %v2905
    %3046 = vmatmul.f32.gmra.mxu0 %v2796
    %v3047 = vpop.f32.mrf.mxu0
    %v3048 = vadd.f32 %v3019, %v3047
    %3049 = vmatmul.f32.gmra.mxu0 %v2800
    %v3050 = vpop.f32.mrf.mxu0
    %v3051 = vadd.f32 %v3022, %v3050
    %3052 = vmatmul.f32.gmra.mxu0 %v2804
    %v3053 = vpop.f32.mrf.mxu0
    %v3054 = vadd.f32 %v3025, %v3053
    %3055 = vmatmul.f32.gmra.mxu0 %v2808
    %v3056 = vpop.f32.mrf.mxu0
    %v3057 = vadd.f32 %v3028, %v3056
    %3058 = vdwg.mxu0
    %3059 = vmatpush.msra.mxu0 %v2840
    %3060 = vmatpush.msra.mxu0 %v2838
    %3061 = vmatpush.msra.mxu0 %v2836
    %3062 = vmatpush.msra.mxu0 %v2834
    %3063 = vmatpush.msra.mxu0 %v2832
    %3064 = vmatpush.msra.mxu0 %v2830
    %3065 = vmatpush.msra.mxu0 %v2828
    %3066 = vmatpush.msra.mxu0 %v2826
    %3067 = vmatpush.msra.mxu0 %v2824
    %3068 = vmatpush.msra.mxu0 %v2822
    %3069 = vmatpush.msra.mxu0 %v2820
    %3070 = vmatpush.msra.mxu0 %v2818
    %3071 = vmatpush.msra.mxu0 %v2816
    %3072 = vmatpush.msra.mxu0 %v2814
    %3073 = vmatpush.msra.mxu0 %v2812
    %3074 = vmatpush.msra.mxu0 %v2810
    %3075 = vmatmul.f32.gmra.mxu0 %v2793
    %v3076 = vpop.f32.mrf.mxu0
    %v3077 = vadd.f32 %v2940, %v3076
    %3078 = vmatmul.f32.gmra.mxu0 %v2797
    %v3079 = vpop.f32.mrf.mxu0
    %v3080 = vadd.f32 %v2940, %v3079
    %3081 = vmatmul.f32.gmra.mxu0 %v2801
    %v3082 = vpop.f32.mrf.mxu0
    %v3083 = vadd.f32 %v2940, %v3082
    %3084 = vmatmul.f32.gmra.mxu0 %v2805
    %v3085 = vpop.f32.mrf.mxu0
    %v3086 = vadd.f32 %v2940, %v3085
    %3087 = vdwg.mxu0
    %3088 = vmatpush.msra.mxu0 %v2872
    %3089 = vmatpush.msra.mxu0 %v2870
    %3090 = vmatpush.msra.mxu0 %v2868
    %3091 = vmatpush.msra.mxu0 %v2866
    %3092 = vmatpush.msra.mxu0 %v2864
    %3093 = vmatpush.msra.mxu0 %v2862
    %3094 = vmatpush.msra.mxu0 %v2860
    %3095 = vmatpush.msra.mxu0 %v2858
    %3096 = vmatpush.msra.mxu0 %v2856
    %3097 = vmatpush.msra.mxu0 %v2854
    %3098 = vmatpush.msra.mxu0 %v2852
    %3099 = vmatpush.msra.mxu0 %v2850
    %3100 = vmatpush.msra.mxu0 %v2848
    %3101 = vmatpush.msra.mxu0 %v2846
    %3102 = vmatpush.msra.mxu0 %v2844
    %3103 = vmatpush.msra.mxu0 %v2842
    %3104 = vmatmul.f32.gmra.mxu0 %v2794
    %v3105 = vpop.f32.mrf.mxu0
    %v3106 = vadd.f32 %v3077, %v3105
    %3107 = vmatmul.f32.gmra.mxu0 %v2798
    %v3108 = vpop.f32.mrf.mxu0
    %v3109 = vadd.f32 %v3080, %v3108
    %3110 = vmatmul.f32.gmra.mxu0 %v2802
    %v3111 = vpop.f32.mrf.mxu0
    %v3112 = vadd.f32 %v3083, %v3111
    %3113 = vmatmul.f32.gmra.mxu0 %v2806
    %v3114 = vpop.f32.mrf.mxu0
    %v3115 = vadd.f32 %v3086, %v3114
    %3116 = vdwg.mxu0
    %3117 = vmatpush.msra.mxu0 %v2904
    %3118 = vmatpush.msra.mxu0 %v2902
    %3119 = vmatpush.msra.mxu0 %v2900
    %3120 = vmatpush.msra.mxu0 %v2898
    %3121 = vmatpush.msra.mxu0 %v2896
    %3122 = vmatpush.msra.mxu0 %v2894
    %3123 = vmatpush.msra.mxu0 %v2892
    %3124 = vmatpush.msra.mxu0 %v2890
    %3125 = vmatpush.msra.mxu0 %v2888
    %3126 = vmatpush.msra.mxu0 %v2886
    %3127 = vmatpush.msra.mxu0 %v2884
    %3128 = vmatpush.msra.mxu0 %v2882
    %3129 = vmatpush.msra.mxu0 %v2880
    %3130 = vmatpush.msra.mxu0 %v2878
    %3131 = vmatpush.msra.mxu0 %v2876
    %3132 = vmatpush.msra.mxu0 %v2874
    %3133 = vmatmul.f32.gmra.mxu0 %v2795
    %v3134 = vpop.f32.mrf.mxu0
    %v3135 = vadd.f32 %v3106, %v3134
    %3136 = vmatmul.f32.gmra.mxu0 %v2799
    %v3137 = vpop.f32.mrf.mxu0
    %v3138 = vadd.f32 %v3109, %v3137
    %3139 = vmatmul.f32.gmra.mxu0 %v2803
    %v3140 = vpop.f32.mrf.mxu0
    %v3141 = vadd.f32 %v3112, %v3140
    %3142 = vmatmul.f32.gmra.mxu0 %v2807
    %v3143 = vpop.f32.mrf.mxu0
    %v3144 = vadd.f32 %v3115, %v3143
    %3145 = vdwg.mxu0
    %3146 = vmatpush.msra.mxu0 %v2936
    %3147 = vmatpush.msra.mxu0 %v2934
    %3148 = vmatpush.msra.mxu0 %v2932
    %3149 = vmatpush.msra.mxu0 %v2930
    %3150 = vmatpush.msra.mxu0 %v2928
    %3151 = vmatpush.msra.mxu0 %v2926
    %3152 = vmatpush.msra.mxu0 %v2924
    %3153 = vmatpush.msra.mxu0 %v2922
    %3154 = vmatpush.msra.mxu0 %v2920
    %3155 = vmatpush.msra.mxu0 %v2918
    %3156 = vmatpush.msra.mxu0 %v2916
    %3157 = vmatpush.msra.mxu0 %v2914
    %3158 = vmatpush.msra.mxu0 %v2912
    %3159 = vmatpush.msra.mxu0 %v2910
    %3160 = vmatpush.msra.mxu0 %v2908
    %3161 = vmatpush.msra.mxu0 %v2906
    %3162 = vmatmul.f32.gmra.mxu0 %v2796
    %v3163 = vpop.f32.mrf.mxu0
    %v3164 = vadd.f32 %v3135, %v3163
    %3165 = vmatmul.f32.gmra.mxu0 %v2800
    %v3166 = vpop.f32.mrf.mxu0
    %v3167 = vadd.f32 %v3138, %v3166
    %3168 = vmatmul.f32.gmra.mxu0 %v2804
    %v3169 = vpop.f32.mrf.mxu0
    %v3170 = vadd.f32 %v3141, %v3169
    %3171 = vmatmul.f32.gmra.mxu0 %v2808
    %v3172 = vpop.f32.mrf.mxu0
    %v3173 = vadd.f32 %v3144, %v3172
    %3174 = vdwg.mxu0
    %v3175 = vtanh.pop %v3048
    %v3176 = vtanh.pop %v3164
    %v3177 = vtanh.pop %v3051
    %v3178 = vtanh.pop %v3167
    %v3179 = vtanh.pop %v3054
    %v3180 = vtanh.pop %v3170
    %v3181 = vtanh.pop %v3057
    %v3182 = vtanh.pop %v3173
    %v3183 = vsub.f32 %v3048, %v3175
    %v3184 = vsub.f32 %v3164, %v3176
    %v3185 = vsub.f32 %v3051, %v3177
    %v3186 = vsub.f32 %v3167, %v3178
    %v3187 = vsub.f32 %v3054, %v3179
    %v3188 = vsub.f32 %v3170, %v3180
    %v3189 = vsub.f32 %v3057, %v3181
    %v3190 = vsub.f32 %v3173, %v3182
    %v3191 = vld [vmem:[%s3] sm:$0x3]
    %v3192 = vld [vmem:[#allocation37] sm:$0xff]
    %v3193 = vld [vmem:[#allocation37 + $0x8] sm:$0xff]
    %v3194 = vld [vmem:[#allocation37 + $0x10] sm:$0xff]
    %v3195 = vld [vmem:[#allocation37 + $0x18] sm:$0xff]
    %v3196 = vld [vmem:[#allocation37 + $0x20] sm:$0xff]
    %v3197 = vld [vmem:[#allocation37 + $0x28] sm:$0xff]
    %v3198 = vld [vmem:[#allocation37 + $0x30] sm:$0xff]
    %v3199 = vld [vmem:[#allocation37 + $0x38] sm:$0xff]
    %v3200 = vld [vmem:[#allocation37 + $0x40] sm:$0xff]
    %v3201 = vld [vmem:[#allocation37 + $0x48] sm:$0xff]
    %v3202 = vld [vmem:[#allocation37 + $0x50] sm:$0xff]
    %v3203 = vld [vmem:[#allocation37 + $0x58] sm:$0xff]
    %v3204 = vld [vmem:[#allocation37 + $0x60] sm:$0xff]
    %v3205 = vld [vmem:[#allocation37 + $0x68] sm:$0xff]
    %v3206 = vld [vmem:[#allocation37 + $0x70] sm:$0xff]
    %v3207 = vld [vmem:[#allocation37 + $0x78] sm:$0xff]
    %v3208 = vld [vmem:[#allocation38] sm:$0x1]
    %v3210 = vperm.slane %v3208, 0
    %3212 = vmatpush.msra.mxu0 %v3207
    %3213 = vmatpush.msra.mxu0 %v3206
    %3214 = vmatpush.msra.mxu0 %v3205
    %3215 = vmatpush.msra.mxu0 %v3204
    %3216 = vmatpush.msra.mxu0 %v3203
    %3217 = vmatpush.msra.mxu0 %v3202
    %3218 = vmatpush.msra.mxu0 %v3201
    %3219 = vmatpush.msra.mxu0 %v3200
    %3220 = vmatpush.msra.mxu0 %v3199
    %3221 = vmatpush.msra.mxu0 %v3198
    %3222 = vmatpush.msra.mxu0 %v3197
    %3223 = vmatpush.msra.mxu0 %v3196
    %3224 = vmatpush.msra.mxu0 %v3195
    %3225 = vmatpush.msra.mxu0 %v3194
    %3226 = vmatpush.msra.mxu0 %v3193
    %3227 = vmatpush.msra.mxu0 %v3192
    %3228 = vmatmul.f32.gmra.mxu0 %v3191
    %v3229 = vpop.f32.mrf.mxu0
    %v3230 = vadd.f32 %v3210, %v3229
    %3231 = vdwg.mxu0
    %v3232 = vmax.f32 %v3230, 0.0
    %v3233 = vsel %vm788, %v3232, 0.0
    %v3234 = vrot.slane %v3233, 4
    %v3235 = vadd.f32 %v3233, %v3234
    %v3236 = vrot.slane %v3235, 2
    %v3237 = vadd.f32 %v3235, %v3236
    %v3238 = vrot.slane %v3237, 1
    %v3239 = vadd.f32 %v3237, %v3238
    %v3240 = vmul.f32 %v3232, %v3232
    %v3241 = vsel %vm788, %v3240, 0.0
    %v3242 = vrot.slane %v3241, 4
    %v3243 = vadd.f32 %v3241, %v3242
    %v3244 = vrot.slane %v3243, 2
    %v3245 = vadd.f32 %v3243, %v3244
    %v3246 = vrot.slane %v3245, 1
    %v3247 = vadd.f32 %v3245, %v3246
    %v3248 = vsel %vm1168, %v3239, %v3247
    %v3249 = vsel %vm788, %v3248, 0.0
    %3250 = vadd.xlane.f32.xlu0 %v3249
    %v3251 = vpop.xlane.xlu0 %3250
    %v3252 = vmul.f32 %v3251, 0.00390625
    %v3253 = vmul.f32 %v3252, %v3252
    %v3255 = vrot.slane %v3253, 7
    %v3257 = vsub.f32 %v3252, %v3255
    %v3258 = vadd.f32 %v3257, 1e-05
    %v3259 = vrsqrt.pop %v3258
    %v3260 = vmul.f32 %v3259, %v3258
    %v3261 = vmul.f32 %v3260, %v3259
    %v3262 = vmul.f32 0.5, %v3261
    %v3263 = vsub.f32 1.5, %v3262
    %v3264 = vmul.f32 %v3259, %v3263
    %vm3265 = vweird.f32 %v3258
    %vm3266 = vweird.f32 %v3259
    %vm3267 = vmor %vm3265, %vm3266
    %v3268 = vsel %vm3267, %v3259, %v3264
    %v3269 = vld [vmem:[#allocation2] sm:$0x1]
    %v3271 = vperm.slane %v3269, 0
    %v3273 = vmul.f32 %v3268, %v3271
    %v3274 = vperm.slane %v3252, 0
    %v3275 = vsub.f32 %v3232, %v3274
    %v3277 = vrot.slane %v3273, 1
    %s3278 = vtos %v3277
    %v3279 = vstv %s3278
    %v3281 = vmul.f32 %v3275, %v3279
    %v3282 = vld [vmem:[#allocation3] sm:$0x1]
    %v3284 = vperm.slane %v3282, 0
    %3285 = vset.pattern.permute.xlu0 0
    %3286 = vperm.xlu0 %3285, %v3284
    %v3287 = vpop.permute.xlu0 %3286
    %v3289 = vadd.f32 %v3281, %v3287
    %v3290 = vld [vmem:[%s61] sm:$0xff]
    %v3291 = vld [vmem:[%s61 + $0x8] sm:$0xff]
    %v3292 = vld [vmem:[%s61 + $0x10] sm:$0xff]
    %v3293 = vld [vmem:[%s61 + $0x18] sm:$0xff]
    %v3294 = vld [vmem:[%s61 + $0x20] sm:$0xff]
    %v3295 = vld [vmem:[%s61 + $0x28] sm:$0xff]
    %v3296 = vld [vmem:[%s61 + $0x30] sm:$0xff]
    %v3297 = vld [vmem:[%s61 + $0x38] sm:$0xff]
    %v3298 = vld [vmem:[%s61 + $0x40] sm:$0xff]
    %v3299 = vld [vmem:[%s61 + $0x48] sm:$0xff]
    %v3300 = vld [vmem:[%s61 + $0x50] sm:$0xff]
    %v3301 = vld [vmem:[%s61 + $0x58] sm:$0xff]
    %v3302 = vld [vmem:[%s61 + $0x60] sm:$0xff]
    %v3303 = vld [vmem:[%s61 + $0x68] sm:$0xff]
    %v3304 = vld [vmem:[%s61 + $0x70] sm:$0xff]
    %v3305 = vld [vmem:[%s61 + $0x78] sm:$0xff]
    %v3306 = vld [vmem:[%s61 + $0x80] sm:$0xff]
    %v3307 = vld [vmem:[%s61 + $0x88] sm:$0xff]
    %v3308 = vld [vmem:[%s61 + $0x90] sm:$0xff]
    %v3309 = vld [vmem:[%s61 + $0x98] sm:$0xff]
    %v3310 = vld [vmem:[%s61 + $0xa0] sm:$0xff]
    %v3311 = vld [vmem:[%s61 + $0xa8] sm:$0xff]
    %v3312 = vld [vmem:[%s61 + $0xb0] sm:$0xff]
    %v3313 = vld [vmem:[%s61 + $0xb8] sm:$0xff]
    %v3314 = vld [vmem:[%s61 + $0xc0] sm:$0xff]
    %v3315 = vld [vmem:[%s61 + $0xc8] sm:$0xff]
    %v3316 = vld [vmem:[%s61 + $0xd0] sm:$0xff]
    %v3317 = vld [vmem:[%s61 + $0xd8] sm:$0xff]
    %v3318 = vld [vmem:[%s61 + $0xe0] sm:$0xff]
    %v3319 = vld [vmem:[%s61 + $0xe8] sm:$0xff]
    %v3320 = vld [vmem:[%s61 + $0xf0] sm:$0xff]
    %v3321 = vld [vmem:[%s61 + $0xf8] sm:$0xff]
    %v3322 = vld [vmem:[#allocation40] sm:$0x3]
    %v3324 = vperm.slane %v3322, 0
    %v3325 = vperm.slane %v3322, 1
    %3328 = vmatpush.msra.mxu0 %v3320
    %3329 = vmatpush.msra.mxu0 %v3318
    %3330 = vmatpush.msra.mxu0 %v3316
    %3331 = vmatpush.msra.mxu0 %v3314
    %3332 = vmatpush.msra.mxu0 %v3312
    %3333 = vmatpush.msra.mxu0 %v3310
    %3334 = vmatpush.msra.mxu0 %v3308
    %3335 = vmatpush.msra.mxu0 %v3306
    %3336 = vmatpush.msra.mxu0 %v3304
    %3337 = vmatpush.msra.mxu0 %v3302
    %3338 = vmatpush.msra.mxu0 %v3300
    %3339 = vmatpush.msra.mxu0 %v3298
    %3340 = vmatpush.msra.mxu0 %v3296
    %3341 = vmatpush.msra.mxu0 %v3294
    %3342 = vmatpush.msra.mxu0 %v3292
    %3343 = vmatpush.msra.mxu0 %v3290
    %3344 = vmatmul.f32.gmra.mxu0 %v3289
    %v3345 = vpop.f32.mrf.mxu0
    %v3346 = vadd.f32 %v3324, %v3345
    %3347 = vdwg.mxu0
    %3348 = vmatpush.msra.mxu0 %v3321
    %3349 = vmatpush.msra.mxu0 %v3319
    %3350 = vmatpush.msra.mxu0 %v3317
    %3351 = vmatpush.msra.mxu0 %v3315
    %3352 = vmatpush.msra.mxu0 %v3313
    %3353 = vmatpush.msra.mxu0 %v3311
    %3354 = vmatpush.msra.mxu0 %v3309
    %3355 = vmatpush.msra.mxu0 %v3307
    %3356 = vmatpush.msra.mxu0 %v3305
    %3357 = vmatpush.msra.mxu0 %v3303
    %3358 = vmatpush.msra.mxu0 %v3301
    %3359 = vmatpush.msra.mxu0 %v3299
    %3360 = vmatpush.msra.mxu0 %v3297
    %3361 = vmatpush.msra.mxu0 %v3295
    %3362 = vmatpush.msra.mxu0 %v3293
    %3363 = vmatpush.msra.mxu0 %v3291
    %3364 = vmatmul.f32.gmra.mxu0 %v3289
    %v3365 = vpop.f32.mrf.mxu0
    %v3366 = vadd.f32 %v3325, %v3365
    %3367 = vdwg.mxu0
    %v3368 = vmax.f32 %v3346, 0.0
    %v3369 = vmax.f32 %v3366, 0.0
    %v3370 = vsel %vm788, %v3368, 0.0
    %v3371 = vrot.slane %v3370, 4
    %v3372 = vadd.f32 %v3370, %v3371
    %v3373 = vrot.slane %v3372, 2
    %v3374 = vadd.f32 %v3372, %v3373
    %v3375 = vrot.slane %v3374, 1
    %v3376 = vadd.f32 %v3374, %v3375
    %v3377 = vsel %vm788, %v3369, 0.0
    %v3378 = vrot.slane %v3377, 4
    %v3379 = vadd.f32 %v3377, %v3378
    %v3380 = vrot.slane %v3379, 2
    %v3381 = vadd.f32 %v3379, %v3380
    %v3382 = vrot.slane %v3381, 1
    %v3383 = vadd.f32 %v3381, %v3382
    %v3384 = vmul.f32 %v3368, %v3368
    %v3385 = vmul.f32 %v3369, %v3369
    %v3386 = vsel %vm788, %v3384, 0.0
    %v3387 = vrot.slane %v3386, 4
    %v3388 = vadd.f32 %v3386, %v3387
    %v3389 = vrot.slane %v3388, 2
    %v3390 = vadd.f32 %v3388, %v3389
    %v3391 = vrot.slane %v3390, 1
    %v3392 = vadd.f32 %v3390, %v3391
    %v3393 = vsel %vm788, %v3385, 0.0
    %v3394 = vrot.slane %v3393, 4
    %v3395 = vadd.f32 %v3393, %v3394
    %v3396 = vrot.slane %v3395, 2
    %v3397 = vadd.f32 %v3395, %v3396
    %v3398 = vrot.slane %v3397, 1
    %v3399 = vadd.f32 %v3397, %v3398
    %v3400 = vsel %vm1168, %v3376, %v3392
    %v3401 = vsel %vm1168, %v3383, %v3399
    %v3402 = vsel %vm788, %v3400, 0.0
    %v3403 = vsel %vm788, %v3401, 0.0
    %v3404 = vadd.f32 %v3402, %v3403
    %3405 = vadd.xlane.f32.xlu0 %v3404
    %v3406 = vpop.xlane.xlu0 %3405
    %v3407 = vmul.f32 %v3406, 0.001953125
    %v3408 = vmul.f32 %v3407, %v3407
    %v3410 = vrot.slane %v3408, 7
    %v3412 = vsub.f32 %v3407, %v3410
    %v3413 = vadd.f32 %v3412, 1e-05
    %v3414 = vrsqrt.pop %v3413
    %v3415 = vmul.f32 %v3414, %v3413
    %v3416 = vmul.f32 %v3415, %v3414
    %v3417 = vmul.f32 0.5, %v3416
    %v3418 = vsub.f32 1.5, %v3417
    %v3419 = vmul.f32 %v3414, %v3418
    %vm3420 = vweird.f32 %v3413
    %vm3421 = vweird.f32 %v3414
    %vm3422 = vmor %vm3420, %vm3421
    %v3423 = vsel %vm3422, %v3414, %v3419
    %v3424 = vld [vmem:[#allocation4] sm:$0x1]
    %v3426 = vperm.slane %v3424, 0
    %v3428 = vmul.f32 %v3423, %v3426
    %v3429 = vperm.slane %v3407, 0
    %v3430 = vsub.f32 %v3368, %v3429
    %v3431 = vsub.f32 %v3369, %v3429
    %v3433 = vrot.slane %v3428, 1
    %s3434 = vtos %v3433
    %v3435 = vstv %s3434
    %v3437 = vmul.f32 %v3430, %v3435
    %v3438 = vmul.f32 %v3431, %v3435
    %v3439 = vld [vmem:[#allocation5] sm:$0x1]
    %v3441 = vperm.slane %v3439, 0
    %3442 = vset.pattern.permute.xlu0 0
    %3443 = vperm.xlu0 %3442, %v3441
    %v3444 = vpop.permute.xlu0 %3443
    %v3446 = vadd.f32 %v3437, %v3444
    %v3447 = vadd.f32 %v3438, %v3444
    %v3448 = vld [vmem:[#allocation41] sm:$0xff]
    %v3449 = vld [vmem:[#allocation41 + $0x8] sm:$0xff]
    %v3450 = vld [vmem:[#allocation41 + $0x10] sm:$0xff]
    %v3451 = vld [vmem:[#allocation41 + $0x18] sm:$0xff]
    %v3452 = vld [vmem:[#allocation41 + $0x20] sm:$0xff]
    %v3453 = vld [vmem:[#allocation41 + $0x28] sm:$0xff]
    %v3454 = vld [vmem:[#allocation41 + $0x30] sm:$0xff]
    %v3455 = vld [vmem:[#allocation41 + $0x38] sm:$0xff]
    %v3456 = vld [vmem:[#allocation41 + $0x40] sm:$0xff]
    %v3457 = vld [vmem:[#allocation41 + $0x48] sm:$0xff]
    %v3458 = vld [vmem:[#allocation41 + $0x50] sm:$0xff]
    %v3459 = vld [vmem:[#allocation41 + $0x58] sm:$0xff]
    %v3460 = vld [vmem:[#allocation41 + $0x60] sm:$0xff]
    %v3461 = vld [vmem:[#allocation41 + $0x68] sm:$0xff]
    %v3462 = vld [vmem:[#allocation41 + $0x70] sm:$0xff]
    %v3463 = vld [vmem:[#allocation41 + $0x78] sm:$0xff]
    %v3464 = vld [vmem:[#allocation41 + $0x80] sm:$0xff]
    %v3465 = vld [vmem:[#allocation41 + $0x88] sm:$0xff]
    %v3466 = vld [vmem:[#allocation41 + $0x90] sm:$0xff]
    %v3467 = vld [vmem:[#allocation41 + $0x98] sm:$0xff]
    %v3468 = vld [vmem:[#allocation41 + $0xa0] sm:$0xff]
    %v3469 = vld [vmem:[#allocation41 + $0xa8] sm:$0xff]
    %v3470 = vld [vmem:[#allocation41 + $0xb0] sm:$0xff]
    %v3471 = vld [vmem:[#allocation41 + $0xb8] sm:$0xff]
    %v3472 = vld [vmem:[#allocation41 + $0xc0] sm:$0xff]
    %v3473 = vld [vmem:[#allocation41 + $0xc8] sm:$0xff]
    %v3474 = vld [vmem:[#allocation41 + $0xd0] sm:$0xff]
    %v3475 = vld [vmem:[#allocation41 + $0xd8] sm:$0xff]
    %v3476 = vld [vmem:[#allocation41 + $0xe0] sm:$0xff]
    %v3477 = vld [vmem:[#allocation41 + $0xe8] sm:$0xff]
    %v3478 = vld [vmem:[#allocation41 + $0xf0] sm:$0xff]
    %v3479 = vld [vmem:[#allocation41 + $0xf8] sm:$0xff]
    %v3480 = vld [vmem:[#allocation43] sm:$0x1]
    %v3482 = vperm.slane %v3480, 0
    %3484 = vmatpush.msra.mxu0 %v3463
    %3485 = vmatpush.msra.mxu0 %v3462
    %3486 = vmatpush.msra.mxu0 %v3461
    %3487 = vmatpush.msra.mxu0 %v3460
    %3488 = vmatpush.msra.mxu0 %v3459
    %3489 = vmatpush.msra.mxu0 %v3458
    %3490 = vmatpush.msra.mxu0 %v3457
    %3491 = vmatpush.msra.mxu0 %v3456
    %3492 = vmatpush.msra.mxu0 %v3455
    %3493 = vmatpush.msra.mxu0 %v3454
    %3494 = vmatpush.msra.mxu0 %v3453
    %3495 = vmatpush.msra.mxu0 %v3452
    %3496 = vmatpush.msra.mxu0 %v3451
    %3497 = vmatpush.msra.mxu0 %v3450
    %3498 = vmatpush.msra.mxu0 %v3449
    %3499 = vmatpush.msra.mxu0 %v3448
    %3500 = vmatmul.f32.gmra.mxu0 %v3446
    %v3501 = vpop.f32.mrf.mxu0
    %v3502 = vadd.f32 %v3482, %v3501
    %3503 = vdwg.mxu0
    %3504 = vmatpush.msra.mxu0 %v3479
    %3505 = vmatpush.msra.mxu0 %v3478
    %3506 = vmatpush.msra.mxu0 %v3477
    %3507 = vmatpush.msra.mxu0 %v3476
    %3508 = vmatpush.msra.mxu0 %v3475
    %3509 = vmatpush.msra.mxu0 %v3474
    %3510 = vmatpush.msra.mxu0 %v3473
    %3511 = vmatpush.msra.mxu0 %v3472
    %3512 = vmatpush.msra.mxu0 %v3471
    %3513 = vmatpush.msra.mxu0 %v3470
    %3514 = vmatpush.msra.mxu0 %v3469
    %3515 = vmatpush.msra.mxu0 %v3468
    %3516 = vmatpush.msra.mxu0 %v3467
    %3517 = vmatpush.msra.mxu0 %v3466
    %3518 = vmatpush.msra.mxu0 %v3465
    %3519 = vmatpush.msra.mxu0 %v3464
    %3520 = vmatmul.f32.gmra.mxu0 %v3447
    %v3521 = vpop.f32.mrf.mxu0
    %v3522 = vadd.f32 %v3502, %v3521
    %3523 = vdwg.mxu0
    %v3524 = vmax.f32 %v3522, 0.0
    %v3525 = vsel %vm788, %v3524, 0.0
    %v3526 = vrot.slane %v3525, 4
    %v3527 = vadd.f32 %v3525, %v3526
    %v3528 = vrot.slane %v3527, 2
    %v3529 = vadd.f32 %v3527, %v3528
    %v3530 = vrot.slane %v3529, 1
    %v3531 = vadd.f32 %v3529, %v3530
    %v3532 = vmul.f32 %v3524, %v3524
    %v3533 = vsel %vm788, %v3532, 0.0
    %v3534 = vrot.slane %v3533, 4
    %v3535 = vadd.f32 %v3533, %v3534
    %v3536 = vrot.slane %v3535, 2
    %v3537 = vadd.f32 %v3535, %v3536
    %v3538 = vrot.slane %v3537, 1
    %v3539 = vadd.f32 %v3537, %v3538
    %v3540 = vsel %vm1168, %v3531, %v3539
    %v3541 = vsel %vm788, %v3540, 0.0
    %3542 = vadd.xlane.f32.xlu0 %v3541
    %v3543 = vpop.xlane.xlu0 %3542
    %v3544 = vmul.f32 %v3543, 0.00390625
    %v3545 = vmul.f32 %v3544, %v3544
    %v3547 = vrot.slane %v3545, 7
    %v3549 = vsub.f32 %v3544, %v3547
    %v3550 = vadd.f32 %v3549, 1e-05
    %v3551 = vrsqrt.pop %v3550
    %v3552 = vmul.f32 %v3551, %v3550
    %v3553 = vmul.f32 %v3552, %v3551
    %v3554 = vmul.f32 0.5, %v3553
    %v3555 = vsub.f32 1.5, %v3554
    %v3556 = vmul.f32 %v3551, %v3555
    %vm3557 = vweird.f32 %v3550
    %vm3558 = vweird.f32 %v3551
    %vm3559 = vmor %vm3557, %vm3558
    %v3560 = vsel %vm3559, %v3551, %v3556
    %v3561 = vld [vmem:[#allocation6] sm:$0x1]
    %v3563 = vperm.slane %v3561, 0
    %v3565 = vmul.f32 %v3560, %v3563
    %v3566 = vperm.slane %v3544, 0
    %v3567 = vsub.f32 %v3524, %v3566
    %v3569 = vrot.slane %v3565, 1
    %s3570 = vtos %v3569
    %v3571 = vstv %s3570
    %v3573 = vmul.f32 %v3567, %v3571
    %v3574 = vld [vmem:[#allocation7] sm:$0x1]
    %v3576 = vperm.slane %v3574, 0
    %3577 = vset.pattern.permute.xlu0 0
    %3578 = vperm.xlu0 %3577, %v3576
    %v3579 = vpop.permute.xlu0 %3578
    %v3581 = vadd.f32 %v3573, %v3579
    %v3582 = vld [vmem:[%s69] sm:$0xff]
    %v3583 = vld [vmem:[%s69 + $0x8] sm:$0xff]
    %v3584 = vld [vmem:[%s69 + $0x10] sm:$0xff]
    %v3585 = vld [vmem:[%s69 + $0x18] sm:$0xff]
    %v3586 = vld [vmem:[%s69 + $0x20] sm:$0xff]
    %v3587 = vld [vmem:[%s69 + $0x28] sm:$0xff]
    %v3588 = vld [vmem:[%s69 + $0x30] sm:$0xff]
    %v3589 = vld [vmem:[%s69 + $0x38] sm:$0xff]
    %v3590 = vld [vmem:[%s69 + $0x40] sm:$0xff]
    %v3591 = vld [vmem:[%s69 + $0x48] sm:$0xff]
    %v3592 = vld [vmem:[%s69 + $0x50] sm:$0xff]
    %v3593 = vld [vmem:[%s69 + $0x58] sm:$0xff]
    %v3594 = vld [vmem:[%s69 + $0x60] sm:$0xff]
    %v3595 = vld [vmem:[%s69 + $0x68] sm:$0xff]
    %v3596 = vld [vmem:[%s69 + $0x70] sm:$0xff]
    %v3597 = vld [vmem:[%s69 + $0x78] sm:$0xff]
    %v3598 = vld [vmem:[#allocation44] sm:$0x1]
    %v3600 = vperm.slane %v3598, 0
    %3602 = vmatpush.msra.mxu0 %v3597
    %3603 = vmatpush.msra.mxu0 %v3596
    %3604 = vmatpush.msra.mxu0 %v3595
    %3605 = vmatpush.msra.mxu0 %v3594
    %3606 = vmatpush.msra.mxu0 %v3593
    %3607 = vmatpush.msra.mxu0 %v3592
    %3608 = vmatpush.msra.mxu0 %v3591
    %3609 = vmatpush.msra.mxu0 %v3590
    %3610 = vmatpush.msra.mxu0 %v3589
    %3611 = vmatpush.msra.mxu0 %v3588
    %3612 = vmatpush.msra.mxu0 %v3587
    %3613 = vmatpush.msra.mxu0 %v3586
    %3614 = vmatpush.msra.mxu0 %v3585
    %3615 = vmatpush.msra.mxu0 %v3584
    %3616 = vmatpush.msra.mxu0 %v3583
    %3617 = vmatpush.msra.mxu0 %v3582
    %3618 = vmatmul.f32.gmra.mxu0 %v3581
    %v3619 = vpop.f32.mrf.mxu0
    %v3620 = vadd.f32 %v3600, %v3619
    %3621 = vdwg.mxu0
    %v3623 = vsel %vm788, %v3620, 0
    %3625 = vmatpush.msra.mxu0 0.0
    %3626 = vmatpush.msra.mxu0 0.0
    %3627 = vmatpush.msra.mxu0 0.0
    %3628 = vmatpush.msra.mxu0 0.0
    %3629 = vmatpush.msra.mxu0 0.0
    %3630 = vmatpush.msra.mxu0 0.0
    %3631 = vmatpush.msra.mxu0 0.0
    %3632 = vmatpush.msra.mxu0 0.0
    %3633 = vmatpush.msra.mxu0 0.0
    %3634 = vmatpush.msra.mxu0 0.0
    %3635 = vmatpush.msra.mxu0 0.0
    %3636 = vmatpush.msra.mxu0 0.0
    %3637 = vmatpush.msra.mxu0 0.0
    %3638 = vmatpush.msra.mxu0 0.0
    %3639 = vmatpush.msra.mxu0 0.0
    %3640 = vmatpush.msra.mxu0 %v3623
    %3641 = vmatmul.f32.gmra.mxu0 %v777
    %v3642 = vpop.f32.mrf.mxu0
    %v3643 = vadd.f32 0.0, %v3642
    %3644 = vmatmul.f32.gmra.mxu0 %v780
    %v3645 = vpop.f32.mrf.mxu0
    %v3646 = vadd.f32 0.0, %v3645
    %3647 = vmatmul.f32.gmra.mxu0 %v783
    %v3648 = vpop.f32.mrf.mxu0
    %v3649 = vadd.f32 0.0, %v3648
    %3650 = vmatmul.f32.gmra.mxu0 %v786
    %v3651 = vpop.f32.mrf.mxu0
    %v3652 = vadd.f32 0.0, %v3651
    %3653 = vdwg.mxu0
    %v3654 = vld [vmem:[#allocation11] sm:$0xff]
    %v3655 = vld [vmem:[#allocation11 + $0x8] sm:$0xff]
    %v3656 = vld [vmem:[#allocation11 + $0x10] sm:$0xff]
    %v3657 = vld [vmem:[#allocation11 + $0x18] sm:$0xff]
    %v3658 = vmul.f32 %v3643, %v3654
    %v3659 = vmul.f32 %v3646, %v3655
    %v3660 = vmul.f32 %v3649, %v3656
    %v3661 = vmul.f32 %v3652, %v3657
    %v3662 = vld [vmem:[#allocation46] sm:$0xff]
    %v3663 = vld [vmem:[#allocation46 + $0x8] sm:$0xff]
    %v3664 = vld [vmem:[#allocation46 + $0x10] sm:$0xff]
    %v3665 = vld [vmem:[#allocation46 + $0x18] sm:$0xff]
    %v3666 = vld [vmem:[#allocation46 + $0x20] sm:$0xff]
    %v3667 = vld [vmem:[#allocation46 + $0x28] sm:$0xff]
    %v3668 = vld [vmem:[#allocation46 + $0x30] sm:$0xff]
    %v3669 = vld [vmem:[#allocation46 + $0x38] sm:$0xff]
    %v3670 = vld [vmem:[#allocation46 + $0x40] sm:$0xff]
    %v3671 = vld [vmem:[#allocation46 + $0x48] sm:$0xff]
    %v3672 = vld [vmem:[#allocation46 + $0x50] sm:$0xff]
    %v3673 = vld [vmem:[#allocation46 + $0x58] sm:$0xff]
    %v3674 = vld [vmem:[#allocation46 + $0x60] sm:$0xff]
    %v3675 = vld [vmem:[#allocation46 + $0x68] sm:$0xff]
    %v3676 = vld [vmem:[#allocation46 + $0x70] sm:$0xff]
    %v3677 = vld [vmem:[#allocation46 + $0x78] sm:$0xff]
    %v3679 = vsel %vm1137, %v3658, 0
    %v3682 = vsel %vm1137, %v3659, 0
    %v3685 = vsel %vm1137, %v3660, 0
    %v3688 = vsel %vm1137, %v3661, 0
    %3690 = vmatpush.msra.mxu0 0.0
    %3691 = vmatpush.msra.mxu0 0.0
    %3692 = vmatpush.msra.mxu0 0.0
    %3693 = vmatpush.msra.mxu0 0.0
    %3694 = vmatpush.msra.mxu0 0.0
    %3695 = vmatpush.msra.mxu0 0.0
    %3696 = vmatpush.msra.mxu0 0.0
    %3697 = vmatpush.msra.mxu0 0.0
    %3698 = vmatpush.msra.mxu0 %v3676
    %3699 = vmatpush.msra.mxu0 %v3674
    %3700 = vmatpush.msra.mxu0 %v3672
    %3701 = vmatpush.msra.mxu0 %v3670
    %3702 = vmatpush.msra.mxu0 %v3668
    %3703 = vmatpush.msra.mxu0 %v3666
    %3704 = vmatpush.msra.mxu0 %v3664
    %3705 = vmatpush.msra.mxu0 %v3662
    %3706 = vmatmul.f32.gmra.mxu0 %v3679
    %v3707 = vpop.f32.mrf.mxu0
    %v3708 = vadd.f32 0.0, %v3707
    %3709 = vmatmul.f32.gmra.mxu0 %v3682
    %v3710 = vpop.f32.mrf.mxu0
    %v3711 = vadd.f32 0.0, %v3710
    %3712 = vmatmul.f32.gmra.mxu0 %v3685
    %v3713 = vpop.f32.mrf.mxu0
    %v3714 = vadd.f32 0.0, %v3713
    %3715 = vmatmul.f32.gmra.mxu0 %v3688
    %v3716 = vpop.f32.mrf.mxu0
    %v3717 = vadd.f32 0.0, %v3716
    %3718 = vdwg.mxu0
    %3719 = vmatpush.msra.mxu0 0.0
    %3720 = vmatpush.msra.mxu0 0.0
    %3721 = vmatpush.msra.mxu0 0.0
    %3722 = vmatpush.msra.mxu0 0.0
    %3723 = vmatpush.msra.mxu0 0.0
    %3724 = vmatpush.msra.mxu0 0.0
    %3725 = vmatpush.msra.mxu0 0.0
    %3726 = vmatpush.msra.mxu0 0.0
    %3727 = vmatpush.msra.mxu0 %v3677
    %3728 = vmatpush.msra.mxu0 %v3675
    %3729 = vmatpush.msra.mxu0 %v3673
    %3730 = vmatpush.msra.mxu0 %v3671
    %3731 = vmatpush.msra.mxu0 %v3669
    %3732 = vmatpush.msra.mxu0 %v3667
    %3733 = vmatpush.msra.mxu0 %v3665
    %3734 = vmatpush.msra.mxu0 %v3663
    %3735 = vmatmul.f32.gmra.mxu0 %v3679
    %v3736 = vpop.f32.mrf.mxu0
    %v3737 = vadd.f32 0.0, %v3736
    %3738 = vmatmul.f32.gmra.mxu0 %v3682
    %v3739 = vpop.f32.mrf.mxu0
    %v3740 = vadd.f32 0.0, %v3739
    %3741 = vmatmul.f32.gmra.mxu0 %v3685
    %v3742 = vpop.f32.mrf.mxu0
    %v3743 = vadd.f32 0.0, %v3742
    %3744 = vmatmul.f32.gmra.mxu0 %v3688
    %v3745 = vpop.f32.mrf.mxu0
    %v3746 = vadd.f32 0.0, %v3745
    %3747 = vdwg.mxu0
    %v3748 = vmul.f32 %v3183, %v3708
    %v3749 = vmul.f32 %v3184, %v3737
    %v3750 = vmul.f32 %v3185, %v3711
    %v3751 = vmul.f32 %v3186, %v3740
    %v3752 = vmul.f32 %v3187, %v3714
    %v3753 = vmul.f32 %v3188, %v3743
    %v3754 = vmul.f32 %v3189, %v3717
    %v3755 = vmul.f32 %v3190, %v3746
    %v3756 = vld [vmem:[#allocation47] sm:$0xff]
    %v3757 = vld [vmem:[#allocation47 + $0x8] sm:$0xff]
    %v3758 = vld [vmem:[#allocation47 + $0x10] sm:$0xff]
    %v3759 = vld [vmem:[#allocation47 + $0x18] sm:$0xff]
    %v3760 = vld [vmem:[#allocation47 + $0x20] sm:$0xff]
    %v3761 = vld [vmem:[#allocation47 + $0x28] sm:$0xff]
    %v3762 = vld [vmem:[#allocation47 + $0x30] sm:$0xff]
    %v3763 = vld [vmem:[#allocation47 + $0x38] sm:$0xff]
    %v3764 = vld [vmem:[#allocation47 + $0x40] sm:$0xff]
    %v3765 = vld [vmem:[#allocation47 + $0x48] sm:$0xff]
    %v3766 = vld [vmem:[#allocation47 + $0x50] sm:$0xff]
    %v3767 = vld [vmem:[#allocation47 + $0x58] sm:$0xff]
    %v3768 = vld [vmem:[#allocation47 + $0x60] sm:$0xff]
    %v3769 = vld [vmem:[#allocation47 + $0x68] sm:$0xff]
    %v3770 = vld [vmem:[#allocation47 + $0x70] sm:$0xff]
    %v3771 = vld [vmem:[#allocation47 + $0x78] sm:$0xff]
    %v3772 = vld [vmem:[#allocation47 + $0x80] sm:$0xff]
    %v3773 = vld [vmem:[#allocation47 + $0x88] sm:$0xff]
    %v3774 = vld [vmem:[#allocation47 + $0x90] sm:$0xff]
    %v3775 = vld [vmem:[#allocation47 + $0x98] sm:$0xff]
    %v3776 = vld [vmem:[#allocation47 + $0xa0] sm:$0xff]
    %v3777 = vld [vmem:[#allocation47 + $0xa8] sm:$0xff]
    %v3778 = vld [vmem:[#allocation47 + $0xb0] sm:$0xff]
    %v3779 = vld [vmem:[#allocation47 + $0xb8] sm:$0xff]
    %v3780 = vld [vmem:[#allocation47 + $0xc0] sm:$0xff]
    %v3781 = vld [vmem:[#allocation47 + $0xc8] sm:$0xff]
    %v3782 = vld [vmem:[#allocation47 + $0xd0] sm:$0xff]
    %v3783 = vld [vmem:[#allocation47 + $0xd8] sm:$0xff]
    %v3784 = vld [vmem:[#allocation47 + $0xe0] sm:$0xff]
    %v3785 = vld [vmem:[#allocation47 + $0xe8] sm:$0xff]
    %v3786 = vld [vmem:[#allocation47 + $0xf0] sm:$0xff]
    %v3787 = vld [vmem:[#allocation47 + $0xf8] sm:$0xff]
    %3788 = vmatpush.msra.mxu0 %v3771
    %3789 = vmatpush.msra.mxu0 %v3770
    %3790 = vmatpush.msra.mxu0 %v3769
    %3791 = vmatpush.msra.mxu0 %v3768
    %3792 = vmatpush.msra.mxu0 %v3767
    %3793 = vmatpush.msra.mxu0 %v3766
    %3794 = vmatpush.msra.mxu0 %v3765
    %3795 = vmatpush.msra.mxu0 %v3764
    %3796 = vmatpush.msra.mxu0 %v3763
    %3797 = vmatpush.msra.mxu0 %v3762
    %3798 = vmatpush.msra.mxu0 %v3761
    %3799 = vmatpush.msra.mxu0 %v3760
    %3800 = vmatpush.msra.mxu0 %v3759
    %3801 = vmatpush.msra.mxu0 %v3758
    %3802 = vmatpush.msra.mxu0 %v3757
    %3803 = vmatpush.msra.mxu0 %v3756
    %3804 = vmatmul.f32.gmra.mxu0 %v3748
    %v3805 = vpop.f32.mrf.mxu0
    %v3806 = vadd.f32 0.0, %v3805
    %3807 = vmatmul.f32.gmra.mxu0 %v3750
    %v3808 = vpop.f32.mrf.mxu0
    %v3809 = vadd.f32 0.0, %v3808
    %3810 = vmatmul.f32.gmra.mxu0 %v3752
    %v3811 = vpop.f32.mrf.mxu0
    %v3812 = vadd.f32 0.0, %v3811
    %3813 = vmatmul.f32.gmra.mxu0 %v3754
    %v3814 = vpop.f32.mrf.mxu0
    %v3815 = vadd.f32 0.0, %v3814
    %3816 = vdwg.mxu0
    %3817 = vmatpush.msra.mxu0 %v3787
    %3818 = vmatpush.msra.mxu0 %v3786
    %3819 = vmatpush.msra.mxu0 %v3785
    %3820 = vmatpush.msra.mxu0 %v3784
    %3821 = vmatpush.msra.mxu0 %v3783
    %3822 = vmatpush.msra.mxu0 %v3782
    %3823 = vmatpush.msra.mxu0 %v3781
    %3824 = vmatpush.msra.mxu0 %v3780
    %3825 = vmatpush.msra.mxu0 %v3779
    %3826 = vmatpush.msra.mxu0 %v3778
    %3827 = vmatpush.msra.mxu0 %v3777
    %3828 = vmatpush.msra.mxu0 %v3776
    %3829 = vmatpush.msra.mxu0 %v3775
    %3830 = vmatpush.msra.mxu0 %v3774
    %3831 = vmatpush.msra.mxu0 %v3773
    %3832 = vmatpush.msra.mxu0 %v3772
    %3833 = vmatmul.f32.gmra.mxu0 %v3749
    %v3834 = vpop.f32.mrf.mxu0
    %v3835 = vadd.f32 %v3806, %v3834
    %3836 = vmatmul.f32.gmra.mxu0 %v3751
    %v3837 = vpop.f32.mrf.mxu0
    %v3838 = vadd.f32 %v3809, %v3837
    %3839 = vmatmul.f32.gmra.mxu0 %v3753
    %v3840 = vpop.f32.mrf.mxu0
    %v3841 = vadd.f32 %v3812, %v3840
    %3842 = vmatmul.f32.gmra.mxu0 %v3755
    %v3843 = vpop.f32.mrf.mxu0
    %v3844 = vadd.f32 %v3815, %v3843
    %3845 = vdwg.mxu0
    %v3846 = vld [vmem:[#allocation13] sm:$0xff]
    %v3847 = vld [vmem:[#allocation13 + $0x8] sm:$0xff]
    %v3848 = vld [vmem:[#allocation13 + $0x10] sm:$0xff]
    %v3849 = vld [vmem:[#allocation13 + $0x18] sm:$0xff]
    %v3850 = vmul.f32 %v3835, %v3846
    %v3851 = vmul.f32 %v3838, %v3847
    %v3852 = vmul.f32 %v3841, %v3848
    %v3853 = vmul.f32 %v3844, %v3849
    %v3854 = vld [vmem:[%s7] sm:$0x3]
    %vm3855 = vcmask 261120
    %v3857 = vsel %vm3855, %v3854, 0
    %3859 = vmatpush.msra.mxu0 0.0
    %3860 = vmatpush.msra.mxu0 0.0
    %3861 = vmatpush.msra.mxu0 0.0
    %3862 = vmatpush.msra.mxu0 0.0
    %3863 = vmatpush.msra.mxu0 0.0
    %3864 = vmatpush.msra.mxu0 0.0
    %3865 = vmatpush.msra.mxu0 0.0
    %3866 = vmatpush.msra.mxu0 0.0
    %3867 = vmatpush.msra.mxu0 0.0
    %3868 = vmatpush.msra.mxu0 0.0
    %3869 = vmatpush.msra.mxu0 0.0
    %3870 = vmatpush.msra.mxu0 0.0
    %3871 = vmatpush.msra.mxu0 %v3853
    %3872 = vmatpush.msra.mxu0 %v3852
    %3873 = vmatpush.msra.mxu0 %v3851
    %3874 = vmatpush.msra.mxu0 %v3850
    %3875 = vmatmul.f32.gmra.mxu0 %v3857
    %v3876 = vpop.f32.mrf.mxu0
    %v3877 = vadd.f32 0.0, %v3876
    %3878 = vdwg.mxu0
    %3879 = vst [vmem:[#allocation49] sm:$0x3] %v3877
    // Predicated region
    $region282: #{branch_net_pallas.1} parent=1 // pred_check
      _
    $region283: #{branch_net_pallas.1} parent=1 // pred_check_branch
      %3881 = sbr.rel (0) target = $region285
    $region284: #{branch_net_pallas.1} parent=1 // pred_region
      %3883 = vsyncadd [#allocation10], 0
      %s3885 = sshll.u32 [#allocation49], 4
      %s3886 = int_to_ptr.vmem [resolvable:$true] %s3885
      %s3887 = sshll.u32 %s89, 4
      %s3888 = int_to_ptr.hbm [resolvable:$true] %s3887
      %3890 = dma.vmem_to_hbm [thread:$0]  %s3886, 32, %s3888, [#allocation10]
    $region285: #{branch_net_pallas.1} parent=1 // pred_fallthru
      _
    // Predicated region
    $region286: #{branch_net_pallas.1} parent=1 // pred_check
      _
    $region287: #{branch_net_pallas.1} parent=1 // pred_check_branch
      %3892 = sbr.rel (0) target = $region289
    $region288: #{branch_net_pallas.1} parent=1 // pred_region
      %3894 = dma.done [#allocation10], 32
    $region289: #{branch_net_pallas.1} parent=1 // pred_fallthru
      _
    %3895 = vsyncpa [#allocation9], 1
    %3896 = vsyncpa [#allocation12], 1
    %3897 = vsyncpa [#allocation15], 1
    %3898 = vsyncpa [#allocation18], 1
    %3899 = vsyncpa [#allocation21], 1
    %3900 = vsyncpa [#allocation24], 1
    %3901 = vsyncpa [#allocation27], 1
    %3902 = vsyncpa [#allocation30], 1
    %3903 = vsyncpa [#allocation33], 1
    %3904 = vsyncpa [#allocation36], 1
    %3905 = vsyncpa [#allocation39], 1
    %3906 = vsyncpa [#allocation42], 1
    %3907 = vsyncpa [#allocation45], 1
    %3908 = vsyncpa [#allocation48], 1
    %3909 = vsyncpa [#allocation10], 1

</llo_original>
